<compile_context>
chip_gen: v5e
topology: v5e:2x2
jax: 0.10.0
libtpu: 0.0.40
codegen_flags: <defaults>
</compile_context>

<pallas_src>
import jax
import jax.numpy as jnp
from jax.experimental import pallas as pl
from jax.experimental.pallas import tpu as pltpu

EPS = 1e-5
L4_PAD = 128    # layer-4 feature width padded 20 -> 128 (lane-aligned)
OUT_PAD = 128   # head output width padded 10 -> 128 (lane-dense stores)
NEG_BIG = -1e30


def _mlp_kernel(x_ref,
                w1_ref, g1_ref, be1_ref,
                w2_ref, g2_ref, be2_ref,
                w3_ref, g3_ref, be3_ref,
                w4_ref, g4_ref, be4_ref,
                w5_ref, b5_ref,
                out_ref):
    def lin_bn_relu(h_bf16, w_ref, g_ref, be_ref):
        # Linear (bias dropped -- cancelled by training-mode BN mean subtract).
        # bf16 MXU operands, f32 accumulation.
        y = jnp.dot(h_bf16, w_ref[...], preferred_element_type=jnp.float32)
        # Training-mode BN stats (biased batch variance), single pass over y.
        mean = jnp.mean(y, axis=0, keepdims=True)
        mean_sq = jnp.mean(y * y, axis=0, keepdims=True)
        var = jnp.maximum(mean_sq - mean * mean, 0.0)   # clamp vs cancellation
        inv = jax.lax.rsqrt(var + EPS)                  # EUP slot (free-ish)
        scale = g_ref[...] * inv                        # tiny [1, out] rows
        shift = be_ref[...] - mean * scale
        # Folded BN + ReLU, cast to bf16 so the live inter-layer activation is
        # half-width and already in MXU input dtype for the next dot.
        return jnp.maximum(y * scale + shift, 0.0).astype(jnp.bfloat16)

    h = x_ref[...]                                   # already bf16
    h = lin_bn_relu(h, w1_ref, g1_ref, be1_ref)      # 784  -> 1024
    h = lin_bn_relu(h, w2_ref, g2_ref, be2_ref)      # 1024 -> 512
    h = lin_bn_relu(h, w3_ref, g3_ref, be3_ref)      # 512  -> 256
    h = lin_bn_relu(h, w4_ref, g4_ref, be4_ref)      # 256  -> 128 (20 real)

    # Head: lane-aligned [B,128] x [128,128] matmul; pad bias = -1e30 so the
    # padded logit columns contribute exp()=0 to the LSE.  LogSoftmax in f32.
    logits = jnp.dot(h, w5_ref[...],
                     preferred_element_type=jnp.float32) + b5_ref[...]
    m = jnp.max(logits, axis=1, keepdims=True)
    z = logits - m
    lse = jnp.log(jnp.sum(jnp.exp(z), axis=1, keepdims=True))
    out_ref[...] = (z - lse).astype(out_ref.dtype)


def prepare_params(params):
    """One-time conversion of raw (PyTorch-layout) params into kernel-ready
    arrays.  Hoisted out of the forward path: bf16 weight casts, lane padding
    of the narrow layer-4/head tensors and the (1,-1) gamma/beta reshape all
    happen exactly once here, not on every forward call."""
    prepped = []
    for li, (w, b, g, be) in enumerate(params["embedding"]):
        del b  # Linear bias is dead under training-mode BatchNorm.
        w = w.astype(jnp.bfloat16)
        g = g.astype(jnp.float32).reshape(1, -1)
        be = be.astype(jnp.float32).reshape(1, -1)
        if li == 3:
            # Pad 20 -> 128 features.  Zero W columns + gamma=0/beta=0 for the
            # pads => padded activation columns are exactly 0 after BN+ReLU.
            w = jnp.zeros((w.shape[0], L4_PAD), jnp.bfloat16).at[:, :20].set(w)
            g = jnp.zeros((1, L4_PAD), jnp.float32).at[:, :20].set(g)
            be = jnp.zeros((1, L4_PAD), jnp.float32).at[:, :20].set(be)
        prepped += [w, g, be]

    w5, b5 = params["classification"]
    w5p = jnp.zeros((L4_PAD, OUT_PAD), jnp.bfloat16).at[:20, :10].set(
        w5.astype(jnp.bfloat16))
    b5p = jnp.full((1, OUT_PAD), NEG_BIG, jnp.float32).at[0, :10].set(
        b5.astype(jnp.float32))
    prepped += [w5p, b5p]
    return prepped


def _vmem_limit_bytes():
    # Generation-aware: ~75% of physical VMEM, capped at 100 MiB.
    # v7x (64 MiB physical) -> 48 MiB; v5e/v6e (128 MiB) -> 96 MiB.
    try:
        info = pltpu.get_tpu_info()
        cap = int(getattr(info, "vmem_capacity_bytes", 0)) or (64 << 20)
    except Exception:
        cap = 64 << 20
    return min((cap * 3) // 4, 100 << 20)


def mymodel_forward(x, prepped_params):
    """x: anything reshapeable to [-1, 784]. Returns [B, 10] f32 log-probs.

    Monolithic (gridless) call: training-mode BN needs full-batch statistics,
    so the whole batch stays VMEM-resident.  Fine for small/medium B.
    TODO(synk): batch-gridded two-pass BN for very large B / dual-TC v7x.
    """
    x = x.reshape(-1, 784).astype(jnp.bfloat16)  # first dot is bf16 anyway
    B = x.shape[0]

    vmem_spec = pl.BlockSpec(memory_space=pltpu.MemorySpace.VMEM)
    n_args = 1 + len(prepped_params)
    out_padded = pl.pallas_call(
        _mlp_kernel,
        out_shape=jax.ShapeDtypeStruct((B, OUT_PAD), jnp.float32),
        in_specs=[vmem_spec] * n_args,
        out_specs=vmem_spec,
        compiler_params=pltpu.CompilerParams(
            vmem_limit_bytes=_vmem_limit_bytes()),
    )(x, *prepped_params)
    return out_padded[:, :10]


def init_params(key):
    """Deterministic init matching the PyTorch module's shapes.
    Linear weights stored transposed: [in, out]."""
    dims = [(784, 1024), (1024, 512), (512, 256), (256, 20)]
    embedding = []
    for (din, dout) in dims:
        key, kw, kb = jax.random.split(key, 3)
        bound = 1.0 / jnp.sqrt(din)
        w = jax.random.uniform(kw, (din, dout), jnp.float32, -bound, bound)
        b = jax.random.uniform(kb, (dout,), jnp.float32, -bound, bound)
        gamma = jnp.ones((dout,), jnp.float32)   # BatchNorm1d weight init
        beta = jnp.zeros((dout,), jnp.float32)   # BatchNorm1d bias init
        embedding.append((w, b, gamma, beta))

    key, kw, kb = jax.random.split(key, 3)
    bound = 1.0 / jnp.sqrt(20.0)
    w5 = jax.random.uniform(kw, (20, 10), jnp.float32, -bound, bound)
    b5 = jax.random.uniform(kb, (10,), jnp.float32, -bound, bound)
    return {"embedding": embedding, "classification": (w5, b5)}


if __name__ == "__main__":
    key = jax.random.PRNGKey(0)
    key, kx = jax.random.split(key)
    params = init_params(key)
    prepped = prepare_params(params)   # one-time, hoisted out of forward

    # Small example input: batch=8 MNIST-like flattened images (8, 784).
    # NOTE: B=8 is latency-bound (<7% MXU row fill); batch >=128 (v5e) /
    # >=256 (v6e/v7x) rows per call before judging any perf numbers.
    x = jax.random.normal(kx, (8, 784), dtype=jnp.float32)

    out = mymodel_forward(x, prepped)
    out = jax.block_until_ready(out)

    assert out.shape == (8, 10)
    # Sanity: log-softmax rows should exponentiate-sum to ~1
    assert jnp.allclose(jnp.exp(out).sum(axis=1), 1.0, atol=1e-3)
    print("KERNEL_OK")
</pallas_src>

<mosaic_0001>
module attributes {stable_mosaic.version = 11 : i64} {
  func.func @_mlp_kernel(%arg0: memref<8x784xbf16, #tpu.memory_space<vmem>>, %arg1: memref<784x1024xbf16, #tpu.memory_space<vmem>>, %arg2: memref<1x1024xf32, #tpu.memory_space<vmem>>, %arg3: memref<1x1024xf32, #tpu.memory_space<vmem>>, %arg4: memref<1024x512xbf16, #tpu.memory_space<vmem>>, %arg5: memref<1x512xf32, #tpu.memory_space<vmem>>, %arg6: memref<1x512xf32, #tpu.memory_space<vmem>>, %arg7: memref<512x256xbf16, #tpu.memory_space<vmem>>, %arg8: memref<1x256xf32, #tpu.memory_space<vmem>>, %arg9: memref<1x256xf32, #tpu.memory_space<vmem>>, %arg10: memref<256x128xbf16, #tpu.memory_space<vmem>>, %arg11: memref<1x128xf32, #tpu.memory_space<vmem>>, %arg12: memref<1x128xf32, #tpu.memory_space<vmem>>, %arg13: memref<128x128xbf16, #tpu.memory_space<vmem>>, %arg14: memref<1x128xf32, #tpu.memory_space<vmem>>, %arg15: memref<8x128xf32, #tpu.memory_space<vmem>>) attributes {dimension_semantics = [], scalar_prefetch = 0 : i64, scratch_operands = 0 : i64, tpu.core_type = #tpu.core_type<tc>} {
    %c0 = arith.constant 0 : index
    %c0_0 = arith.constant 0 : index
    %0 = vector.load %arg0[%c0, %c0_0] : memref<8x784xbf16, #tpu.memory_space<vmem>>, vector<8x784xbf16>
    %c0_1 = arith.constant 0 : index
    %c0_2 = arith.constant 0 : index
    %1 = vector.load %arg1[%c0_1, %c0_2] : memref<784x1024xbf16, #tpu.memory_space<vmem>>, vector<784x1024xbf16>
    %cst = arith.constant dense<0.000000e+00> : vector<8x1024xf32>
    %2 = tpu.matmul %0, %1, %cst {dimension_numbers = #tpu.dot_dimension_numbers<[1], [0], [0], [1], [0, 0, 1, 1], [], []>} : vector<8x784xbf16>, vector<784x1024xbf16>, vector<8x1024xf32> -> vector<8x1024xf32>
    %cst_3 = arith.constant dense<0.000000e+00> : vector<1024xf32>
    %3 = vector.multi_reduction <add>, %2, %cst_3 [0] : vector<8x1024xf32> to vector<1024xf32>
    %4 = vector.shape_cast %3 : vector<1024xf32> to vector<1x1024xf32>
    %cst_4 = arith.constant 8.000000e+00 : f32
    %5 = vector.broadcast %cst_4 : f32 to vector<1x1024xf32>
    %6 = arith.divf %4, %5 : vector<1x1024xf32>
    %7 = arith.mulf %2, %2 : vector<8x1024xf32>
    %cst_5 = arith.constant dense<0.000000e+00> : vector<1024xf32>
    %8 = vector.multi_reduction <add>, %7, %cst_5 [0] : vector<8x1024xf32> to vector<1024xf32>
    %9 = vector.shape_cast %8 : vector<1024xf32> to vector<1x1024xf32>
    %cst_6 = arith.constant 8.000000e+00 : f32
    %10 = vector.broadcast %cst_6 : f32 to vector<1x1024xf32>
    %11 = arith.divf %9, %10 : vector<1x1024xf32>
    %12 = arith.mulf %6, %6 : vector<1x1024xf32>
    %13 = arith.subf %11, %12 : vector<1x1024xf32>
    %cst_7 = arith.constant 0.000000e+00 : f32
    %14 = vector.broadcast %cst_7 : f32 to vector<1x1024xf32>
    %15 = arith.maximumf %13, %14 : vector<1x1024xf32>
    %cst_8 = arith.constant 9.99999974E-6 : f32
    %16 = vector.broadcast %cst_8 : f32 to vector<1x1024xf32>
    %17 = arith.addf %15, %16 : vector<1x1024xf32>
    %18 = math.rsqrt %17 : vector<1x1024xf32>
    %c0_9 = arith.constant 0 : index
    %c0_10 = arith.constant 0 : index
    %19 = vector.load %arg2[%c0_9, %c0_10] : memref<1x1024xf32, #tpu.memory_space<vmem>>, vector<1x1024xf32>
    %20 = arith.mulf %19, %18 : vector<1x1024xf32>
    %c0_11 = arith.constant 0 : index
    %c0_12 = arith.constant 0 : index
    %21 = vector.load %arg3[%c0_11, %c0_12] : memref<1x1024xf32, #tpu.memory_space<vmem>>, vector<1x1024xf32>
    %22 = arith.mulf %6, %20 : vector<1x1024xf32>
    %23 = arith.subf %21, %22 : vector<1x1024xf32>
    %24 = vector.broadcast %20 : vector<1x1024xf32> to vector<8x1024xf32>
    %25 = arith.mulf %2, %24 : vector<8x1024xf32>
    %26 = vector.broadcast %23 : vector<1x1024xf32> to vector<8x1024xf32>
    %27 = arith.addf %25, %26 : vector<8x1024xf32>
    %cst_13 = arith.constant 0.000000e+00 : f32
    %28 = vector.broadcast %cst_13 : f32 to vector<8x1024xf32>
    %29 = arith.maximumf %27, %28 : vector<8x1024xf32>
    %30 = arith.truncf %29 : vector<8x1024xf32> to vector<8x1024xbf16>
    %c0_14 = arith.constant 0 : index
    %c0_15 = arith.constant 0 : index
    %31 = vector.load %arg4[%c0_14, %c0_15] : memref<1024x512xbf16, #tpu.memory_space<vmem>>, vector<1024x512xbf16>
    %cst_16 = arith.constant dense<0.000000e+00> : vector<8x512xf32>
    %32 = tpu.matmul %30, %31, %cst_16 {dimension_numbers = #tpu.dot_dimension_numbers<[1], [0], [0], [1], [0, 0, 1, 1], [], []>} : vector<8x1024xbf16>, vector<1024x512xbf16>, vector<8x512xf32> -> vector<8x512xf32>
    %cst_17 = arith.constant dense<0.000000e+00> : vector<512xf32>
    %33 = vector.multi_reduction <add>, %32, %cst_17 [0] : vector<8x512xf32> to vector<512xf32>
    %34 = vector.shape_cast %33 : vector<512xf32> to vector<1x512xf32>
    %cst_18 = arith.constant 8.000000e+00 : f32
    %35 = vector.broadcast %cst_18 : f32 to vector<1x512xf32>
    %36 = arith.divf %34, %35 : vector<1x512xf32>
    %37 = arith.mulf %32, %32 : vector<8x512xf32>
    %cst_19 = arith.constant dense<0.000000e+00> : vector<512xf32>
    %38 = vector.multi_reduction <add>, %37, %cst_19 [0] : vector<8x512xf32> to vector<512xf32>
    %39 = vector.shape_cast %38 : vector<512xf32> to vector<1x512xf32>
    %cst_20 = arith.constant 8.000000e+00 : f32
    %40 = vector.broadcast %cst_20 : f32 to vector<1x512xf32>
    %41 = arith.divf %39, %40 : vector<1x512xf32>
    %42 = arith.mulf %36, %36 : vector<1x512xf32>
    %43 = arith.subf %41, %42 : vector<1x512xf32>
    %cst_21 = arith.constant 0.000000e+00 : f32
    %44 = vector.broadcast %cst_21 : f32 to vector<1x512xf32>
    %45 = arith.maximumf %43, %44 : vector<1x512xf32>
    %cst_22 = arith.constant 9.99999974E-6 : f32
    %46 = vector.broadcast %cst_22 : f32 to vector<1x512xf32>
    %47 = arith.addf %45, %46 : vector<1x512xf32>
    %48 = math.rsqrt %47 : vector<1x512xf32>
    %c0_23 = arith.constant 0 : index
    %c0_24 = arith.constant 0 : index
    %49 = vector.load %arg5[%c0_23, %c0_24] : memref<1x512xf32, #tpu.memory_space<vmem>>, vector<1x512xf32>
    %50 = arith.mulf %49, %48 : vector<1x512xf32>
    %c0_25 = arith.constant 0 : index
    %c0_26 = arith.constant 0 : index
    %51 = vector.load %arg6[%c0_25, %c0_26] : memref<1x512xf32, #tpu.memory_space<vmem>>, vector<1x512xf32>
    %52 = arith.mulf %36, %50 : vector<1x512xf32>
    %53 = arith.subf %51, %52 : vector<1x512xf32>
    %54 = vector.broadcast %50 : vector<1x512xf32> to vector<8x512xf32>
    %55 = arith.mulf %32, %54 : vector<8x512xf32>
    %56 = vector.broadcast %53 : vector<1x512xf32> to vector<8x512xf32>
    %57 = arith.addf %55, %56 : vector<8x512xf32>
    %cst_27 = arith.constant 0.000000e+00 : f32
    %58 = vector.broadcast %cst_27 : f32 to vector<8x512xf32>
    %59 = arith.maximumf %57, %58 : vector<8x512xf32>
    %60 = arith.truncf %59 : vector<8x512xf32> to vector<8x512xbf16>
    %c0_28 = arith.constant 0 : index
    %c0_29 = arith.constant 0 : index
    %61 = vector.load %arg7[%c0_28, %c0_29] : memref<512x256xbf16, #tpu.memory_space<vmem>>, vector<512x256xbf16>
    %cst_30 = arith.constant dense<0.000000e+00> : vector<8x256xf32>
    %62 = tpu.matmul %60, %61, %cst_30 {dimension_numbers = #tpu.dot_dimension_numbers<[1], [0], [0], [1], [0, 0, 1, 1], [], []>} : vector<8x512xbf16>, vector<512x256xbf16>, vector<8x256xf32> -> vector<8x256xf32>
    %cst_31 = arith.constant dense<0.000000e+00> : vector<256xf32>
    %63 = vector.multi_reduction <add>, %62, %cst_31 [0] : vector<8x256xf32> to vector<256xf32>
    %64 = vector.shape_cast %63 : vector<256xf32> to vector<1x256xf32>
    %cst_32 = arith.constant 8.000000e+00 : f32
    %65 = vector.broadcast %cst_32 : f32 to vector<1x256xf32>
    %66 = arith.divf %64, %65 : vector<1x256xf32>
    %67 = arith.mulf %62, %62 : vector<8x256xf32>
    %cst_33 = arith.constant dense<0.000000e+00> : vector<256xf32>
    %68 = vector.multi_reduction <add>, %67, %cst_33 [0] : vector<8x256xf32> to vector<256xf32>
    %69 = vector.shape_cast %68 : vector<256xf32> to vector<1x256xf32>
    %cst_34 = arith.constant 8.000000e+00 : f32
    %70 = vector.broadcast %cst_34 : f32 to vector<1x256xf32>
    %71 = arith.divf %69, %70 : vector<1x256xf32>
    %72 = arith.mulf %66, %66 : vector<1x256xf32>
    %73 = arith.subf %71, %72 : vector<1x256xf32>
    %cst_35 = arith.constant 0.000000e+00 : f32
    %74 = vector.broadcast %cst_35 : f32 to vector<1x256xf32>
    %75 = arith.maximumf %73, %74 : vector<1x256xf32>
    %cst_36 = arith.constant 9.99999974E-6 : f32
    %76 = vector.broadcast %cst_36 : f32 to vector<1x256xf32>
    %77 = arith.addf %75, %76 : vector<1x256xf32>
    %78 = math.rsqrt %77 : vector<1x256xf32>
    %c0_37 = arith.constant 0 : index
    %c0_38 = arith.constant 0 : index
    %79 = vector.load %arg8[%c0_37, %c0_38] : memref<1x256xf32, #tpu.memory_space<vmem>>, vector<1x256xf32>
    %80 = arith.mulf %79, %78 : vector<1x256xf32>
    %c0_39 = arith.constant 0 : index
    %c0_40 = arith.constant 0 : index
    %81 = vector.load %arg9[%c0_39, %c0_40] : memref<1x256xf32, #tpu.memory_space<vmem>>, vector<1x256xf32>
    %82 = arith.mulf %66, %80 : vector<1x256xf32>
    %83 = arith.subf %81, %82 : vector<1x256xf32>
    %84 = vector.broadcast %80 : vector<1x256xf32> to vector<8x256xf32>
    %85 = arith.mulf %62, %84 : vector<8x256xf32>
    %86 = vector.broadcast %83 : vector<1x256xf32> to vector<8x256xf32>
    %87 = arith.addf %85, %86 : vector<8x256xf32>
    %cst_41 = arith.constant 0.000000e+00 : f32
    %88 = vector.broadcast %cst_41 : f32 to vector<8x256xf32>
    %89 = arith.maximumf %87, %88 : vector<8x256xf32>
    %90 = arith.truncf %89 : vector<8x256xf32> to vector<8x256xbf16>
    %c0_42 = arith.constant 0 : index
    %c0_43 = arith.constant 0 : index
    %91 = vector.load %arg10[%c0_42, %c0_43] : memref<256x128xbf16, #tpu.memory_space<vmem>>, vector<256x128xbf16>
    %cst_44 = arith.constant dense<0.000000e+00> : vector<8x128xf32>
    %92 = tpu.matmul %90, %91, %cst_44 {dimension_numbers = #tpu.dot_dimension_numbers<[1], [0], [0], [1], [0, 0, 1, 1], [], []>} : vector<8x256xbf16>, vector<256x128xbf16>, vector<8x128xf32> -> vector<8x128xf32>
    %cst_45 = arith.constant dense<0.000000e+00> : vector<128xf32>
    %93 = vector.multi_reduction <add>, %92, %cst_45 [0] : vector<8x128xf32> to vector<128xf32>
    %94 = vector.shape_cast %93 : vector<128xf32> to vector<1x128xf32>
    %cst_46 = arith.constant 8.000000e+00 : f32
    %95 = vector.broadcast %cst_46 : f32 to vector<1x128xf32>
    %96 = arith.divf %94, %95 : vector<1x128xf32>
    %97 = arith.mulf %92, %92 : vector<8x128xf32>
    %cst_47 = arith.constant dense<0.000000e+00> : vector<128xf32>
    %98 = vector.multi_reduction <add>, %97, %cst_47 [0] : vector<8x128xf32> to vector<128xf32>
    %99 = vector.shape_cast %98 : vector<128xf32> to vector<1x128xf32>
    %cst_48 = arith.constant 8.000000e+00 : f32
    %100 = vector.broadcast %cst_48 : f32 to vector<1x128xf32>
    %101 = arith.divf %99, %100 : vector<1x128xf32>
    %102 = arith.mulf %96, %96 : vector<1x128xf32>
    %103 = arith.subf %101, %102 : vector<1x128xf32>
    %cst_49 = arith.constant 0.000000e+00 : f32
    %104 = vector.broadcast %cst_49 : f32 to vector<1x128xf32>
    %105 = arith.maximumf %103, %104 : vector<1x128xf32>
    %cst_50 = arith.constant 9.99999974E-6 : f32
    %106 = vector.broadcast %cst_50 : f32 to vector<1x128xf32>
    %107 = arith.addf %105, %106 : vector<1x128xf32>
    %108 = math.rsqrt %107 : vector<1x128xf32>
    %c0_51 = arith.constant 0 : index
    %c0_52 = arith.constant 0 : index
    %109 = vector.load %arg11[%c0_51, %c0_52] : memref<1x128xf32, #tpu.memory_space<vmem>>, vector<1x128xf32>
    %110 = arith.mulf %109, %108 : vector<1x128xf32>
    %c0_53 = arith.constant 0 : index
    %c0_54 = arith.constant 0 : index
    %111 = vector.load %arg12[%c0_53, %c0_54] : memref<1x128xf32, #tpu.memory_space<vmem>>, vector<1x128xf32>
    %112 = arith.mulf %96, %110 : vector<1x128xf32>
    %113 = arith.subf %111, %112 : vector<1x128xf32>
    %114 = vector.broadcast %110 : vector<1x128xf32> to vector<8x128xf32>
    %115 = arith.mulf %92, %114 : vector<8x128xf32>
    %116 = vector.broadcast %113 : vector<1x128xf32> to vector<8x128xf32>
    %117 = arith.addf %115, %116 : vector<8x128xf32>
    %cst_55 = arith.constant 0.000000e+00 : f32
    %118 = vector.broadcast %cst_55 : f32 to vector<8x128xf32>
    %119 = arith.maximumf %117, %118 : vector<8x128xf32>
    %120 = arith.truncf %119 : vector<8x128xf32> to vector<8x128xbf16>
    %c0_56 = arith.constant 0 : index
    %c0_57 = arith.constant 0 : index
    %121 = vector.load %arg13[%c0_56, %c0_57] : memref<128x128xbf16, #tpu.memory_space<vmem>>, vector<128x128xbf16>
    %cst_58 = arith.constant dense<0.000000e+00> : vector<8x128xf32>
    %122 = tpu.matmul %120, %121, %cst_58 {dimension_numbers = #tpu.dot_dimension_numbers<[1], [0], [0], [1], [0, 0, 1, 1], [], []>} : vector<8x128xbf16>, vector<128x128xbf16>, vector<8x128xf32> -> vector<8x128xf32>
    %c0_59 = arith.constant 0 : index
    %c0_60 = arith.constant 0 : index
    %123 = vector.load %arg14[%c0_59, %c0_60] : memref<1x128xf32, #tpu.memory_space<vmem>>, vector<1x128xf32>
    %124 = vector.broadcast %123 : vector<1x128xf32> to vector<8x128xf32>
    %125 = arith.addf %122, %124 : vector<8x128xf32>
    %cst_61 = arith.constant dense<0xFF800000> : vector<8xf32>
    %126 = vector.multi_reduction <maximumf>, %125, %cst_61 [1] : vector<8x128xf32> to vector<8xf32>
    %127 = vector.shape_cast %126 : vector<8xf32> to vector<8x1xf32>
    %128 = vector.broadcast %127 : vector<8x1xf32> to vector<8x128xf32>
    %129 = arith.subf %125, %128 : vector<8x128xf32>
    %130 = math.exp %129 : vector<8x128xf32>
    %cst_62 = arith.constant dense<0.000000e+00> : vector<8xf32>
    %131 = vector.multi_reduction <add>, %130, %cst_62 [1] : vector<8x128xf32> to vector<8xf32>
    %132 = vector.shape_cast %131 : vector<8xf32> to vector<8x1xf32>
    %133 = math.log %132 : vector<8x1xf32>
    %134 = vector.broadcast %133 : vector<8x1xf32> to vector<8x128xf32>
    %135 = arith.subf %129, %134 : vector<8x128xf32>
    %c0_63 = arith.constant 0 : index
    %c0_64 = arith.constant 0 : index
    %136 = vector.load %arg15[%c0_63, %c0_64] : memref<8x128xf32, #tpu.memory_space<vmem>>, vector<8x128xf32>
    tpu.vector_store %arg15[%c0_63, %c0_64], %135 {strides = array<i32>} : memref<8x128xf32, #tpu.memory_space<vmem>>, vector<8x128xf32>,
    return
  }
}

</mosaic_0001>

<llo_original>
// kernel: tpu_custom_call.1
$region0: #{tpu_custom_call.1}
  #allocation0 [shape = 'u32[]', space=smem, size = 0x4, offset = 0x4, fixed_abs, tag = 'smem constant byte address 0x4 - core index']
  #allocation1 [shape = 'u32[72,128]{1,0:T(1,128)}', space=vmem, size = 0x9000, scoped, tag = 'internal scratch']
  %s0 = inlined_call_operand.hbm [shape: bf16[8,784], index: 0, kind: input, shape index: {}]
  %s1 = inlined_call_operand.hbm [shape: bf16[784,1024], index: 1, kind: input, shape index: {}]
  %s2 = inlined_call_operand.hbm [shape: f32[1,1024], index: 2, kind: input, shape index: {}]
  %s3 = inlined_call_operand.hbm [shape: f32[1,1024], index: 3, kind: input, shape index: {}]
  %s4 = inlined_call_operand.hbm [shape: bf16[1024,512], index: 4, kind: input, shape index: {}]
  %s5 = inlined_call_operand.hbm [shape: f32[1,512], index: 5, kind: input, shape index: {}]
  %s6 = inlined_call_operand.hbm [shape: f32[1,512], index: 6, kind: input, shape index: {}]
  %s7 = inlined_call_operand.hbm [shape: bf16[512,256], index: 7, kind: input, shape index: {}]
  %s8 = inlined_call_operand.hbm [shape: f32[1,256], index: 8, kind: input, shape index: {}]
  %s9 = inlined_call_operand.hbm [shape: f32[1,256], index: 9, kind: input, shape index: {}]
  %s10 = inlined_call_operand.hbm [shape: bf16[256,128], index: 10, kind: input, shape index: {}]
  %s11 = inlined_call_operand.hbm [shape: f32[1,128], index: 11, kind: input, shape index: {}]
  %s12 = inlined_call_operand.hbm [shape: f32[1,128], index: 12, kind: input, shape index: {}]
  %s13 = inlined_call_operand.hbm [shape: bf16[128,128], index: 13, kind: input, shape index: {}]
  %s14 = inlined_call_operand.hbm [shape: f32[1,128], index: 14, kind: input, shape index: {}]
  %s15 = inlined_call_operand.hbm [shape: f32[8,128], index: 15, kind: output, shape index: {}]
  %s16 = sld [smem:[#allocation0]]
  $region130: #{tpu_custom_call.1} parent=0
    _
  %s18 = ssub.s32 1, %s16
  %s19 = scalar_select 0, %s18, %s16
  $region1: #{tpu_custom_call.1} parent=0
    #allocation2 [shape = 'u8[14336]{0}', space=vmem, size = 0x3800, scoped, tag = 'input window, operand 0, single buffered']
    #allocation3 [shape = 's32[1]{0}', space=sflag, size = 0x4, scoped, tag = 'scoped memory for tpu_custom_call.1']
    #allocation4 [shape = 's32[1]{0}', space=sflag, size = 0x4, scoped, tag = 'scoped memory for tpu_custom_call.1']
    #allocation5 [shape = 'u8[1605632]{0}', space=vmem, size = 0x188000, scoped, tag = 'input window, operand 1, single buffered']
    #allocation6 [shape = 's32[1]{0}', space=sflag, size = 0x4, scoped, tag = 'scoped memory for tpu_custom_call.1']
    #allocation7 [shape = 'u8[4096]{0}', space=vmem, size = 0x1000, scoped, tag = 'input window, operand 2, single buffered']
    #allocation8 [shape = 'u8[4096]{0}', space=vmem, size = 0x1000, scoped, tag = 'input window, operand 3, single buffered']
    #allocation9 [shape = 's32[1]{0}', space=sflag, size = 0x4, scoped, tag = 'scoped memory for tpu_custom_call.1']
    #allocation10 [shape = 'u8[1048576]{0}', space=vmem, size = 0x100000, scoped, tag = 'input window, operand 4, single buffered']
    #allocation11 [shape = 'u8[2048]{0}', space=vmem, size = 0x800, scoped, tag = 'input window, operand 5, single buffered']
    #allocation12 [shape = 's32[1]{0}', space=sflag, size = 0x4, scoped, tag = 'scoped memory for tpu_custom_call.1']
    #allocation13 [shape = 'u8[2048]{0}', space=vmem, size = 0x800, scoped, tag = 'input window, operand 6, single buffered']
    #allocation14 [shape = 'u8[262144]{0}', space=vmem, size = 0x40000, scoped, tag = 'input window, operand 7, single buffered']
    #allocation15 [shape = 's32[1]{0}', space=sflag, size = 0x4, scoped, tag = 'scoped memory for tpu_custom_call.1']
    #allocation16 [shape = 'u8[1024]{0}', space=vmem, size = 0x400, scoped, tag = 'input window, operand 8, single buffered']
    #allocation17 [shape = 'u8[1024]{0}', space=vmem, size = 0x400, scoped, tag = 'input window, operand 9, single buffered']
    #allocation18 [shape = 's32[1]{0}', space=sflag, size = 0x4, scoped, tag = 'scoped memory for tpu_custom_call.1']
    #allocation19 [shape = 'u8[65536]{0}', space=vmem, size = 0x10000, scoped, tag = 'input window, operand 10, single buffered']
    #allocation20 [shape = 'u8[512]{0}', space=vmem, size = 0x400, scoped, tag = 'input window, operand 11, single buffered']
    #allocation21 [shape = 's32[1]{0}', space=sflag, size = 0x4, scoped, tag = 'scoped memory for tpu_custom_call.1']
    #allocation22 [shape = 'u8[512]{0}', space=vmem, size = 0x400, scoped, tag = 'input window, operand 12, single buffered']
    #allocation23 [shape = 'u8[32768]{0}', space=vmem, size = 0x8000, scoped, tag = 'input window, operand 13, single buffered']
    #allocation24 [shape = 's32[1]{0}', space=sflag, size = 0x4, scoped, tag = 'scoped memory for tpu_custom_call.1']
    #allocation25 [shape = 'u8[512]{0}', space=vmem, size = 0x400, scoped, tag = 'input window, operand 14, single buffered']
    #allocation26 [shape = 'u8[4096]{0}', space=vmem, size = 0x1000, scoped, tag = 'output window, operand 0, single buffered']
    %20 = vsyncpa [#allocation3], 0
    %21 = vsyncpa [#allocation6], 0
    %22 = vsyncpa [#allocation9], 0
    %23 = vsyncpa [#allocation12], 0
    %24 = vsyncpa [#allocation15], 0
    %25 = vsyncpa [#allocation18], 0
    %26 = vsyncpa [#allocation21], 0
    %27 = vsyncpa [#allocation24], 0
    %28 = vsyncpa [#allocation4], 0
    // Predicated region
    $region2: #{tpu_custom_call.1} parent=1 // pred_check
      _
    $region3: #{tpu_custom_call.1} parent=1 // pred_check_branch
      %30 = sbr.rel (0) target = $region5
    $region4: #{tpu_custom_call.1} parent=1 // pred_region
      %32 = vsyncadd [#allocation3], 0
      %s34 = sshll.u32 %s0, 4
      %s35 = int_to_ptr.hbm [resolvable:$true] %s34
      %s36 = sshll.u32 [#allocation2], 4
      %s37 = int_to_ptr.vmem [resolvable:$true] %s36
      %39 = dma.hbm_to_vmem [thread:$0]  %s35, 448, %s37, [#allocation3]
    $region5: #{tpu_custom_call.1} parent=1 // pred_fallthru
      _
    // Predicated region
    $region6: #{tpu_custom_call.1} parent=1 // pred_check
      _
    $region7: #{tpu_custom_call.1} parent=1 // pred_check_branch
      %41 = sbr.rel (0) target = $region9
    $region8: #{tpu_custom_call.1} parent=1 // pred_region
      %43 = vsyncadd [#allocation6], 0
      %s44 = sshll.u32 %s1, 4
      %s45 = int_to_ptr.hbm [resolvable:$true] %s44
      %s46 = sshll.u32 [#allocation5], 4
      %s47 = int_to_ptr.vmem [resolvable:$true] %s46
      %52 = dma.hbm_to_vmem [thread:$0]  %s45, 50176, %s47, [#allocation6], 512, 512, 32
    $region9: #{tpu_custom_call.1} parent=1 // pred_fallthru
      _
    // Predicated region
    $region10: #{tpu_custom_call.1} parent=1 // pred_check
      _
    $region11: #{tpu_custom_call.1} parent=1 // pred_check_branch
      %54 = sbr.rel (0) target = $region13
    $region12: #{tpu_custom_call.1} parent=1 // pred_region
      %56 = vsyncadd [#allocation6], 0
      %s58 = sshll.u32 %s2, 4
      %s59 = int_to_ptr.hbm [resolvable:$true] %s58
      %s60 = sshll.u32 [#allocation7], 4
      %s61 = int_to_ptr.vmem [resolvable:$true] %s60
      %63 = dma.hbm_to_vmem [thread:$0]  %s59, 128, %s61, [#allocation6]
    $region13: #{tpu_custom_call.1} parent=1 // pred_fallthru
      _
    // Predicated region
    $region14: #{tpu_custom_call.1} parent=1 // pred_check
      _
    $region15: #{tpu_custom_call.1} parent=1 // pred_check_branch
      %65 = sbr.rel (0) target = $region17
    $region16: #{tpu_custom_call.1} parent=1 // pred_region
      %67 = vsyncadd [#allocation9], 0
      %s69 = sshll.u32 %s3, 4
      %s70 = int_to_ptr.hbm [resolvable:$true] %s69
      %s71 = sshll.u32 [#allocation8], 4
      %s72 = int_to_ptr.vmem [resolvable:$true] %s71
      %74 = dma.hbm_to_vmem [thread:$0]  %s70, 128, %s72, [#allocation9]
    $region17: #{tpu_custom_call.1} parent=1 // pred_fallthru
      _
    // Predicated region
    $region18: #{tpu_custom_call.1} parent=1 // pred_check
      _
    $region19: #{tpu_custom_call.1} parent=1 // pred_check_branch
      %76 = sbr.rel (0) target = $region21
    $region20: #{tpu_custom_call.1} parent=1 // pred_region
      %78 = vsyncadd [#allocation9], 0
      %s79 = sshll.u32 %s4, 4
      %s80 = int_to_ptr.hbm [resolvable:$true] %s79
      %s81 = sshll.u32 [#allocation10], 4
      %s82 = int_to_ptr.vmem [resolvable:$true] %s81
      %87 = dma.hbm_to_vmem [thread:$0]  %s80, 32768, %s82, [#allocation9], 256, 256, 16
    $region21: #{tpu_custom_call.1} parent=1 // pred_fallthru
      _
    // Predicated region
    $region22: #{tpu_custom_call.1} parent=1 // pred_check
      _
    $region23: #{tpu_custom_call.1} parent=1 // pred_check_branch
      %89 = sbr.rel (0) target = $region25
    $region24: #{tpu_custom_call.1} parent=1 // pred_region
      %91 = vsyncadd [#allocation12], 0
      %s93 = sshll.u32 %s5, 4
      %s94 = int_to_ptr.hbm [resolvable:$true] %s93
      %s95 = sshll.u32 [#allocation11], 4
      %s96 = int_to_ptr.vmem [resolvable:$true] %s95
      %98 = dma.hbm_to_vmem [thread:$0]  %s94, 64, %s96, [#allocation12]
    $region25: #{tpu_custom_call.1} parent=1 // pred_fallthru
      _
    // Predicated region
    $region26: #{tpu_custom_call.1} parent=1 // pred_check
      _
    $region27: #{tpu_custom_call.1} parent=1 // pred_check_branch
      %100 = sbr.rel (0) target = $region29
    $region28: #{tpu_custom_call.1} parent=1 // pred_region
      %102 = vsyncadd [#allocation12], 0
      %s104 = sshll.u32 %s6, 4
      %s105 = int_to_ptr.hbm [resolvable:$true] %s104
      %s106 = sshll.u32 [#allocation13], 4
      %s107 = int_to_ptr.vmem [resolvable:$true] %s106
      %109 = dma.hbm_to_vmem [thread:$0]  %s105, 64, %s107, [#allocation12]
    $region29: #{tpu_custom_call.1} parent=1 // pred_fallthru
      _
    // Predicated region
    $region30: #{tpu_custom_call.1} parent=1 // pred_check
      _
    $region31: #{tpu_custom_call.1} parent=1 // pred_check_branch
      %111 = sbr.rel (0) target = $region33
    $region32: #{tpu_custom_call.1} parent=1 // pred_region
      %113 = vsyncadd [#allocation15], 0
      %s114 = sshll.u32 %s7, 4
      %s115 = int_to_ptr.hbm [resolvable:$true] %s114
      %s116 = sshll.u32 [#allocation14], 4
      %s117 = int_to_ptr.vmem [resolvable:$true] %s116
      %122 = dma.hbm_to_vmem [thread:$0]  %s115, 8192, %s117, [#allocation15], 128, 128, 8
    $region33: #{tpu_custom_call.1} parent=1 // pred_fallthru
      _
    // Predicated region
    $region34: #{tpu_custom_call.1} parent=1 // pred_check
      _
    $region35: #{tpu_custom_call.1} parent=1 // pred_check_branch
      %124 = sbr.rel (0) target = $region37
    $region36: #{tpu_custom_call.1} parent=1 // pred_region
      %126 = vsyncadd [#allocation15], 0
      %s128 = sshll.u32 %s8, 4
      %s129 = int_to_ptr.hbm [resolvable:$true] %s128
      %s130 = sshll.u32 [#allocation16], 4
      %s131 = int_to_ptr.vmem [resolvable:$true] %s130
      %133 = dma.hbm_to_vmem [thread:$0]  %s129, 32, %s131, [#allocation15]
    $region37: #{tpu_custom_call.1} parent=1 // pred_fallthru
      _
    // Predicated region
    $region38: #{tpu_custom_call.1} parent=1 // pred_check
      _
    $region39: #{tpu_custom_call.1} parent=1 // pred_check_branch
      %135 = sbr.rel (0) target = $region41
    $region40: #{tpu_custom_call.1} parent=1 // pred_region
      %137 = vsyncadd [#allocation18], 0
      %s139 = sshll.u32 %s9, 4
      %s140 = int_to_ptr.hbm [resolvable:$true] %s139
      %s141 = sshll.u32 [#allocation17], 4
      %s142 = int_to_ptr.vmem [resolvable:$true] %s141
      %144 = dma.hbm_to_vmem [thread:$0]  %s140, 32, %s142, [#allocation18]
    $region41: #{tpu_custom_call.1} parent=1 // pred_fallthru
      _
    // Predicated region
    $region42: #{tpu_custom_call.1} parent=1 // pred_check
      _
    $region43: #{tpu_custom_call.1} parent=1 // pred_check_branch
      %146 = sbr.rel (0) target = $region45
    $region44: #{tpu_custom_call.1} parent=1 // pred_region
      %148 = vsyncadd [#allocation18], 0
      %s149 = sshll.u32 %s10, 4
      %s150 = int_to_ptr.hbm [resolvable:$true] %s149
      %s151 = sshll.u32 [#allocation19], 4
      %s152 = int_to_ptr.vmem [resolvable:$true] %s151
      %157 = dma.hbm_to_vmem [thread:$0]  %s150, 2048, %s152, [#allocation18], 64, 64, 4
    $region45: #{tpu_custom_call.1} parent=1 // pred_fallthru
      _
    // Predicated region
    $region46: #{tpu_custom_call.1} parent=1 // pred_check
      _
    $region47: #{tpu_custom_call.1} parent=1 // pred_check_branch
      %159 = sbr.rel (0) target = $region49
    $region48: #{tpu_custom_call.1} parent=1 // pred_region
      %161 = vsyncadd [#allocation21], 0
      %s163 = sshll.u32 %s11, 4
      %s164 = int_to_ptr.hbm [resolvable:$true] %s163
      %s165 = sshll.u32 [#allocation20], 4
      %s166 = int_to_ptr.vmem [resolvable:$true] %s165
      %168 = dma.hbm_to_vmem [thread:$0]  %s164, 16, %s166, [#allocation21]
    $region49: #{tpu_custom_call.1} parent=1 // pred_fallthru
      _
    // Predicated region
    $region50: #{tpu_custom_call.1} parent=1 // pred_check
      _
    $region51: #{tpu_custom_call.1} parent=1 // pred_check_branch
      %170 = sbr.rel (0) target = $region53
    $region52: #{tpu_custom_call.1} parent=1 // pred_region
      %172 = vsyncadd [#allocation21], 0
      %s174 = sshll.u32 %s12, 4
      %s175 = int_to_ptr.hbm [resolvable:$true] %s174
      %s176 = sshll.u32 [#allocation22], 4
      %s177 = int_to_ptr.vmem [resolvable:$true] %s176
      %179 = dma.hbm_to_vmem [thread:$0]  %s175, 16, %s177, [#allocation21]
    $region53: #{tpu_custom_call.1} parent=1 // pred_fallthru
      _
    // Predicated region
    $region54: #{tpu_custom_call.1} parent=1 // pred_check
      _
    $region55: #{tpu_custom_call.1} parent=1 // pred_check_branch
      %181 = sbr.rel (0) target = $region57
    $region56: #{tpu_custom_call.1} parent=1 // pred_region
      %183 = vsyncadd [#allocation24], 0
      %s184 = sshll.u32 %s13, 4
      %s185 = int_to_ptr.hbm [resolvable:$true] %s184
      %s186 = sshll.u32 [#allocation23], 4
      %s187 = int_to_ptr.vmem [resolvable:$true] %s186
      %192 = dma.hbm_to_vmem [thread:$0]  %s185, 1024, %s187, [#allocation24], 64, 64, 4
    $region57: #{tpu_custom_call.1} parent=1 // pred_fallthru
      _
    // Predicated region
    $region58: #{tpu_custom_call.1} parent=1 // pred_check
      _
    $region59: #{tpu_custom_call.1} parent=1 // pred_check_branch
      %194 = sbr.rel (0) target = $region61
    $region60: #{tpu_custom_call.1} parent=1 // pred_region
      %196 = vsyncadd [#allocation24], 0
      %s198 = sshll.u32 %s14, 4
      %s199 = int_to_ptr.hbm [resolvable:$true] %s198
      %s200 = sshll.u32 [#allocation25], 4
      %s201 = int_to_ptr.vmem [resolvable:$true] %s200
      %203 = dma.hbm_to_vmem [thread:$0]  %s199, 16, %s201, [#allocation24]
    $region61: #{tpu_custom_call.1} parent=1 // pred_fallthru
      _
    // Predicated region
    $region62: #{tpu_custom_call.1} parent=1 // pred_check
      _
    $region63: #{tpu_custom_call.1} parent=1 // pred_check_branch
      %205 = sbr.rel (0) target = $region65
    $region64: #{tpu_custom_call.1} parent=1 // pred_region
      %207 = dma.done [#allocation3], 448
    $region65: #{tpu_custom_call.1} parent=1 // pred_fallthru
      _
    // Predicated region
    $region66: #{tpu_custom_call.1} parent=1 // pred_check
      _
    $region67: #{tpu_custom_call.1} parent=1 // pred_check_branch
      %209 = sbr.rel (0) target = $region69
    $region68: #{tpu_custom_call.1} parent=1 // pred_region
      %211 = dma.done [#allocation6], 50176
    $region69: #{tpu_custom_call.1} parent=1 // pred_fallthru
      _
    // Predicated region
    $region70: #{tpu_custom_call.1} parent=1 // pred_check
      _
    $region71: #{tpu_custom_call.1} parent=1 // pred_check_branch
      %213 = sbr.rel (0) target = $region73
    $region72: #{tpu_custom_call.1} parent=1 // pred_region
      %215 = dma.done [#allocation6], 128
    $region73: #{tpu_custom_call.1} parent=1 // pred_fallthru
      _
    // Predicated region
    $region74: #{tpu_custom_call.1} parent=1 // pred_check
      _
    $region75: #{tpu_custom_call.1} parent=1 // pred_check_branch
      %217 = sbr.rel (0) target = $region77
    $region76: #{tpu_custom_call.1} parent=1 // pred_region
      %219 = dma.done [#allocation9], 128
    $region77: #{tpu_custom_call.1} parent=1 // pred_fallthru
      _
    // Predicated region
    $region78: #{tpu_custom_call.1} parent=1 // pred_check
      _
    $region79: #{tpu_custom_call.1} parent=1 // pred_check_branch
      %221 = sbr.rel (0) target = $region81
    $region80: #{tpu_custom_call.1} parent=1 // pred_region
      %223 = dma.done [#allocation9], 32768
    $region81: #{tpu_custom_call.1} parent=1 // pred_fallthru
      _
    // Predicated region
    $region82: #{tpu_custom_call.1} parent=1 // pred_check
      _
    $region83: #{tpu_custom_call.1} parent=1 // pred_check_branch
      %225 = sbr.rel (0) target = $region85
    $region84: #{tpu_custom_call.1} parent=1 // pred_region
      %227 = dma.done [#allocation12], 64
    $region85: #{tpu_custom_call.1} parent=1 // pred_fallthru
      _
    // Predicated region
    $region86: #{tpu_custom_call.1} parent=1 // pred_check
      _
    $region87: #{tpu_custom_call.1} parent=1 // pred_check_branch
      %229 = sbr.rel (0) target = $region89
    $region88: #{tpu_custom_call.1} parent=1 // pred_region
      %231 = dma.done [#allocation12], 64
    $region89: #{tpu_custom_call.1} parent=1 // pred_fallthru
      _
    // Predicated region
    $region90: #{tpu_custom_call.1} parent=1 // pred_check
      _
    $region91: #{tpu_custom_call.1} parent=1 // pred_check_branch
      %233 = sbr.rel (0) target = $region93
    $region92: #{tpu_custom_call.1} parent=1 // pred_region
      %235 = dma.done [#allocation15], 8192
    $region93: #{tpu_custom_call.1} parent=1 // pred_fallthru
      _
    // Predicated region
    $region94: #{tpu_custom_call.1} parent=1 // pred_check
      _
    $region95: #{tpu_custom_call.1} parent=1 // pred_check_branch
      %237 = sbr.rel (0) target = $region97
    $region96: #{tpu_custom_call.1} parent=1 // pred_region
      %239 = dma.done [#allocation15], 32
    $region97: #{tpu_custom_call.1} parent=1 // pred_fallthru
      _
    // Predicated region
    $region98: #{tpu_custom_call.1} parent=1 // pred_check
      _
    $region99: #{tpu_custom_call.1} parent=1 // pred_check_branch
      %241 = sbr.rel (0) target = $region101
    $region100: #{tpu_custom_call.1} parent=1 // pred_region
      %243 = dma.done [#allocation18], 32
    $region101: #{tpu_custom_call.1} parent=1 // pred_fallthru
      _
    // Predicated region
    $region102: #{tpu_custom_call.1} parent=1 // pred_check
      _
    $region103: #{tpu_custom_call.1} parent=1 // pred_check_branch
      %245 = sbr.rel (0) target = $region105
    $region104: #{tpu_custom_call.1} parent=1 // pred_region
      %247 = dma.done [#allocation18], 2048
    $region105: #{tpu_custom_call.1} parent=1 // pred_fallthru
      _
    // Predicated region
    $region106: #{tpu_custom_call.1} parent=1 // pred_check
      _
    $region107: #{tpu_custom_call.1} parent=1 // pred_check_branch
      %249 = sbr.rel (0) target = $region109
    $region108: #{tpu_custom_call.1} parent=1 // pred_region
      %251 = dma.done [#allocation21], 16
    $region109: #{tpu_custom_call.1} parent=1 // pred_fallthru
      _
    // Predicated region
    $region110: #{tpu_custom_call.1} parent=1 // pred_check
      _
    $region111: #{tpu_custom_call.1} parent=1 // pred_check_branch
      %253 = sbr.rel (0) target = $region113
    $region112: #{tpu_custom_call.1} parent=1 // pred_region
      %255 = dma.done [#allocation21], 16
    $region113: #{tpu_custom_call.1} parent=1 // pred_fallthru
      _
    // Predicated region
    $region114: #{tpu_custom_call.1} parent=1 // pred_check
      _
    $region115: #{tpu_custom_call.1} parent=1 // pred_check_branch
      %257 = sbr.rel (0) target = $region117
    $region116: #{tpu_custom_call.1} parent=1 // pred_region
      %259 = dma.done [#allocation24], 1024
    $region117: #{tpu_custom_call.1} parent=1 // pred_fallthru
      _
    // Predicated region
    $region118: #{tpu_custom_call.1} parent=1 // pred_check
      _
    $region119: #{tpu_custom_call.1} parent=1 // pred_check_branch
      %261 = sbr.rel (0) target = $region121
    $region120: #{tpu_custom_call.1} parent=1 // pred_region
      %263 = dma.done [#allocation24], 16
    $region121: #{tpu_custom_call.1} parent=1 // pred_fallthru
      _
    %v265 = vld [vmem:[#allocation2] sm:$0xff]
    %v266 = vld [vmem:[#allocation2 + $0x8] sm:$0xff]
    %v267 = vld [vmem:[#allocation2 + $0x10] sm:$0xff]
    %v268 = vld [vmem:[#allocation2 + $0x18] sm:$0xf]
    %v269 = vld [vmem:[#allocation5] sm:$0xff]
    %v270 = vld [vmem:[#allocation5 + $0x8] sm:$0xff]
    %v271 = vld [vmem:[#allocation5 + $0x10] sm:$0xff]
    %v272 = vld [vmem:[#allocation5 + $0x18] sm:$0xff]
    %v273 = vld [vmem:[#allocation5 + $0x20] sm:$0xff]
    %v274 = vld [vmem:[#allocation5 + $0x28] sm:$0xff]
    %v275 = vld [vmem:[#allocation5 + $0x30] sm:$0xff]
    %v276 = vld [vmem:[#allocation5 + $0x38] sm:$0xff]
    %v277 = vld [vmem:[#allocation5 + $0x40] sm:$0xff]
    %v278 = vld [vmem:[#allocation5 + $0x48] sm:$0xff]
    %v279 = vld [vmem:[#allocation5 + $0x50] sm:$0xff]
    %v280 = vld [vmem:[#allocation5 + $0x58] sm:$0xff]
    %v281 = vld [vmem:[#allocation5 + $0x60] sm:$0xff]
    %v282 = vld [vmem:[#allocation5 + $0x68] sm:$0xff]
    %v283 = vld [vmem:[#allocation5 + $0x70] sm:$0xff]
    %v284 = vld [vmem:[#allocation5 + $0x78] sm:$0xff]
    %v285 = vld [vmem:[#allocation5 + $0x80] sm:$0xff]
    %v286 = vld [vmem:[#allocation5 + $0x88] sm:$0xff]
    %v287 = vld [vmem:[#allocation5 + $0x90] sm:$0xff]
    %v288 = vld [vmem:[#allocation5 + $0x98] sm:$0xff]
    %v289 = vld [vmem:[#allocation5 + $0xa0] sm:$0xff]
    %v290 = vld [vmem:[#allocation5 + $0xa8] sm:$0xff]
    %v291 = vld [vmem:[#allocation5 + $0xb0] sm:$0xff]
    %v292 = vld [vmem:[#allocation5 + $0xb8] sm:$0xff]
    %v293 = vld [vmem:[#allocation5 + $0xc0] sm:$0xff]
    %v294 = vld [vmem:[#allocation5 + $0xc8] sm:$0xff]
    %v295 = vld [vmem:[#allocation5 + $0xd0] sm:$0xff]
    %v296 = vld [vmem:[#allocation5 + $0xd8] sm:$0xff]
    %v297 = vld [vmem:[#allocation5 + $0xe0] sm:$0xff]
    %v298 = vld [vmem:[#allocation5 + $0xe8] sm:$0xff]
    %v299 = vld [vmem:[#allocation5 + $0xf0] sm:$0xff]
    %v300 = vld [vmem:[#allocation5 + $0xf8] sm:$0xff]
    %v301 = vld [vmem:[#allocation5 + $0x100] sm:$0xff]
    %v302 = vld [vmem:[#allocation5 + $0x108] sm:$0xff]
    %v303 = vld [vmem:[#allocation5 + $0x110] sm:$0xff]
    %v304 = vld [vmem:[#allocation5 + $0x118] sm:$0xff]
    %v305 = vld [vmem:[#allocation5 + $0x120] sm:$0xff]
    %v306 = vld [vmem:[#allocation5 + $0x128] sm:$0xff]
    %v307 = vld [vmem:[#allocation5 + $0x130] sm:$0xff]
    %v308 = vld [vmem:[#allocation5 + $0x138] sm:$0xff]
    %v309 = vld [vmem:[#allocation5 + $0x140] sm:$0xff]
    %v310 = vld [vmem:[#allocation5 + $0x148] sm:$0xff]
    %v311 = vld [vmem:[#allocation5 + $0x150] sm:$0xff]
    %v312 = vld [vmem:[#allocation5 + $0x158] sm:$0xff]
    %v313 = vld [vmem:[#allocation5 + $0x160] sm:$0xff]
    %v314 = vld [vmem:[#allocation5 + $0x168] sm:$0xff]
    %v315 = vld [vmem:[#allocation5 + $0x170] sm:$0xff]
    %v316 = vld [vmem:[#allocation5 + $0x178] sm:$0xff]
    %v317 = vld [vmem:[#allocation5 + $0x180] sm:$0xff]
    %v318 = vld [vmem:[#allocation5 + $0x188] sm:$0xff]
    %v319 = vld [vmem:[#allocation5 + $0x190] sm:$0xff]
    %v320 = vld [vmem:[#allocation5 + $0x198] sm:$0xff]
    %v321 = vld [vmem:[#allocation5 + $0x1a0] sm:$0xff]
    %v322 = vld [vmem:[#allocation5 + $0x1a8] sm:$0xff]
    %v323 = vld [vmem:[#allocation5 + $0x1b0] sm:$0xff]
    %v324 = vld [vmem:[#allocation5 + $0x1b8] sm:$0xff]
    %v325 = vld [vmem:[#allocation5 + $0x1c0] sm:$0xff]
    %v326 = vld [vmem:[#allocation5 + $0x1c8] sm:$0xff]
    %v327 = vld [vmem:[#allocation5 + $0x1d0] sm:$0xff]
    %v328 = vld [vmem:[#allocation5 + $0x1d8] sm:$0xff]
    %v329 = vld [vmem:[#allocation5 + $0x1e0] sm:$0xff]
    %v330 = vld [vmem:[#allocation5 + $0x1e8] sm:$0xff]
    %v331 = vld [vmem:[#allocation5 + $0x1f0] sm:$0xff]
    %v332 = vld [vmem:[#allocation5 + $0x1f8] sm:$0xff]
    %v333 = vld [vmem:[#allocation5 + $0x200] sm:$0xff]
    %v334 = vld [vmem:[#allocation5 + $0x208] sm:$0xff]
    %v335 = vld [vmem:[#allocation5 + $0x210] sm:$0xff]
    %v336 = vld [vmem:[#allocation5 + $0x218] sm:$0xff]
    %v337 = vld [vmem:[#allocation5 + $0x220] sm:$0xff]
    %v338 = vld [vmem:[#allocation5 + $0x228] sm:$0xff]
    %v339 = vld [vmem:[#allocation5 + $0x230] sm:$0xff]
    %v340 = vld [vmem:[#allocation5 + $0x238] sm:$0xff]
    %v341 = vld [vmem:[#allocation5 + $0x240] sm:$0xff]
    %v342 = vld [vmem:[#allocation5 + $0x248] sm:$0xff]
    %v343 = vld [vmem:[#allocation5 + $0x250] sm:$0xff]
    %v344 = vld [vmem:[#allocation5 + $0x258] sm:$0xff]
    %v345 = vld [vmem:[#allocation5 + $0x260] sm:$0xff]
    %v346 = vld [vmem:[#allocation5 + $0x268] sm:$0xff]
    %v347 = vld [vmem:[#allocation5 + $0x270] sm:$0xff]
    %v348 = vld [vmem:[#allocation5 + $0x278] sm:$0xff]
    %v349 = vld [vmem:[#allocation5 + $0x280] sm:$0xff]
    %v350 = vld [vmem:[#allocation5 + $0x288] sm:$0xff]
    %v351 = vld [vmem:[#allocation5 + $0x290] sm:$0xff]
    %v352 = vld [vmem:[#allocation5 + $0x298] sm:$0xff]
    %v353 = vld [vmem:[#allocation5 + $0x2a0] sm:$0xff]
    %v354 = vld [vmem:[#allocation5 + $0x2a8] sm:$0xff]
    %v355 = vld [vmem:[#allocation5 + $0x2b0] sm:$0xff]
    %v356 = vld [vmem:[#allocation5 + $0x2b8] sm:$0xff]
    %v357 = vld [vmem:[#allocation5 + $0x2c0] sm:$0xff]
    %v358 = vld [vmem:[#allocation5 + $0x2c8] sm:$0xff]
    %v359 = vld [vmem:[#allocation5 + $0x2d0] sm:$0xff]
    %v360 = vld [vmem:[#allocation5 + $0x2d8] sm:$0xff]
    %v361 = vld [vmem:[#allocation5 + $0x2e0] sm:$0xff]
    %v362 = vld [vmem:[#allocation5 + $0x2e8] sm:$0xff]
    %v363 = vld [vmem:[#allocation5 + $0x2f0] sm:$0xff]
    %v364 = vld [vmem:[#allocation5 + $0x2f8] sm:$0xff]
    %v365 = vld [vmem:[#allocation5 + $0x300] sm:$0xff]
    %v366 = vld [vmem:[#allocation5 + $0x308] sm:$0xff]
    %v367 = vld [vmem:[#allocation5 + $0x310] sm:$0xff]
    %v368 = vld [vmem:[#allocation5 + $0x318] sm:$0xff]
    %v369 = vld [vmem:[#allocation5 + $0x320] sm:$0xff]
    %v370 = vld [vmem:[#allocation5 + $0x328] sm:$0xff]
    %v371 = vld [vmem:[#allocation5 + $0x330] sm:$0xff]
    %v372 = vld [vmem:[#allocation5 + $0x338] sm:$0xff]
    %v373 = vld [vmem:[#allocation5 + $0x340] sm:$0xff]
    %v374 = vld [vmem:[#allocation5 + $0x348] sm:$0xff]
    %v375 = vld [vmem:[#allocation5 + $0x350] sm:$0xff]
    %v376 = vld [vmem:[#allocation5 + $0x358] sm:$0xff]
    %v377 = vld [vmem:[#allocation5 + $0x360] sm:$0xff]
    %v378 = vld [vmem:[#allocation5 + $0x368] sm:$0xff]
    %v379 = vld [vmem:[#allocation5 + $0x370] sm:$0xff]
    %v380 = vld [vmem:[#allocation5 + $0x378] sm:$0xff]
    %v381 = vld [vmem:[#allocation5 + $0x380] sm:$0xff]
    %v382 = vld [vmem:[#allocation5 + $0x388] sm:$0xff]
    %v383 = vld [vmem:[#allocation5 + $0x390] sm:$0xff]
    %v384 = vld [vmem:[#allocation5 + $0x398] sm:$0xff]
    %v385 = vld [vmem:[#allocation5 + $0x3a0] sm:$0xff]
    %v386 = vld [vmem:[#allocation5 + $0x3a8] sm:$0xff]
    %v387 = vld [vmem:[#allocation5 + $0x3b0] sm:$0xff]
    %v388 = vld [vmem:[#allocation5 + $0x3b8] sm:$0xff]
    %v389 = vld [vmem:[#allocation5 + $0x3c0] sm:$0xff]
    %v390 = vld [vmem:[#allocation5 + $0x3c8] sm:$0xff]
    %v391 = vld [vmem:[#allocation5 + $0x3d0] sm:$0xff]
    %v392 = vld [vmem:[#allocation5 + $0x3d8] sm:$0xff]
    %v393 = vld [vmem:[#allocation5 + $0x3e0] sm:$0xff]
    %v394 = vld [vmem:[#allocation5 + $0x3e8] sm:$0xff]
    %v395 = vld [vmem:[#allocation5 + $0x3f0] sm:$0xff]
    %v396 = vld [vmem:[#allocation5 + $0x3f8] sm:$0xff]
    %v397 = vld [vmem:[#allocation5 + $0x400] sm:$0xff]
    %v398 = vld [vmem:[#allocation5 + $0x408] sm:$0xff]
    %v399 = vld [vmem:[#allocation5 + $0x410] sm:$0xff]
    %v400 = vld [vmem:[#allocation5 + $0x418] sm:$0xff]
    %v401 = vld [vmem:[#allocation5 + $0x420] sm:$0xff]
    %v402 = vld [vmem:[#allocation5 + $0x428] sm:$0xff]
    %v403 = vld [vmem:[#allocation5 + $0x430] sm:$0xff]
    %v404 = vld [vmem:[#allocation5 + $0x438] sm:$0xff]
    %v405 = vld [vmem:[#allocation5 + $0x440] sm:$0xff]
    %v406 = vld [vmem:[#allocation5 + $0x448] sm:$0xff]
    %v407 = vld [vmem:[#allocation5 + $0x450] sm:$0xff]
    %v408 = vld [vmem:[#allocation5 + $0x458] sm:$0xff]
    %v409 = vld [vmem:[#allocation5 + $0x460] sm:$0xff]
    %v410 = vld [vmem:[#allocation5 + $0x468] sm:$0xff]
    %v411 = vld [vmem:[#allocation5 + $0x470] sm:$0xff]
    %v412 = vld [vmem:[#allocation5 + $0x478] sm:$0xff]
    %v413 = vld [vmem:[#allocation5 + $0x480] sm:$0xff]
    %v414 = vld [vmem:[#allocation5 + $0x488] sm:$0xff]
    %v415 = vld [vmem:[#allocation5 + $0x490] sm:$0xff]
    %v416 = vld [vmem:[#allocation5 + $0x498] sm:$0xff]
    %v417 = vld [vmem:[#allocation5 + $0x4a0] sm:$0xff]
    %v418 = vld [vmem:[#allocation5 + $0x4a8] sm:$0xff]
    %v419 = vld [vmem:[#allocation5 + $0x4b0] sm:$0xff]
    %v420 = vld [vmem:[#allocation5 + $0x4b8] sm:$0xff]
    %v421 = vld [vmem:[#allocation5 + $0x4c0] sm:$0xff]
    %v422 = vld [vmem:[#allocation5 + $0x4c8] sm:$0xff]
    %v423 = vld [vmem:[#allocation5 + $0x4d0] sm:$0xff]
    %v424 = vld [vmem:[#allocation5 + $0x4d8] sm:$0xff]
    %v425 = vld [vmem:[#allocation5 + $0x4e0] sm:$0xff]
    %v426 = vld [vmem:[#allocation5 + $0x4e8] sm:$0xff]
    %v427 = vld [vmem:[#allocation5 + $0x4f0] sm:$0xff]
    %v428 = vld [vmem:[#allocation5 + $0x4f8] sm:$0xff]
    %v429 = vld [vmem:[#allocation5 + $0x500] sm:$0xff]
    %v430 = vld [vmem:[#allocation5 + $0x508] sm:$0xff]
    %v431 = vld [vmem:[#allocation5 + $0x510] sm:$0xff]
    %v432 = vld [vmem:[#allocation5 + $0x518] sm:$0xff]
    %v433 = vld [vmem:[#allocation5 + $0x520] sm:$0xff]
    %v434 = vld [vmem:[#allocation5 + $0x528] sm:$0xff]
    %v435 = vld [vmem:[#allocation5 + $0x530] sm:$0xff]
    %v436 = vld [vmem:[#allocation5 + $0x538] sm:$0xff]
    %v437 = vld [vmem:[#allocation5 + $0x540] sm:$0xff]
    %v438 = vld [vmem:[#allocation5 + $0x548] sm:$0xff]
    %v439 = vld [vmem:[#allocation5 + $0x550] sm:$0xff]
    %v440 = vld [vmem:[#allocation5 + $0x558] sm:$0xff]
    %v441 = vld [vmem:[#allocation5 + $0x560] sm:$0xff]
    %v442 = vld [vmem:[#allocation5 + $0x568] sm:$0xff]
    %v443 = vld [vmem:[#allocation5 + $0x570] sm:$0xff]
    %v444 = vld [vmem:[#allocation5 + $0x578] sm:$0xff]
    %v445 = vld [vmem:[#allocation5 + $0x580] sm:$0xff]
    %v446 = vld [vmem:[#allocation5 + $0x588] sm:$0xff]
    %v447 = vld [vmem:[#allocation5 + $0x590] sm:$0xff]
    %v448 = vld [vmem:[#allocation5 + $0x598] sm:$0xff]
    %v449 = vld [vmem:[#allocation5 + $0x5a0] sm:$0xff]
    %v450 = vld [vmem:[#allocation5 + $0x5a8] sm:$0xff]
    %v451 = vld [vmem:[#allocation5 + $0x5b0] sm:$0xff]
    %v452 = vld [vmem:[#allocation5 + $0x5b8] sm:$0xff]
    %v453 = vld [vmem:[#allocation5 + $0x5c0] sm:$0xff]
    %v454 = vld [vmem:[#allocation5 + $0x5c8] sm:$0xff]
    %v455 = vld [vmem:[#allocation5 + $0x5d0] sm:$0xff]
    %v456 = vld [vmem:[#allocation5 + $0x5d8] sm:$0xff]
    %v457 = vld [vmem:[#allocation5 + $0x5e0] sm:$0xff]
    %v458 = vld [vmem:[#allocation5 + $0x5e8] sm:$0xff]
    %v459 = vld [vmem:[#allocation5 + $0x5f0] sm:$0xff]
    %v460 = vld [vmem:[#allocation5 + $0x5f8] sm:$0xff]
    %v461 = vld [vmem:[#allocation5 + $0x600] sm:$0xff]
    %v462 = vld [vmem:[#allocation5 + $0x608] sm:$0xff]
    %v463 = vld [vmem:[#allocation5 + $0x610] sm:$0xff]
    %v464 = vld [vmem:[#allocation5 + $0x618] sm:$0xff]
    %v465 = vld [vmem:[#allocation5 + $0x620] sm:$0xff]
    %v466 = vld [vmem:[#allocation5 + $0x628] sm:$0xff]
    %v467 = vld [vmem:[#allocation5 + $0x630] sm:$0xff]
    %v468 = vld [vmem:[#allocation5 + $0x638] sm:$0xff]
    %v469 = vld [vmem:[#allocation5 + $0x640] sm:$0xff]
    %v470 = vld [vmem:[#allocation5 + $0x648] sm:$0xff]
    %v471 = vld [vmem:[#allocation5 + $0x650] sm:$0xff]
    %v472 = vld [vmem:[#allocation5 + $0x658] sm:$0xff]
    %v473 = vld [vmem:[#allocation5 + $0x660] sm:$0xff]
    %v474 = vld [vmem:[#allocation5 + $0x668] sm:$0xff]
    %v475 = vld [vmem:[#allocation5 + $0x670] sm:$0xff]
    %v476 = vld [vmem:[#allocation5 + $0x678] sm:$0xff]
    %v477 = vld [vmem:[#allocation5 + $0x680] sm:$0xff]
    %v478 = vld [vmem:[#allocation5 + $0x688] sm:$0xff]
    %v479 = vld [vmem:[#allocation5 + $0x690] sm:$0xff]
    %v480 = vld [vmem:[#allocation5 + $0x698] sm:$0xff]
    %v481 = vld [vmem:[#allocation5 + $0x6a0] sm:$0xff]
    %v482 = vld [vmem:[#allocation5 + $0x6a8] sm:$0xff]
    %v483 = vld [vmem:[#allocation5 + $0x6b0] sm:$0xff]
    %v484 = vld [vmem:[#allocation5 + $0x6b8] sm:$0xff]
    %v485 = vld [vmem:[#allocation5 + $0x6c0] sm:$0xff]
    %v486 = vld [vmem:[#allocation5 + $0x6c8] sm:$0xff]
    %v487 = vld [vmem:[#allocation5 + $0x6d0] sm:$0xff]
    %v488 = vld [vmem:[#allocation5 + $0x6d8] sm:$0xff]
    %v489 = vld [vmem:[#allocation5 + $0x6e0] sm:$0xff]
    %v490 = vld [vmem:[#allocation5 + $0x6e8] sm:$0xff]
    %v491 = vld [vmem:[#allocation5 + $0x6f0] sm:$0xff]
    %v492 = vld [vmem:[#allocation5 + $0x6f8] sm:$0xff]
    %v493 = vld [vmem:[#allocation5 + $0x700] sm:$0xff]
    %v494 = vld [vmem:[#allocation5 + $0x708] sm:$0xff]
    %v495 = vld [vmem:[#allocation5 + $0x710] sm:$0xff]
    %v496 = vld [vmem:[#allocation5 + $0x718] sm:$0xff]
    %v497 = vld [vmem:[#allocation5 + $0x720] sm:$0xff]
    %v498 = vld [vmem:[#allocation5 + $0x728] sm:$0xff]
    %v499 = vld [vmem:[#allocation5 + $0x730] sm:$0xff]
    %v500 = vld [vmem:[#allocation5 + $0x738] sm:$0xff]
    %v501 = vld [vmem:[#allocation5 + $0x740] sm:$0xff]
    %v502 = vld [vmem:[#allocation5 + $0x748] sm:$0xff]
    %v503 = vld [vmem:[#allocation5 + $0x750] sm:$0xff]
    %v504 = vld [vmem:[#allocation5 + $0x758] sm:$0xff]
    %v505 = vld [vmem:[#allocation5 + $0x760] sm:$0xff]
    %v506 = vld [vmem:[#allocation5 + $0x768] sm:$0xff]
    %v507 = vld [vmem:[#allocation5 + $0x770] sm:$0xff]
    %v508 = vld [vmem:[#allocation5 + $0x778] sm:$0xff]
    %v509 = vld [vmem:[#allocation5 + $0x780] sm:$0xff]
    %v510 = vld [vmem:[#allocation5 + $0x788] sm:$0xff]
    %v511 = vld [vmem:[#allocation5 + $0x790] sm:$0xff]
    %v512 = vld [vmem:[#allocation5 + $0x798] sm:$0xff]
    %v513 = vld [vmem:[#allocation5 + $0x7a0] sm:$0xff]
    %v514 = vld [vmem:[#allocation5 + $0x7a8] sm:$0xff]
    %v515 = vld [vmem:[#allocation5 + $0x7b0] sm:$0xff]
    %v516 = vld [vmem:[#allocation5 + $0x7b8] sm:$0xff]
    %v517 = vld [vmem:[#allocation5 + $0x7c0] sm:$0xff]
    %v518 = vld [vmem:[#allocation5 + $0x7c8] sm:$0xff]
    %v519 = vld [vmem:[#allocation5 + $0x7d0] sm:$0xff]
    %v520 = vld [vmem:[#allocation5 + $0x7d8] sm:$0xff]
    %v521 = vld [vmem:[#allocation5 + $0x7e0] sm:$0xff]
    %v522 = vld [vmem:[#allocation5 + $0x7e8] sm:$0xff]
    %v523 = vld [vmem:[#allocation5 + $0x7f0] sm:$0xff]
    %v524 = vld [vmem:[#allocation5 + $0x7f8] sm:$0xff]
    %v525 = vld [vmem:[#allocation5 + $0x800] sm:$0xff]
    %v526 = vld [vmem:[#allocation5 + $0x808] sm:$0xff]
    %v527 = vld [vmem:[#allocation5 + $0x810] sm:$0xff]
    %v528 = vld [vmem:[#allocation5 + $0x818] sm:$0xff]
    %v529 = vld [vmem:[#allocation5 + $0x820] sm:$0xff]
    %v530 = vld [vmem:[#allocation5 + $0x828] sm:$0xff]
    %v531 = vld [vmem:[#allocation5 + $0x830] sm:$0xff]
    %v532 = vld [vmem:[#allocation5 + $0x838] sm:$0xff]
    %v533 = vld [vmem:[#allocation5 + $0x840] sm:$0xff]
    %v534 = vld [vmem:[#allocation5 + $0x848] sm:$0xff]
    %v535 = vld [vmem:[#allocation5 + $0x850] sm:$0xff]
    %v536 = vld [vmem:[#allocation5 + $0x858] sm:$0xff]
    %v537 = vld [vmem:[#allocation5 + $0x860] sm:$0xff]
    %v538 = vld [vmem:[#allocation5 + $0x868] sm:$0xff]
    %v539 = vld [vmem:[#allocation5 + $0x870] sm:$0xff]
    %v540 = vld [vmem:[#allocation5 + $0x878] sm:$0xff]
    %v541 = vld [vmem:[#allocation5 + $0x880] sm:$0xff]
    %v542 = vld [vmem:[#allocation5 + $0x888] sm:$0xff]
    %v543 = vld [vmem:[#allocation5 + $0x890] sm:$0xff]
    %v544 = vld [vmem:[#allocation5 + $0x898] sm:$0xff]
    %v545 = vld [vmem:[#allocation5 + $0x8a0] sm:$0xff]
    %v546 = vld [vmem:[#allocation5 + $0x8a8] sm:$0xff]
    %v547 = vld [vmem:[#allocation5 + $0x8b0] sm:$0xff]
    %v548 = vld [vmem:[#allocation5 + $0x8b8] sm:$0xff]
    %v549 = vld [vmem:[#allocation5 + $0x8c0] sm:$0xff]
    %v550 = vld [vmem:[#allocation5 + $0x8c8] sm:$0xff]
    %v551 = vld [vmem:[#allocation5 + $0x8d0] sm:$0xff]
    %v552 = vld [vmem:[#allocation5 + $0x8d8] sm:$0xff]
    %v553 = vld [vmem:[#allocation5 + $0x8e0] sm:$0xff]
    %v554 = vld [vmem:[#allocation5 + $0x8e8] sm:$0xff]
    %v555 = vld [vmem:[#allocation5 + $0x8f0] sm:$0xff]
    %v556 = vld [vmem:[#allocation5 + $0x8f8] sm:$0xff]
    %v557 = vld [vmem:[#allocation5 + $0x900] sm:$0xff]
    %v558 = vld [vmem:[#allocation5 + $0x908] sm:$0xff]
    %v559 = vld [vmem:[#allocation5 + $0x910] sm:$0xff]
    %v560 = vld [vmem:[#allocation5 + $0x918] sm:$0xff]
    %v561 = vld [vmem:[#allocation5 + $0x920] sm:$0xff]
    %v562 = vld [vmem:[#allocation5 + $0x928] sm:$0xff]
    %v563 = vld [vmem:[#allocation5 + $0x930] sm:$0xff]
    %v564 = vld [vmem:[#allocation5 + $0x938] sm:$0xff]
    %v565 = vld [vmem:[#allocation5 + $0x940] sm:$0xff]
    %v566 = vld [vmem:[#allocation5 + $0x948] sm:$0xff]
    %v567 = vld [vmem:[#allocation5 + $0x950] sm:$0xff]
    %v568 = vld [vmem:[#allocation5 + $0x958] sm:$0xff]
    %v569 = vld [vmem:[#allocation5 + $0x960] sm:$0xff]
    %v570 = vld [vmem:[#allocation5 + $0x968] sm:$0xff]
    %v571 = vld [vmem:[#allocation5 + $0x970] sm:$0xff]
    %v572 = vld [vmem:[#allocation5 + $0x978] sm:$0xff]
    %v573 = vld [vmem:[#allocation5 + $0x980] sm:$0xff]
    %v574 = vld [vmem:[#allocation5 + $0x988] sm:$0xff]
    %v575 = vld [vmem:[#allocation5 + $0x990] sm:$0xff]
    %v576 = vld [vmem:[#allocation5 + $0x998] sm:$0xff]
    %v577 = vld [vmem:[#allocation5 + $0x9a0] sm:$0xff]
    %v578 = vld [vmem:[#allocation5 + $0x9a8] sm:$0xff]
    %v579 = vld [vmem:[#allocation5 + $0x9b0] sm:$0xff]
    %v580 = vld [vmem:[#allocation5 + $0x9b8] sm:$0xff]
    %v581 = vld [vmem:[#allocation5 + $0x9c0] sm:$0xff]
    %v582 = vld [vmem:[#allocation5 + $0x9c8] sm:$0xff]
    %v583 = vld [vmem:[#allocation5 + $0x9d0] sm:$0xff]
    %v584 = vld [vmem:[#allocation5 + $0x9d8] sm:$0xff]
    %v585 = vld [vmem:[#allocation5 + $0x9e0] sm:$0xff]
    %v586 = vld [vmem:[#allocation5 + $0x9e8] sm:$0xff]
    %v587 = vld [vmem:[#allocation5 + $0x9f0] sm:$0xff]
    %v588 = vld [vmem:[#allocation5 + $0x9f8] sm:$0xff]
    %v589 = vld [vmem:[#allocation5 + $0xa00] sm:$0xff]
    %v590 = vld [vmem:[#allocation5 + $0xa08] sm:$0xff]
    %v591 = vld [vmem:[#allocation5 + $0xa10] sm:$0xff]
    %v592 = vld [vmem:[#allocation5 + $0xa18] sm:$0xff]
    %v593 = vld [vmem:[#allocation5 + $0xa20] sm:$0xff]
    %v594 = vld [vmem:[#allocation5 + $0xa28] sm:$0xff]
    %v595 = vld [vmem:[#allocation5 + $0xa30] sm:$0xff]
    %v596 = vld [vmem:[#allocation5 + $0xa38] sm:$0xff]
    %v597 = vld [vmem:[#allocation5 + $0xa40] sm:$0xff]
    %v598 = vld [vmem:[#allocation5 + $0xa48] sm:$0xff]
    %v599 = vld [vmem:[#allocation5 + $0xa50] sm:$0xff]
    %v600 = vld [vmem:[#allocation5 + $0xa58] sm:$0xff]
    %v601 = vld [vmem:[#allocation5 + $0xa60] sm:$0xff]
    %v602 = vld [vmem:[#allocation5 + $0xa68] sm:$0xff]
    %v603 = vld [vmem:[#allocation5 + $0xa70] sm:$0xff]
    %v604 = vld [vmem:[#allocation5 + $0xa78] sm:$0xff]
    %v605 = vld [vmem:[#allocation5 + $0xa80] sm:$0xff]
    %v606 = vld [vmem:[#allocation5 + $0xa88] sm:$0xff]
    %v607 = vld [vmem:[#allocation5 + $0xa90] sm:$0xff]
    %v608 = vld [vmem:[#allocation5 + $0xa98] sm:$0xff]
    %v609 = vld [vmem:[#allocation5 + $0xaa0] sm:$0xff]
    %v610 = vld [vmem:[#allocation5 + $0xaa8] sm:$0xff]
    %v611 = vld [vmem:[#allocation5 + $0xab0] sm:$0xff]
    %v612 = vld [vmem:[#allocation5 + $0xab8] sm:$0xff]
    %v613 = vld [vmem:[#allocation5 + $0xac0] sm:$0xff]
    %v614 = vld [vmem:[#allocation5 + $0xac8] sm:$0xff]
    %v615 = vld [vmem:[#allocation5 + $0xad0] sm:$0xff]
    %v616 = vld [vmem:[#allocation5 + $0xad8] sm:$0xff]
    %v617 = vld [vmem:[#allocation5 + $0xae0] sm:$0xff]
    %v618 = vld [vmem:[#allocation5 + $0xae8] sm:$0xff]
    %v619 = vld [vmem:[#allocation5 + $0xaf0] sm:$0xff]
    %v620 = vld [vmem:[#allocation5 + $0xaf8] sm:$0xff]
    %v621 = vld [vmem:[#allocation5 + $0xb00] sm:$0xff]
    %v622 = vld [vmem:[#allocation5 + $0xb08] sm:$0xff]
    %v623 = vld [vmem:[#allocation5 + $0xb10] sm:$0xff]
    %v624 = vld [vmem:[#allocation5 + $0xb18] sm:$0xff]
    %v625 = vld [vmem:[#allocation5 + $0xb20] sm:$0xff]
    %v626 = vld [vmem:[#allocation5 + $0xb28] sm:$0xff]
    %v627 = vld [vmem:[#allocation5 + $0xb30] sm:$0xff]
    %v628 = vld [vmem:[#allocation5 + $0xb38] sm:$0xff]
    %v629 = vld [vmem:[#allocation5 + $0xb40] sm:$0xff]
    %v630 = vld [vmem:[#allocation5 + $0xb48] sm:$0xff]
    %v631 = vld [vmem:[#allocation5 + $0xb50] sm:$0xff]
    %v632 = vld [vmem:[#allocation5 + $0xb58] sm:$0xff]
    %v633 = vld [vmem:[#allocation5 + $0xb60] sm:$0xff]
    %v634 = vld [vmem:[#allocation5 + $0xb68] sm:$0xff]
    %v635 = vld [vmem:[#allocation5 + $0xb70] sm:$0xff]
    %v636 = vld [vmem:[#allocation5 + $0xb78] sm:$0xff]
    %v637 = vld [vmem:[#allocation5 + $0xb80] sm:$0xff]
    %v638 = vld [vmem:[#allocation5 + $0xb88] sm:$0xff]
    %v639 = vld [vmem:[#allocation5 + $0xb90] sm:$0xff]
    %v640 = vld [vmem:[#allocation5 + $0xb98] sm:$0xff]
    %v641 = vld [vmem:[#allocation5 + $0xba0] sm:$0xff]
    %v642 = vld [vmem:[#allocation5 + $0xba8] sm:$0xff]
    %v643 = vld [vmem:[#allocation5 + $0xbb0] sm:$0xff]
    %v644 = vld [vmem:[#allocation5 + $0xbb8] sm:$0xff]
    %v645 = vld [vmem:[#allocation5 + $0xbc0] sm:$0xff]
    %v646 = vld [vmem:[#allocation5 + $0xbc8] sm:$0xff]
    %v647 = vld [vmem:[#allocation5 + $0xbd0] sm:$0xff]
    %v648 = vld [vmem:[#allocation5 + $0xbd8] sm:$0xff]
    %v649 = vld [vmem:[#allocation5 + $0xbe0] sm:$0xff]
    %v650 = vld [vmem:[#allocation5 + $0xbe8] sm:$0xff]
    %v651 = vld [vmem:[#allocation5 + $0xbf0] sm:$0xff]
    %v652 = vld [vmem:[#allocation5 + $0xbf8] sm:$0xff]
    %v653 = vld [vmem:[#allocation5 + $0xc00] sm:$0xff]
    %v654 = vld [vmem:[#allocation5 + $0xc08] sm:$0xff]
    %v655 = vld [vmem:[#allocation5 + $0xc10] sm:$0xff]
    %v656 = vld [vmem:[#allocation5 + $0xc18] sm:$0xff]
    %v657 = vld [vmem:[#allocation5 + $0xc20] sm:$0xff]
    %v658 = vld [vmem:[#allocation5 + $0xc28] sm:$0xff]
    %v659 = vld [vmem:[#allocation5 + $0xc30] sm:$0xff]
    %v660 = vld [vmem:[#allocation5 + $0xc38] sm:$0xff]
    %v665 = vunpack.c.l.b16 %v265
    %v666 = vunpack.c.h.b16 %v265
    %v667 = vunpack.c.l.b16 %v266
    %v668 = vunpack.c.h.b16 %v266
    %v669 = vunpack.c.l.b16 %v267
    %v670 = vunpack.c.h.b16 %v267
    %v671 = vunpack.c.l.b16 %v268
    %v672 = vpack.c.b16 %v665, %v665
    %v673 = vpack.c.b16 %v666, %v666
    %v674 = vpack.c.b16 %v667, %v667
    %v675 = vpack.c.b16 %v668, %v668
    %v676 = vpack.c.b16 %v669, %v669
    %v677 = vpack.c.b16 %v670, %v670
    %v678 = vpack.c.b16 %v671, %v671
    %v1077 = vunpack.c.l.b16 %v269
    %v1078 = vunpack.c.h.b16 %v269
    %v1079 = vunpack.c.l.b16 %v270
    %v1080 = vunpack.c.h.b16 %v270
    %v1081 = vunpack.c.l.b16 %v271
    %v1082 = vunpack.c.h.b16 %v271
    %v1083 = vunpack.c.l.b16 %v272
    %v1084 = vunpack.c.h.b16 %v272
    %v1085 = vunpack.c.l.b16 %v273
    %v1086 = vunpack.c.h.b16 %v273
    %v1087 = vunpack.c.l.b16 %v274
    %v1088 = vunpack.c.h.b16 %v274
    %v1089 = vunpack.c.l.b16 %v275
    %v1090 = vunpack.c.h.b16 %v275
    %v1091 = vunpack.c.l.b16 %v276
    %v1092 = vunpack.c.h.b16 %v276
    %v1093 = vunpack.c.l.b16 %v277
    %v1094 = vunpack.c.h.b16 %v277
    %v1095 = vunpack.c.l.b16 %v278
    %v1096 = vunpack.c.h.b16 %v278
    %v1097 = vunpack.c.l.b16 %v279
    %v1098 = vunpack.c.h.b16 %v279
    %v1099 = vunpack.c.l.b16 %v280
    %v1100 = vunpack.c.h.b16 %v280
    %v1101 = vunpack.c.l.b16 %v281
    %v1102 = vunpack.c.h.b16 %v281
    %v1103 = vunpack.c.l.b16 %v282
    %v1104 = vunpack.c.h.b16 %v282
    %v1105 = vunpack.c.l.b16 %v283
    %v1106 = vunpack.c.h.b16 %v283
    %v1107 = vunpack.c.l.b16 %v284
    %v1108 = vunpack.c.h.b16 %v284
    %v1109 = vunpack.c.l.b16 %v285
    %v1110 = vunpack.c.h.b16 %v285
    %v1111 = vunpack.c.l.b16 %v286
    %v1112 = vunpack.c.h.b16 %v286
    %v1113 = vunpack.c.l.b16 %v287
    %v1114 = vunpack.c.h.b16 %v287
    %v1115 = vunpack.c.l.b16 %v288
    %v1116 = vunpack.c.h.b16 %v288
    %v1117 = vunpack.c.l.b16 %v289
    %v1118 = vunpack.c.h.b16 %v289
    %v1119 = vunpack.c.l.b16 %v290
    %v1120 = vunpack.c.h.b16 %v290
    %v1121 = vunpack.c.l.b16 %v291
    %v1122 = vunpack.c.h.b16 %v291
    %v1123 = vunpack.c.l.b16 %v292
    %v1124 = vunpack.c.h.b16 %v292
    %v1125 = vunpack.c.l.b16 %v293
    %v1126 = vunpack.c.h.b16 %v293
    %v1127 = vunpack.c.l.b16 %v294
    %v1128 = vunpack.c.h.b16 %v294
    %v1129 = vunpack.c.l.b16 %v295
    %v1130 = vunpack.c.h.b16 %v295
    %v1131 = vunpack.c.l.b16 %v296
    %v1132 = vunpack.c.h.b16 %v296
    %v1133 = vunpack.c.l.b16 %v297
    %v1134 = vunpack.c.h.b16 %v297
    %v1135 = vunpack.c.l.b16 %v298
    %v1136 = vunpack.c.h.b16 %v298
    %v1137 = vunpack.c.l.b16 %v299
    %v1138 = vunpack.c.h.b16 %v299
    %v1139 = vunpack.c.l.b16 %v300
    %v1140 = vunpack.c.h.b16 %v300
    %v1141 = vunpack.c.l.b16 %v301
    %v1142 = vunpack.c.h.b16 %v301
    %v1143 = vunpack.c.l.b16 %v302
    %v1144 = vunpack.c.h.b16 %v302
    %v1145 = vunpack.c.l.b16 %v303
    %v1146 = vunpack.c.h.b16 %v303
    %v1147 = vunpack.c.l.b16 %v304
    %v1148 = vunpack.c.h.b16 %v304
    %v1149 = vunpack.c.l.b16 %v305
    %v1150 = vunpack.c.h.b16 %v305
    %v1151 = vunpack.c.l.b16 %v306
    %v1152 = vunpack.c.h.b16 %v306
    %v1153 = vunpack.c.l.b16 %v307
    %v1154 = vunpack.c.h.b16 %v307
    %v1155 = vunpack.c.l.b16 %v308
    %v1156 = vunpack.c.h.b16 %v308
    %v1157 = vunpack.c.l.b16 %v309
    %v1158 = vunpack.c.h.b16 %v309
    %v1159 = vunpack.c.l.b16 %v310
    %v1160 = vunpack.c.h.b16 %v310
    %v1161 = vunpack.c.l.b16 %v311
    %v1162 = vunpack.c.h.b16 %v311
    %v1163 = vunpack.c.l.b16 %v312
    %v1164 = vunpack.c.h.b16 %v312
    %v1165 = vunpack.c.l.b16 %v313
    %v1166 = vunpack.c.h.b16 %v313
    %v1167 = vunpack.c.l.b16 %v314
    %v1168 = vunpack.c.h.b16 %v314
    %v1169 = vunpack.c.l.b16 %v315
    %v1170 = vunpack.c.h.b16 %v315
    %v1171 = vunpack.c.l.b16 %v316
    %v1172 = vunpack.c.h.b16 %v316
    %v1173 = vunpack.c.l.b16 %v317
    %v1174 = vunpack.c.h.b16 %v317
    %v1175 = vunpack.c.l.b16 %v318
    %v1176 = vunpack.c.h.b16 %v318
    %v1177 = vunpack.c.l.b16 %v319
    %v1178 = vunpack.c.h.b16 %v319
    %v1179 = vunpack.c.l.b16 %v320
    %v1180 = vunpack.c.h.b16 %v320
    %v1181 = vunpack.c.l.b16 %v321
    %v1182 = vunpack.c.h.b16 %v321
    %v1183 = vunpack.c.l.b16 %v322
    %v1184 = vunpack.c.h.b16 %v322
    %v1185 = vunpack.c.l.b16 %v323
    %v1186 = vunpack.c.h.b16 %v323
    %v1187 = vunpack.c.l.b16 %v324
    %v1188 = vunpack.c.h.b16 %v324
    %v1189 = vunpack.c.l.b16 %v325
    %v1190 = vunpack.c.h.b16 %v325
    %v1191 = vunpack.c.l.b16 %v326
    %v1192 = vunpack.c.h.b16 %v326
    %v1193 = vunpack.c.l.b16 %v327
    %v1194 = vunpack.c.h.b16 %v327
    %v1195 = vunpack.c.l.b16 %v328
    %v1196 = vunpack.c.h.b16 %v328
    %v1197 = vunpack.c.l.b16 %v329
    %v1198 = vunpack.c.h.b16 %v329
    %v1199 = vunpack.c.l.b16 %v330
    %v1200 = vunpack.c.h.b16 %v330
    %v1201 = vunpack.c.l.b16 %v331
    %v1202 = vunpack.c.h.b16 %v331
    %v1203 = vunpack.c.l.b16 %v332
    %v1204 = vunpack.c.h.b16 %v332
    %v1205 = vunpack.c.l.b16 %v333
    %v1206 = vunpack.c.h.b16 %v333
    %v1207 = vunpack.c.l.b16 %v334
    %v1208 = vunpack.c.h.b16 %v334
    %v1209 = vunpack.c.l.b16 %v335
    %v1210 = vunpack.c.h.b16 %v335
    %v1211 = vunpack.c.l.b16 %v336
    %v1212 = vunpack.c.h.b16 %v336
    %v1213 = vunpack.c.l.b16 %v337
    %v1214 = vunpack.c.h.b16 %v337
    %v1215 = vunpack.c.l.b16 %v338
    %v1216 = vunpack.c.h.b16 %v338
    %v1217 = vunpack.c.l.b16 %v339
    %v1218 = vunpack.c.h.b16 %v339
    %v1219 = vunpack.c.l.b16 %v340
    %v1220 = vunpack.c.h.b16 %v340
    %v1221 = vunpack.c.l.b16 %v341
    %v1222 = vunpack.c.h.b16 %v341
    %v1223 = vunpack.c.l.b16 %v342
    %v1224 = vunpack.c.h.b16 %v342
    %v1225 = vunpack.c.l.b16 %v343
    %v1226 = vunpack.c.h.b16 %v343
    %v1227 = vunpack.c.l.b16 %v344
    %v1228 = vunpack.c.h.b16 %v344
    %v1229 = vunpack.c.l.b16 %v345
    %v1230 = vunpack.c.h.b16 %v345
    %v1231 = vunpack.c.l.b16 %v346
    %v1232 = vunpack.c.h.b16 %v346
    %v1233 = vunpack.c.l.b16 %v347
    %v1234 = vunpack.c.h.b16 %v347
    %v1235 = vunpack.c.l.b16 %v348
    %v1236 = vunpack.c.h.b16 %v348
    %v1237 = vunpack.c.l.b16 %v349
    %v1238 = vunpack.c.h.b16 %v349
    %v1239 = vunpack.c.l.b16 %v350
    %v1240 = vunpack.c.h.b16 %v350
    %v1241 = vunpack.c.l.b16 %v351
    %v1242 = vunpack.c.h.b16 %v351
    %v1243 = vunpack.c.l.b16 %v352
    %v1244 = vunpack.c.h.b16 %v352
    %v1245 = vunpack.c.l.b16 %v353
    %v1246 = vunpack.c.h.b16 %v353
    %v1247 = vunpack.c.l.b16 %v354
    %v1248 = vunpack.c.h.b16 %v354
    %v1249 = vunpack.c.l.b16 %v355
    %v1250 = vunpack.c.h.b16 %v355
    %v1251 = vunpack.c.l.b16 %v356
    %v1252 = vunpack.c.h.b16 %v356
    %v1253 = vunpack.c.l.b16 %v357
    %v1254 = vunpack.c.h.b16 %v357
    %v1255 = vunpack.c.l.b16 %v358
    %v1256 = vunpack.c.h.b16 %v358
    %v1257 = vunpack.c.l.b16 %v359
    %v1258 = vunpack.c.h.b16 %v359
    %v1259 = vunpack.c.l.b16 %v360
    %v1260 = vunpack.c.h.b16 %v360
    %v1261 = vunpack.c.l.b16 %v361
    %v1262 = vunpack.c.h.b16 %v361
    %v1263 = vunpack.c.l.b16 %v362
    %v1264 = vunpack.c.h.b16 %v362
    %v1265 = vunpack.c.l.b16 %v363
    %v1266 = vunpack.c.h.b16 %v363
    %v1267 = vunpack.c.l.b16 %v364
    %v1268 = vunpack.c.h.b16 %v364
    %v1269 = vunpack.c.l.b16 %v365
    %v1270 = vunpack.c.h.b16 %v365
    %v1271 = vunpack.c.l.b16 %v366
    %v1272 = vunpack.c.h.b16 %v366
    %v1273 = vunpack.c.l.b16 %v367
    %v1274 = vunpack.c.h.b16 %v367
    %v1275 = vunpack.c.l.b16 %v368
    %v1276 = vunpack.c.h.b16 %v368
    %v1277 = vunpack.c.l.b16 %v369
    %v1278 = vunpack.c.h.b16 %v369
    %v1279 = vunpack.c.l.b16 %v370
    %v1280 = vunpack.c.h.b16 %v370
    %v1281 = vunpack.c.l.b16 %v371
    %v1282 = vunpack.c.h.b16 %v371
    %v1283 = vunpack.c.l.b16 %v372
    %v1284 = vunpack.c.h.b16 %v372
    %v1285 = vunpack.c.l.b16 %v373
    %v1286 = vunpack.c.h.b16 %v373
    %v1287 = vunpack.c.l.b16 %v374
    %v1288 = vunpack.c.h.b16 %v374
    %v1289 = vunpack.c.l.b16 %v375
    %v1290 = vunpack.c.h.b16 %v375
    %v1291 = vunpack.c.l.b16 %v376
    %v1292 = vunpack.c.h.b16 %v376
    %v1293 = vunpack.c.l.b16 %v377
    %v1294 = vunpack.c.h.b16 %v377
    %v1295 = vunpack.c.l.b16 %v378
    %v1296 = vunpack.c.h.b16 %v378
    %v1297 = vunpack.c.l.b16 %v379
    %v1298 = vunpack.c.h.b16 %v379
    %v1299 = vunpack.c.l.b16 %v380
    %v1300 = vunpack.c.h.b16 %v380
    %v1301 = vunpack.c.l.b16 %v381
    %v1302 = vunpack.c.h.b16 %v381
    %v1303 = vunpack.c.l.b16 %v382
    %v1304 = vunpack.c.h.b16 %v382
    %v1305 = vunpack.c.l.b16 %v383
    %v1306 = vunpack.c.h.b16 %v383
    %v1307 = vunpack.c.l.b16 %v384
    %v1308 = vunpack.c.h.b16 %v384
    %v1309 = vunpack.c.l.b16 %v385
    %v1310 = vunpack.c.h.b16 %v385
    %v1311 = vunpack.c.l.b16 %v386
    %v1312 = vunpack.c.h.b16 %v386
    %v1313 = vunpack.c.l.b16 %v387
    %v1314 = vunpack.c.h.b16 %v387
    %v1315 = vunpack.c.l.b16 %v388
    %v1316 = vunpack.c.h.b16 %v388
    %v1317 = vunpack.c.l.b16 %v389
    %v1318 = vunpack.c.h.b16 %v389
    %v1319 = vunpack.c.l.b16 %v390
    %v1320 = vunpack.c.h.b16 %v390
    %v1321 = vunpack.c.l.b16 %v391
    %v1322 = vunpack.c.h.b16 %v391
    %v1323 = vunpack.c.l.b16 %v392
    %v1324 = vunpack.c.h.b16 %v392
    %v1325 = vunpack.c.l.b16 %v393
    %v1326 = vunpack.c.h.b16 %v393
    %v1327 = vunpack.c.l.b16 %v394
    %v1328 = vunpack.c.h.b16 %v394
    %v1329 = vunpack.c.l.b16 %v395
    %v1330 = vunpack.c.h.b16 %v395
    %v1331 = vunpack.c.l.b16 %v396
    %v1332 = vunpack.c.h.b16 %v396
    %v1333 = vunpack.c.l.b16 %v397
    %v1334 = vunpack.c.h.b16 %v397
    %v1335 = vunpack.c.l.b16 %v398
    %v1336 = vunpack.c.h.b16 %v398
    %v1337 = vunpack.c.l.b16 %v399
    %v1338 = vunpack.c.h.b16 %v399
    %v1339 = vunpack.c.l.b16 %v400
    %v1340 = vunpack.c.h.b16 %v400
    %v1341 = vunpack.c.l.b16 %v401
    %v1342 = vunpack.c.h.b16 %v401
    %v1343 = vunpack.c.l.b16 %v402
    %v1344 = vunpack.c.h.b16 %v402
    %v1345 = vunpack.c.l.b16 %v403
    %v1346 = vunpack.c.h.b16 %v403
    %v1347 = vunpack.c.l.b16 %v404
    %v1348 = vunpack.c.h.b16 %v404
    %v1349 = vunpack.c.l.b16 %v405
    %v1350 = vunpack.c.h.b16 %v405
    %v1351 = vunpack.c.l.b16 %v406
    %v1352 = vunpack.c.h.b16 %v406
    %v1353 = vunpack.c.l.b16 %v407
    %v1354 = vunpack.c.h.b16 %v407
    %v1355 = vunpack.c.l.b16 %v408
    %v1356 = vunpack.c.h.b16 %v408
    %v1357 = vunpack.c.l.b16 %v409
    %v1358 = vunpack.c.h.b16 %v409
    %v1359 = vunpack.c.l.b16 %v410
    %v1360 = vunpack.c.h.b16 %v410
    %v1361 = vunpack.c.l.b16 %v411
    %v1362 = vunpack.c.h.b16 %v411
    %v1363 = vunpack.c.l.b16 %v412
    %v1364 = vunpack.c.h.b16 %v412
    %v1365 = vunpack.c.l.b16 %v413
    %v1366 = vunpack.c.h.b16 %v413
    %v1367 = vunpack.c.l.b16 %v414
    %v1368 = vunpack.c.h.b16 %v414
    %v1369 = vunpack.c.l.b16 %v415
    %v1370 = vunpack.c.h.b16 %v415
    %v1371 = vunpack.c.l.b16 %v416
    %v1372 = vunpack.c.h.b16 %v416
    %v1373 = vunpack.c.l.b16 %v417
    %v1374 = vunpack.c.h.b16 %v417
    %v1375 = vunpack.c.l.b16 %v418
    %v1376 = vunpack.c.h.b16 %v418
    %v1377 = vunpack.c.l.b16 %v419
    %v1378 = vunpack.c.h.b16 %v419
    %v1379 = vunpack.c.l.b16 %v420
    %v1380 = vunpack.c.h.b16 %v420
    %v1381 = vunpack.c.l.b16 %v421
    %v1382 = vunpack.c.h.b16 %v421
    %v1383 = vunpack.c.l.b16 %v422
    %v1384 = vunpack.c.h.b16 %v422
    %v1385 = vunpack.c.l.b16 %v423
    %v1386 = vunpack.c.h.b16 %v423
    %v1387 = vunpack.c.l.b16 %v424
    %v1388 = vunpack.c.h.b16 %v424
    %v1389 = vunpack.c.l.b16 %v425
    %v1390 = vunpack.c.h.b16 %v425
    %v1391 = vunpack.c.l.b16 %v426
    %v1392 = vunpack.c.h.b16 %v426
    %v1393 = vunpack.c.l.b16 %v427
    %v1394 = vunpack.c.h.b16 %v427
    %v1395 = vunpack.c.l.b16 %v428
    %v1396 = vunpack.c.h.b16 %v428
    %v1397 = vunpack.c.l.b16 %v429
    %v1398 = vunpack.c.h.b16 %v429
    %v1399 = vunpack.c.l.b16 %v430
    %v1400 = vunpack.c.h.b16 %v430
    %v1401 = vunpack.c.l.b16 %v431
    %v1402 = vunpack.c.h.b16 %v431
    %v1403 = vunpack.c.l.b16 %v432
    %v1404 = vunpack.c.h.b16 %v432
    %v1405 = vunpack.c.l.b16 %v433
    %v1406 = vunpack.c.h.b16 %v433
    %v1407 = vunpack.c.l.b16 %v434
    %v1408 = vunpack.c.h.b16 %v434
    %v1409 = vunpack.c.l.b16 %v435
    %v1410 = vunpack.c.h.b16 %v435
    %v1411 = vunpack.c.l.b16 %v436
    %v1412 = vunpack.c.h.b16 %v436
    %v1413 = vunpack.c.l.b16 %v437
    %v1414 = vunpack.c.h.b16 %v437
    %v1415 = vunpack.c.l.b16 %v438
    %v1416 = vunpack.c.h.b16 %v438
    %v1417 = vunpack.c.l.b16 %v439
    %v1418 = vunpack.c.h.b16 %v439
    %v1419 = vunpack.c.l.b16 %v440
    %v1420 = vunpack.c.h.b16 %v440
    %v1421 = vunpack.c.l.b16 %v441
    %v1422 = vunpack.c.h.b16 %v441
    %v1423 = vunpack.c.l.b16 %v442
    %v1424 = vunpack.c.h.b16 %v442
    %v1425 = vunpack.c.l.b16 %v443
    %v1426 = vunpack.c.h.b16 %v443
    %v1427 = vunpack.c.l.b16 %v444
    %v1428 = vunpack.c.h.b16 %v444
    %v1429 = vunpack.c.l.b16 %v445
    %v1430 = vunpack.c.h.b16 %v445
    %v1431 = vunpack.c.l.b16 %v446
    %v1432 = vunpack.c.h.b16 %v446
    %v1433 = vunpack.c.l.b16 %v447
    %v1434 = vunpack.c.h.b16 %v447
    %v1435 = vunpack.c.l.b16 %v448
    %v1436 = vunpack.c.h.b16 %v448
    %v1437 = vunpack.c.l.b16 %v449
    %v1438 = vunpack.c.h.b16 %v449
    %v1439 = vunpack.c.l.b16 %v450
    %v1440 = vunpack.c.h.b16 %v450
    %v1441 = vunpack.c.l.b16 %v451
    %v1442 = vunpack.c.h.b16 %v451
    %v1443 = vunpack.c.l.b16 %v452
    %v1444 = vunpack.c.h.b16 %v452
    %v1445 = vunpack.c.l.b16 %v453
    %v1446 = vunpack.c.h.b16 %v453
    %v1447 = vunpack.c.l.b16 %v454
    %v1448 = vunpack.c.h.b16 %v454
    %v1449 = vunpack.c.l.b16 %v455
    %v1450 = vunpack.c.h.b16 %v455
    %v1451 = vunpack.c.l.b16 %v456
    %v1452 = vunpack.c.h.b16 %v456
    %v1453 = vunpack.c.l.b16 %v457
    %v1454 = vunpack.c.h.b16 %v457
    %v1455 = vunpack.c.l.b16 %v458
    %v1456 = vunpack.c.h.b16 %v458
    %v1457 = vunpack.c.l.b16 %v459
    %v1458 = vunpack.c.h.b16 %v459
    %v1459 = vunpack.c.l.b16 %v460
    %v1460 = vunpack.c.h.b16 %v460
    %v1461 = vunpack.c.l.b16 %v461
    %v1462 = vunpack.c.h.b16 %v461
    %v1463 = vunpack.c.l.b16 %v462
    %v1464 = vunpack.c.h.b16 %v462
    %v1465 = vunpack.c.l.b16 %v463
    %v1466 = vunpack.c.h.b16 %v463
    %v1467 = vunpack.c.l.b16 %v464
    %v1468 = vunpack.c.h.b16 %v464
    %v1469 = vunpack.c.l.b16 %v465
    %v1470 = vunpack.c.h.b16 %v465
    %v1471 = vunpack.c.l.b16 %v466
    %v1472 = vunpack.c.h.b16 %v466
    %v1473 = vunpack.c.l.b16 %v467
    %v1474 = vunpack.c.h.b16 %v467
    %v1475 = vunpack.c.l.b16 %v468
    %v1476 = vunpack.c.h.b16 %v468
    %v1477 = vunpack.c.l.b16 %v469
    %v1478 = vunpack.c.h.b16 %v469
    %v1479 = vunpack.c.l.b16 %v470
    %v1480 = vunpack.c.h.b16 %v470
    %v1481 = vunpack.c.l.b16 %v471
    %v1482 = vunpack.c.h.b16 %v471
    %v1483 = vunpack.c.l.b16 %v472
    %v1484 = vunpack.c.h.b16 %v472
    %v1485 = vunpack.c.l.b16 %v473
    %v1486 = vunpack.c.h.b16 %v473
    %v1487 = vunpack.c.l.b16 %v474
    %v1488 = vunpack.c.h.b16 %v474
    %v1489 = vunpack.c.l.b16 %v475
    %v1490 = vunpack.c.h.b16 %v475
    %v1491 = vunpack.c.l.b16 %v476
    %v1492 = vunpack.c.h.b16 %v476
    %v1493 = vunpack.c.l.b16 %v477
    %v1494 = vunpack.c.h.b16 %v477
    %v1495 = vunpack.c.l.b16 %v478
    %v1496 = vunpack.c.h.b16 %v478
    %v1497 = vunpack.c.l.b16 %v479
    %v1498 = vunpack.c.h.b16 %v479
    %v1499 = vunpack.c.l.b16 %v480
    %v1500 = vunpack.c.h.b16 %v480
    %v1501 = vunpack.c.l.b16 %v481
    %v1502 = vunpack.c.h.b16 %v481
    %v1503 = vunpack.c.l.b16 %v482
    %v1504 = vunpack.c.h.b16 %v482
    %v1505 = vunpack.c.l.b16 %v483
    %v1506 = vunpack.c.h.b16 %v483
    %v1507 = vunpack.c.l.b16 %v484
    %v1508 = vunpack.c.h.b16 %v484
    %v1509 = vunpack.c.l.b16 %v485
    %v1510 = vunpack.c.h.b16 %v485
    %v1511 = vunpack.c.l.b16 %v486
    %v1512 = vunpack.c.h.b16 %v486
    %v1513 = vunpack.c.l.b16 %v487
    %v1514 = vunpack.c.h.b16 %v487
    %v1515 = vunpack.c.l.b16 %v488
    %v1516 = vunpack.c.h.b16 %v488
    %v1517 = vunpack.c.l.b16 %v489
    %v1518 = vunpack.c.h.b16 %v489
    %v1519 = vunpack.c.l.b16 %v490
    %v1520 = vunpack.c.h.b16 %v490
    %v1521 = vunpack.c.l.b16 %v491
    %v1522 = vunpack.c.h.b16 %v491
    %v1523 = vunpack.c.l.b16 %v492
    %v1524 = vunpack.c.h.b16 %v492
    %v1525 = vunpack.c.l.b16 %v493
    %v1526 = vunpack.c.h.b16 %v493
    %v1527 = vunpack.c.l.b16 %v494
    %v1528 = vunpack.c.h.b16 %v494
    %v1529 = vunpack.c.l.b16 %v495
    %v1530 = vunpack.c.h.b16 %v495
    %v1531 = vunpack.c.l.b16 %v496
    %v1532 = vunpack.c.h.b16 %v496
    %v1533 = vunpack.c.l.b16 %v497
    %v1534 = vunpack.c.h.b16 %v497
    %v1535 = vunpack.c.l.b16 %v498
    %v1536 = vunpack.c.h.b16 %v498
    %v1537 = vunpack.c.l.b16 %v499
    %v1538 = vunpack.c.h.b16 %v499
    %v1539 = vunpack.c.l.b16 %v500
    %v1540 = vunpack.c.h.b16 %v500
    %v1541 = vunpack.c.l.b16 %v501
    %v1542 = vunpack.c.h.b16 %v501
    %v1543 = vunpack.c.l.b16 %v502
    %v1544 = vunpack.c.h.b16 %v502
    %v1545 = vunpack.c.l.b16 %v503
    %v1546 = vunpack.c.h.b16 %v503
    %v1547 = vunpack.c.l.b16 %v504
    %v1548 = vunpack.c.h.b16 %v504
    %v1549 = vunpack.c.l.b16 %v505
    %v1550 = vunpack.c.h.b16 %v505
    %v1551 = vunpack.c.l.b16 %v506
    %v1552 = vunpack.c.h.b16 %v506
    %v1553 = vunpack.c.l.b16 %v507
    %v1554 = vunpack.c.h.b16 %v507
    %v1555 = vunpack.c.l.b16 %v508
    %v1556 = vunpack.c.h.b16 %v508
    %v1557 = vunpack.c.l.b16 %v509
    %v1558 = vunpack.c.h.b16 %v509
    %v1559 = vunpack.c.l.b16 %v510
    %v1560 = vunpack.c.h.b16 %v510
    %v1561 = vunpack.c.l.b16 %v511
    %v1562 = vunpack.c.h.b16 %v511
    %v1563 = vunpack.c.l.b16 %v512
    %v1564 = vunpack.c.h.b16 %v512
    %v1565 = vunpack.c.l.b16 %v513
    %v1566 = vunpack.c.h.b16 %v513
    %v1567 = vunpack.c.l.b16 %v514
    %v1568 = vunpack.c.h.b16 %v514
    %v1569 = vunpack.c.l.b16 %v515
    %v1570 = vunpack.c.h.b16 %v515
    %v1571 = vunpack.c.l.b16 %v516
    %v1572 = vunpack.c.h.b16 %v516
    %v1573 = vunpack.c.l.b16 %v517
    %v1574 = vunpack.c.h.b16 %v517
    %v1575 = vunpack.c.l.b16 %v518
    %v1576 = vunpack.c.h.b16 %v518
    %v1577 = vunpack.c.l.b16 %v519
    %v1578 = vunpack.c.h.b16 %v519
    %v1579 = vunpack.c.l.b16 %v520
    %v1580 = vunpack.c.h.b16 %v520
    %v1581 = vunpack.c.l.b16 %v521
    %v1582 = vunpack.c.h.b16 %v521
    %v1583 = vunpack.c.l.b16 %v522
    %v1584 = vunpack.c.h.b16 %v522
    %v1585 = vunpack.c.l.b16 %v523
    %v1586 = vunpack.c.h.b16 %v523
    %v1587 = vunpack.c.l.b16 %v524
    %v1588 = vunpack.c.h.b16 %v524
    %v1589 = vunpack.c.l.b16 %v525
    %v1590 = vunpack.c.h.b16 %v525
    %v1591 = vunpack.c.l.b16 %v526
    %v1592 = vunpack.c.h.b16 %v526
    %v1593 = vunpack.c.l.b16 %v527
    %v1594 = vunpack.c.h.b16 %v527
    %v1595 = vunpack.c.l.b16 %v528
    %v1596 = vunpack.c.h.b16 %v528
    %v1597 = vunpack.c.l.b16 %v529
    %v1598 = vunpack.c.h.b16 %v529
    %v1599 = vunpack.c.l.b16 %v530
    %v1600 = vunpack.c.h.b16 %v530
    %v1601 = vunpack.c.l.b16 %v531
    %v1602 = vunpack.c.h.b16 %v531
    %v1603 = vunpack.c.l.b16 %v532
    %v1604 = vunpack.c.h.b16 %v532
    %v1605 = vunpack.c.l.b16 %v533
    %v1606 = vunpack.c.h.b16 %v533
    %v1607 = vunpack.c.l.b16 %v534
    %v1608 = vunpack.c.h.b16 %v534
    %v1609 = vunpack.c.l.b16 %v535
    %v1610 = vunpack.c.h.b16 %v535
    %v1611 = vunpack.c.l.b16 %v536
    %v1612 = vunpack.c.h.b16 %v536
    %v1613 = vunpack.c.l.b16 %v537
    %v1614 = vunpack.c.h.b16 %v537
    %v1615 = vunpack.c.l.b16 %v538
    %v1616 = vunpack.c.h.b16 %v538
    %v1617 = vunpack.c.l.b16 %v539
    %v1618 = vunpack.c.h.b16 %v539
    %v1619 = vunpack.c.l.b16 %v540
    %v1620 = vunpack.c.h.b16 %v540
    %v1621 = vunpack.c.l.b16 %v541
    %v1622 = vunpack.c.h.b16 %v541
    %v1623 = vunpack.c.l.b16 %v542
    %v1624 = vunpack.c.h.b16 %v542
    %v1625 = vunpack.c.l.b16 %v543
    %v1626 = vunpack.c.h.b16 %v543
    %v1627 = vunpack.c.l.b16 %v544
    %v1628 = vunpack.c.h.b16 %v544
    %v1629 = vunpack.c.l.b16 %v545
    %v1630 = vunpack.c.h.b16 %v545
    %v1631 = vunpack.c.l.b16 %v546
    %v1632 = vunpack.c.h.b16 %v546
    %v1633 = vunpack.c.l.b16 %v547
    %v1634 = vunpack.c.h.b16 %v547
    %v1635 = vunpack.c.l.b16 %v548
    %v1636 = vunpack.c.h.b16 %v548
    %v1637 = vunpack.c.l.b16 %v549
    %v1638 = vunpack.c.h.b16 %v549
    %v1639 = vunpack.c.l.b16 %v550
    %v1640 = vunpack.c.h.b16 %v550
    %v1641 = vunpack.c.l.b16 %v551
    %v1642 = vunpack.c.h.b16 %v551
    %v1643 = vunpack.c.l.b16 %v552
    %v1644 = vunpack.c.h.b16 %v552
    %v1645 = vunpack.c.l.b16 %v553
    %v1646 = vunpack.c.h.b16 %v553
    %v1647 = vunpack.c.l.b16 %v554
    %v1648 = vunpack.c.h.b16 %v554
    %v1649 = vunpack.c.l.b16 %v555
    %v1650 = vunpack.c.h.b16 %v555
    %v1651 = vunpack.c.l.b16 %v556
    %v1652 = vunpack.c.h.b16 %v556
    %v1653 = vunpack.c.l.b16 %v557
    %v1654 = vunpack.c.h.b16 %v557
    %v1655 = vunpack.c.l.b16 %v558
    %v1656 = vunpack.c.h.b16 %v558
    %v1657 = vunpack.c.l.b16 %v559
    %v1658 = vunpack.c.h.b16 %v559
    %v1659 = vunpack.c.l.b16 %v560
    %v1660 = vunpack.c.h.b16 %v560
    %v1661 = vunpack.c.l.b16 %v561
    %v1662 = vunpack.c.h.b16 %v561
    %v1663 = vunpack.c.l.b16 %v562
    %v1664 = vunpack.c.h.b16 %v562
    %v1665 = vunpack.c.l.b16 %v563
    %v1666 = vunpack.c.h.b16 %v563
    %v1667 = vunpack.c.l.b16 %v564
    %v1668 = vunpack.c.h.b16 %v564
    %v1669 = vunpack.c.l.b16 %v565
    %v1670 = vunpack.c.h.b16 %v565
    %v1671 = vunpack.c.l.b16 %v566
    %v1672 = vunpack.c.h.b16 %v566
    %v1673 = vunpack.c.l.b16 %v567
    %v1674 = vunpack.c.h.b16 %v567
    %v1675 = vunpack.c.l.b16 %v568
    %v1676 = vunpack.c.h.b16 %v568
    %v1677 = vunpack.c.l.b16 %v569
    %v1678 = vunpack.c.h.b16 %v569
    %v1679 = vunpack.c.l.b16 %v570
    %v1680 = vunpack.c.h.b16 %v570
    %v1681 = vunpack.c.l.b16 %v571
    %v1682 = vunpack.c.h.b16 %v571
    %v1683 = vunpack.c.l.b16 %v572
    %v1684 = vunpack.c.h.b16 %v572
    %v1685 = vunpack.c.l.b16 %v573
    %v1686 = vunpack.c.h.b16 %v573
    %v1687 = vunpack.c.l.b16 %v574
    %v1688 = vunpack.c.h.b16 %v574
    %v1689 = vunpack.c.l.b16 %v575
    %v1690 = vunpack.c.h.b16 %v575
    %v1691 = vunpack.c.l.b16 %v576
    %v1692 = vunpack.c.h.b16 %v576
    %v1693 = vunpack.c.l.b16 %v577
    %v1694 = vunpack.c.h.b16 %v577
    %v1695 = vunpack.c.l.b16 %v578
    %v1696 = vunpack.c.h.b16 %v578
    %v1697 = vunpack.c.l.b16 %v579
    %v1698 = vunpack.c.h.b16 %v579
    %v1699 = vunpack.c.l.b16 %v580
    %v1700 = vunpack.c.h.b16 %v580
    %v1701 = vunpack.c.l.b16 %v581
    %v1702 = vunpack.c.h.b16 %v581
    %v1703 = vunpack.c.l.b16 %v582
    %v1704 = vunpack.c.h.b16 %v582
    %v1705 = vunpack.c.l.b16 %v583
    %v1706 = vunpack.c.h.b16 %v583
    %v1707 = vunpack.c.l.b16 %v584
    %v1708 = vunpack.c.h.b16 %v584
    %v1709 = vunpack.c.l.b16 %v585
    %v1710 = vunpack.c.h.b16 %v585
    %v1711 = vunpack.c.l.b16 %v586
    %v1712 = vunpack.c.h.b16 %v586
    %v1713 = vunpack.c.l.b16 %v587
    %v1714 = vunpack.c.h.b16 %v587
    %v1715 = vunpack.c.l.b16 %v588
    %v1716 = vunpack.c.h.b16 %v588
    %v1717 = vunpack.c.l.b16 %v589
    %v1718 = vunpack.c.h.b16 %v589
    %v1719 = vunpack.c.l.b16 %v590
    %v1720 = vunpack.c.h.b16 %v590
    %v1721 = vunpack.c.l.b16 %v591
    %v1722 = vunpack.c.h.b16 %v591
    %v1723 = vunpack.c.l.b16 %v592
    %v1724 = vunpack.c.h.b16 %v592
    %v1725 = vunpack.c.l.b16 %v593
    %v1726 = vunpack.c.h.b16 %v593
    %v1727 = vunpack.c.l.b16 %v594
    %v1728 = vunpack.c.h.b16 %v594
    %v1729 = vunpack.c.l.b16 %v595
    %v1730 = vunpack.c.h.b16 %v595
    %v1731 = vunpack.c.l.b16 %v596
    %v1732 = vunpack.c.h.b16 %v596
    %v1733 = vunpack.c.l.b16 %v597
    %v1734 = vunpack.c.h.b16 %v597
    %v1735 = vunpack.c.l.b16 %v598
    %v1736 = vunpack.c.h.b16 %v598
    %v1737 = vunpack.c.l.b16 %v599
    %v1738 = vunpack.c.h.b16 %v599
    %v1739 = vunpack.c.l.b16 %v600
    %v1740 = vunpack.c.h.b16 %v600
    %v1741 = vunpack.c.l.b16 %v601
    %v1742 = vunpack.c.h.b16 %v601
    %v1743 = vunpack.c.l.b16 %v602
    %v1744 = vunpack.c.h.b16 %v602
    %v1745 = vunpack.c.l.b16 %v603
    %v1746 = vunpack.c.h.b16 %v603
    %v1747 = vunpack.c.l.b16 %v604
    %v1748 = vunpack.c.h.b16 %v604
    %v1749 = vunpack.c.l.b16 %v605
    %v1750 = vunpack.c.h.b16 %v605
    %v1751 = vunpack.c.l.b16 %v606
    %v1752 = vunpack.c.h.b16 %v606
    %v1753 = vunpack.c.l.b16 %v607
    %v1754 = vunpack.c.h.b16 %v607
    %v1755 = vunpack.c.l.b16 %v608
    %v1756 = vunpack.c.h.b16 %v608
    %v1757 = vunpack.c.l.b16 %v609
    %v1758 = vunpack.c.h.b16 %v609
    %v1759 = vunpack.c.l.b16 %v610
    %v1760 = vunpack.c.h.b16 %v610
    %v1761 = vunpack.c.l.b16 %v611
    %v1762 = vunpack.c.h.b16 %v611
    %v1763 = vunpack.c.l.b16 %v612
    %v1764 = vunpack.c.h.b16 %v612
    %v1765 = vunpack.c.l.b16 %v613
    %v1766 = vunpack.c.h.b16 %v613
    %v1767 = vunpack.c.l.b16 %v614
    %v1768 = vunpack.c.h.b16 %v614
    %v1769 = vunpack.c.l.b16 %v615
    %v1770 = vunpack.c.h.b16 %v615
    %v1771 = vunpack.c.l.b16 %v616
    %v1772 = vunpack.c.h.b16 %v616
    %v1773 = vunpack.c.l.b16 %v617
    %v1774 = vunpack.c.h.b16 %v617
    %v1775 = vunpack.c.l.b16 %v618
    %v1776 = vunpack.c.h.b16 %v618
    %v1777 = vunpack.c.l.b16 %v619
    %v1778 = vunpack.c.h.b16 %v619
    %v1779 = vunpack.c.l.b16 %v620
    %v1780 = vunpack.c.h.b16 %v620
    %v1781 = vunpack.c.l.b16 %v621
    %v1782 = vunpack.c.h.b16 %v621
    %v1783 = vunpack.c.l.b16 %v622
    %v1784 = vunpack.c.h.b16 %v622
    %v1785 = vunpack.c.l.b16 %v623
    %v1786 = vunpack.c.h.b16 %v623
    %v1787 = vunpack.c.l.b16 %v624
    %v1788 = vunpack.c.h.b16 %v624
    %v1789 = vunpack.c.l.b16 %v625
    %v1790 = vunpack.c.h.b16 %v625
    %v1791 = vunpack.c.l.b16 %v626
    %v1792 = vunpack.c.h.b16 %v626
    %v1793 = vunpack.c.l.b16 %v627
    %v1794 = vunpack.c.h.b16 %v627
    %v1795 = vunpack.c.l.b16 %v628
    %v1796 = vunpack.c.h.b16 %v628
    %v1797 = vunpack.c.l.b16 %v629
    %v1798 = vunpack.c.h.b16 %v629
    %v1799 = vunpack.c.l.b16 %v630
    %v1800 = vunpack.c.h.b16 %v630
    %v1801 = vunpack.c.l.b16 %v631
    %v1802 = vunpack.c.h.b16 %v631
    %v1803 = vunpack.c.l.b16 %v632
    %v1804 = vunpack.c.h.b16 %v632
    %v1805 = vunpack.c.l.b16 %v633
    %v1806 = vunpack.c.h.b16 %v633
    %v1807 = vunpack.c.l.b16 %v634
    %v1808 = vunpack.c.h.b16 %v634
    %v1809 = vunpack.c.l.b16 %v635
    %v1810 = vunpack.c.h.b16 %v635
    %v1811 = vunpack.c.l.b16 %v636
    %v1812 = vunpack.c.h.b16 %v636
    %v1813 = vunpack.c.l.b16 %v637
    %v1814 = vunpack.c.h.b16 %v637
    %v1815 = vunpack.c.l.b16 %v638
    %v1816 = vunpack.c.h.b16 %v638
    %v1817 = vunpack.c.l.b16 %v639
    %v1818 = vunpack.c.h.b16 %v639
    %v1819 = vunpack.c.l.b16 %v640
    %v1820 = vunpack.c.h.b16 %v640
    %v1821 = vunpack.c.l.b16 %v641
    %v1822 = vunpack.c.h.b16 %v641
    %v1823 = vunpack.c.l.b16 %v642
    %v1824 = vunpack.c.h.b16 %v642
    %v1825 = vunpack.c.l.b16 %v643
    %v1826 = vunpack.c.h.b16 %v643
    %v1827 = vunpack.c.l.b16 %v644
    %v1828 = vunpack.c.h.b16 %v644
    %v1829 = vunpack.c.l.b16 %v645
    %v1830 = vunpack.c.h.b16 %v645
    %v1831 = vunpack.c.l.b16 %v646
    %v1832 = vunpack.c.h.b16 %v646
    %v1833 = vunpack.c.l.b16 %v647
    %v1834 = vunpack.c.h.b16 %v647
    %v1835 = vunpack.c.l.b16 %v648
    %v1836 = vunpack.c.h.b16 %v648
    %v1837 = vunpack.c.l.b16 %v649
    %v1838 = vunpack.c.h.b16 %v649
    %v1839 = vunpack.c.l.b16 %v650
    %v1840 = vunpack.c.h.b16 %v650
    %v1841 = vunpack.c.l.b16 %v651
    %v1842 = vunpack.c.h.b16 %v651
    %v1843 = vunpack.c.l.b16 %v652
    %v1844 = vunpack.c.h.b16 %v652
    %v1845 = vunpack.c.l.b16 %v653
    %v1846 = vunpack.c.h.b16 %v653
    %v1847 = vunpack.c.l.b16 %v654
    %v1848 = vunpack.c.h.b16 %v654
    %v1849 = vunpack.c.l.b16 %v655
    %v1850 = vunpack.c.h.b16 %v655
    %v1851 = vunpack.c.l.b16 %v656
    %v1852 = vunpack.c.h.b16 %v656
    %v1853 = vunpack.c.l.b16 %v657
    %v1854 = vunpack.c.h.b16 %v657
    %v1855 = vunpack.c.l.b16 %v658
    %v1856 = vunpack.c.h.b16 %v658
    %v1857 = vunpack.c.l.b16 %v659
    %v1858 = vunpack.c.h.b16 %v659
    %v1859 = vunpack.c.l.b16 %v660
    %v1860 = vunpack.c.h.b16 %v660
    %v1861 = vpack.c.b16 %v1085, %v1077
    %v1862 = vpack.c.b16 %v1086, %v1078
    %v1863 = vpack.c.b16 %v1087, %v1079
    %v1864 = vpack.c.b16 %v1088, %v1080
    %v1865 = vpack.c.b16 %v1089, %v1081
    %v1866 = vpack.c.b16 %v1090, %v1082
    %v1867 = vpack.c.b16 %v1091, %v1083
    %v1868 = vpack.c.b16 %v1092, %v1084
    %v1869 = vpack.c.b16 %v1101, %v1093
    %v1870 = vpack.c.b16 %v1102, %v1094
    %v1871 = vpack.c.b16 %v1103, %v1095
    %v1872 = vpack.c.b16 %v1104, %v1096
    %v1873 = vpack.c.b16 %v1105, %v1097
    %v1874 = vpack.c.b16 %v1106, %v1098
    %v1875 = vpack.c.b16 %v1107, %v1099
    %v1876 = vpack.c.b16 %v1108, %v1100
    %v1877 = vpack.c.b16 %v1117, %v1109
    %v1878 = vpack.c.b16 %v1118, %v1110
    %v1879 = vpack.c.b16 %v1119, %v1111
    %v1880 = vpack.c.b16 %v1120, %v1112
    %v1881 = vpack.c.b16 %v1121, %v1113
    %v1882 = vpack.c.b16 %v1122, %v1114
    %v1883 = vpack.c.b16 %v1123, %v1115
    %v1884 = vpack.c.b16 %v1124, %v1116
    %v1885 = vpack.c.b16 %v1133, %v1125
    %v1886 = vpack.c.b16 %v1134, %v1126
    %v1887 = vpack.c.b16 %v1135, %v1127
    %v1888 = vpack.c.b16 %v1136, %v1128
    %v1889 = vpack.c.b16 %v1137, %v1129
    %v1890 = vpack.c.b16 %v1138, %v1130
    %v1891 = vpack.c.b16 %v1139, %v1131
    %v1892 = vpack.c.b16 %v1140, %v1132
    %v1893 = vpack.c.b16 %v1149, %v1141
    %v1894 = vpack.c.b16 %v1150, %v1142
    %v1895 = vpack.c.b16 %v1151, %v1143
    %v1896 = vpack.c.b16 %v1152, %v1144
    %v1897 = vpack.c.b16 %v1153, %v1145
    %v1898 = vpack.c.b16 %v1154, %v1146
    %v1899 = vpack.c.b16 %v1155, %v1147
    %v1900 = vpack.c.b16 %v1156, %v1148
    %v1901 = vpack.c.b16 %v1165, %v1157
    %v1902 = vpack.c.b16 %v1166, %v1158
    %v1903 = vpack.c.b16 %v1167, %v1159
    %v1904 = vpack.c.b16 %v1168, %v1160
    %v1905 = vpack.c.b16 %v1169, %v1161
    %v1906 = vpack.c.b16 %v1170, %v1162
    %v1907 = vpack.c.b16 %v1171, %v1163
    %v1908 = vpack.c.b16 %v1172, %v1164
    %v1909 = vpack.c.b16 %v1181, %v1173
    %v1910 = vpack.c.b16 %v1182, %v1174
    %v1911 = vpack.c.b16 %v1183, %v1175
    %v1912 = vpack.c.b16 %v1184, %v1176
    %v1913 = vpack.c.b16 %v1185, %v1177
    %v1914 = vpack.c.b16 %v1186, %v1178
    %v1915 = vpack.c.b16 %v1187, %v1179
    %v1916 = vpack.c.b16 %v1188, %v1180
    %v1917 = vpack.c.b16 %v1197, %v1189
    %v1918 = vpack.c.b16 %v1198, %v1190
    %v1919 = vpack.c.b16 %v1199, %v1191
    %v1920 = vpack.c.b16 %v1200, %v1192
    %v1921 = vpack.c.b16 %v1201, %v1193
    %v1922 = vpack.c.b16 %v1202, %v1194
    %v1923 = vpack.c.b16 %v1203, %v1195
    %v1924 = vpack.c.b16 %v1204, %v1196
    %v1925 = vpack.c.b16 %v1213, %v1205
    %v1926 = vpack.c.b16 %v1214, %v1206
    %v1927 = vpack.c.b16 %v1215, %v1207
    %v1928 = vpack.c.b16 %v1216, %v1208
    %v1929 = vpack.c.b16 %v1217, %v1209
    %v1930 = vpack.c.b16 %v1218, %v1210
    %v1931 = vpack.c.b16 %v1219, %v1211
    %v1932 = vpack.c.b16 %v1220, %v1212
    %v1933 = vpack.c.b16 %v1229, %v1221
    %v1934 = vpack.c.b16 %v1230, %v1222
    %v1935 = vpack.c.b16 %v1231, %v1223
    %v1936 = vpack.c.b16 %v1232, %v1224
    %v1937 = vpack.c.b16 %v1233, %v1225
    %v1938 = vpack.c.b16 %v1234, %v1226
    %v1939 = vpack.c.b16 %v1235, %v1227
    %v1940 = vpack.c.b16 %v1236, %v1228
    %v1941 = vpack.c.b16 %v1245, %v1237
    %v1942 = vpack.c.b16 %v1246, %v1238
    %v1943 = vpack.c.b16 %v1247, %v1239
    %v1944 = vpack.c.b16 %v1248, %v1240
    %v1945 = vpack.c.b16 %v1249, %v1241
    %v1946 = vpack.c.b16 %v1250, %v1242
    %v1947 = vpack.c.b16 %v1251, %v1243
    %v1948 = vpack.c.b16 %v1252, %v1244
    %v1949 = vpack.c.b16 %v1261, %v1253
    %v1950 = vpack.c.b16 %v1262, %v1254
    %v1951 = vpack.c.b16 %v1263, %v1255
    %v1952 = vpack.c.b16 %v1264, %v1256
    %v1953 = vpack.c.b16 %v1265, %v1257
    %v1954 = vpack.c.b16 %v1266, %v1258
    %v1955 = vpack.c.b16 %v1267, %v1259
    %v1956 = vpack.c.b16 %v1268, %v1260
    %v1957 = vpack.c.b16 %v1277, %v1269
    %v1958 = vpack.c.b16 %v1278, %v1270
    %v1959 = vpack.c.b16 %v1279, %v1271
    %v1960 = vpack.c.b16 %v1280, %v1272
    %v1961 = vpack.c.b16 %v1281, %v1273
    %v1962 = vpack.c.b16 %v1282, %v1274
    %v1963 = vpack.c.b16 %v1283, %v1275
    %v1964 = vpack.c.b16 %v1284, %v1276
    %v1965 = vpack.c.b16 %v1293, %v1285
    %v1966 = vpack.c.b16 %v1294, %v1286
    %v1967 = vpack.c.b16 %v1295, %v1287
    %v1968 = vpack.c.b16 %v1296, %v1288
    %v1969 = vpack.c.b16 %v1297, %v1289
    %v1970 = vpack.c.b16 %v1298, %v1290
    %v1971 = vpack.c.b16 %v1299, %v1291
    %v1972 = vpack.c.b16 %v1300, %v1292
    %v1973 = vpack.c.b16 %v1309, %v1301
    %v1974 = vpack.c.b16 %v1310, %v1302
    %v1975 = vpack.c.b16 %v1311, %v1303
    %v1976 = vpack.c.b16 %v1312, %v1304
    %v1977 = vpack.c.b16 %v1313, %v1305
    %v1978 = vpack.c.b16 %v1314, %v1306
    %v1979 = vpack.c.b16 %v1315, %v1307
    %v1980 = vpack.c.b16 %v1316, %v1308
    %v1981 = vpack.c.b16 %v1325, %v1317
    %v1982 = vpack.c.b16 %v1326, %v1318
    %v1983 = vpack.c.b16 %v1327, %v1319
    %v1984 = vpack.c.b16 %v1328, %v1320
    %v1985 = vpack.c.b16 %v1329, %v1321
    %v1986 = vpack.c.b16 %v1330, %v1322
    %v1987 = vpack.c.b16 %v1331, %v1323
    %v1988 = vpack.c.b16 %v1332, %v1324
    %v1989 = vpack.c.b16 %v1341, %v1333
    %v1990 = vpack.c.b16 %v1342, %v1334
    %v1991 = vpack.c.b16 %v1343, %v1335
    %v1992 = vpack.c.b16 %v1344, %v1336
    %v1993 = vpack.c.b16 %v1345, %v1337
    %v1994 = vpack.c.b16 %v1346, %v1338
    %v1995 = vpack.c.b16 %v1347, %v1339
    %v1996 = vpack.c.b16 %v1348, %v1340
    %v1997 = vpack.c.b16 %v1357, %v1349
    %v1998 = vpack.c.b16 %v1358, %v1350
    %v1999 = vpack.c.b16 %v1359, %v1351
    %v2000 = vpack.c.b16 %v1360, %v1352
    %v2001 = vpack.c.b16 %v1361, %v1353
    %v2002 = vpack.c.b16 %v1362, %v1354
    %v2003 = vpack.c.b16 %v1363, %v1355
    %v2004 = vpack.c.b16 %v1364, %v1356
    %v2005 = vpack.c.b16 %v1373, %v1365
    %v2006 = vpack.c.b16 %v1374, %v1366
    %v2007 = vpack.c.b16 %v1375, %v1367
    %v2008 = vpack.c.b16 %v1376, %v1368
    %v2009 = vpack.c.b16 %v1377, %v1369
    %v2010 = vpack.c.b16 %v1378, %v1370
    %v2011 = vpack.c.b16 %v1379, %v1371
    %v2012 = vpack.c.b16 %v1380, %v1372
    %v2013 = vpack.c.b16 %v1389, %v1381
    %v2014 = vpack.c.b16 %v1390, %v1382
    %v2015 = vpack.c.b16 %v1391, %v1383
    %v2016 = vpack.c.b16 %v1392, %v1384
    %v2017 = vpack.c.b16 %v1393, %v1385
    %v2018 = vpack.c.b16 %v1394, %v1386
    %v2019 = vpack.c.b16 %v1395, %v1387
    %v2020 = vpack.c.b16 %v1396, %v1388
    %v2021 = vpack.c.b16 %v1405, %v1397
    %v2022 = vpack.c.b16 %v1406, %v1398
    %v2023 = vpack.c.b16 %v1407, %v1399
    %v2024 = vpack.c.b16 %v1408, %v1400
    %v2025 = vpack.c.b16 %v1409, %v1401
    %v2026 = vpack.c.b16 %v1410, %v1402
    %v2027 = vpack.c.b16 %v1411, %v1403
    %v2028 = vpack.c.b16 %v1412, %v1404
    %v2029 = vpack.c.b16 %v1421, %v1413
    %v2030 = vpack.c.b16 %v1422, %v1414
    %v2031 = vpack.c.b16 %v1423, %v1415
    %v2032 = vpack.c.b16 %v1424, %v1416
    %v2033 = vpack.c.b16 %v1425, %v1417
    %v2034 = vpack.c.b16 %v1426, %v1418
    %v2035 = vpack.c.b16 %v1427, %v1419
    %v2036 = vpack.c.b16 %v1428, %v1420
    %v2037 = vpack.c.b16 %v1437, %v1429
    %v2038 = vpack.c.b16 %v1438, %v1430
    %v2039 = vpack.c.b16 %v1439, %v1431
    %v2040 = vpack.c.b16 %v1440, %v1432
    %v2041 = vpack.c.b16 %v1441, %v1433
    %v2042 = vpack.c.b16 %v1442, %v1434
    %v2043 = vpack.c.b16 %v1443, %v1435
    %v2044 = vpack.c.b16 %v1444, %v1436
    %v2045 = vpack.c.b16 %v1453, %v1445
    %v2046 = vpack.c.b16 %v1454, %v1446
    %v2047 = vpack.c.b16 %v1455, %v1447
    %v2048 = vpack.c.b16 %v1456, %v1448
    %v2049 = vpack.c.b16 %v1457, %v1449
    %v2050 = vpack.c.b16 %v1458, %v1450
    %v2051 = vpack.c.b16 %v1459, %v1451
    %v2052 = vpack.c.b16 %v1460, %v1452
    %v2053 = vpack.c.b16 %v1469, %v1461
    %v2054 = vpack.c.b16 %v1470, %v1462
    %v2055 = vpack.c.b16 %v1471, %v1463
    %v2056 = vpack.c.b16 %v1472, %v1464
    %v2057 = vpack.c.b16 %v1473, %v1465
    %v2058 = vpack.c.b16 %v1474, %v1466
    %v2059 = vpack.c.b16 %v1475, %v1467
    %v2060 = vpack.c.b16 %v1476, %v1468
    %v2061 = vpack.c.b16 %v1485, %v1477
    %v2062 = vpack.c.b16 %v1486, %v1478
    %v2063 = vpack.c.b16 %v1487, %v1479
    %v2064 = vpack.c.b16 %v1488, %v1480
    %v2065 = vpack.c.b16 %v1489, %v1481
    %v2066 = vpack.c.b16 %v1490, %v1482
    %v2067 = vpack.c.b16 %v1491, %v1483
    %v2068 = vpack.c.b16 %v1492, %v1484
    %v2069 = vpack.c.b16 %v1501, %v1493
    %v2070 = vpack.c.b16 %v1502, %v1494
    %v2071 = vpack.c.b16 %v1503, %v1495
    %v2072 = vpack.c.b16 %v1504, %v1496
    %v2073 = vpack.c.b16 %v1505, %v1497
    %v2074 = vpack.c.b16 %v1506, %v1498
    %v2075 = vpack.c.b16 %v1507, %v1499
    %v2076 = vpack.c.b16 %v1508, %v1500
    %v2077 = vpack.c.b16 %v1517, %v1509
    %v2078 = vpack.c.b16 %v1518, %v1510
    %v2079 = vpack.c.b16 %v1519, %v1511
    %v2080 = vpack.c.b16 %v1520, %v1512
    %v2081 = vpack.c.b16 %v1521, %v1513
    %v2082 = vpack.c.b16 %v1522, %v1514
    %v2083 = vpack.c.b16 %v1523, %v1515
    %v2084 = vpack.c.b16 %v1524, %v1516
    %v2085 = vpack.c.b16 %v1533, %v1525
    %v2086 = vpack.c.b16 %v1534, %v1526
    %v2087 = vpack.c.b16 %v1535, %v1527
    %v2088 = vpack.c.b16 %v1536, %v1528
    %v2089 = vpack.c.b16 %v1537, %v1529
    %v2090 = vpack.c.b16 %v1538, %v1530
    %v2091 = vpack.c.b16 %v1539, %v1531
    %v2092 = vpack.c.b16 %v1540, %v1532
    %v2093 = vpack.c.b16 %v1549, %v1541
    %v2094 = vpack.c.b16 %v1550, %v1542
    %v2095 = vpack.c.b16 %v1551, %v1543
    %v2096 = vpack.c.b16 %v1552, %v1544
    %v2097 = vpack.c.b16 %v1553, %v1545
    %v2098 = vpack.c.b16 %v1554, %v1546
    %v2099 = vpack.c.b16 %v1555, %v1547
    %v2100 = vpack.c.b16 %v1556, %v1548
    %v2101 = vpack.c.b16 %v1565, %v1557
    %v2102 = vpack.c.b16 %v1566, %v1558
    %v2103 = vpack.c.b16 %v1567, %v1559
    %v2104 = vpack.c.b16 %v1568, %v1560
    %v2105 = vpack.c.b16 %v1569, %v1561
    %v2106 = vpack.c.b16 %v1570, %v1562
    %v2107 = vpack.c.b16 %v1571, %v1563
    %v2108 = vpack.c.b16 %v1572, %v1564
    %v2109 = vpack.c.b16 %v1581, %v1573
    %v2110 = vpack.c.b16 %v1582, %v1574
    %v2111 = vpack.c.b16 %v1583, %v1575
    %v2112 = vpack.c.b16 %v1584, %v1576
    %v2113 = vpack.c.b16 %v1585, %v1577
    %v2114 = vpack.c.b16 %v1586, %v1578
    %v2115 = vpack.c.b16 %v1587, %v1579
    %v2116 = vpack.c.b16 %v1588, %v1580
    %v2117 = vpack.c.b16 %v1597, %v1589
    %v2118 = vpack.c.b16 %v1598, %v1590
    %v2119 = vpack.c.b16 %v1599, %v1591
    %v2120 = vpack.c.b16 %v1600, %v1592
    %v2121 = vpack.c.b16 %v1601, %v1593
    %v2122 = vpack.c.b16 %v1602, %v1594
    %v2123 = vpack.c.b16 %v1603, %v1595
    %v2124 = vpack.c.b16 %v1604, %v1596
    %v2125 = vpack.c.b16 %v1613, %v1605
    %v2126 = vpack.c.b16 %v1614, %v1606
    %v2127 = vpack.c.b16 %v1615, %v1607
    %v2128 = vpack.c.b16 %v1616, %v1608
    %v2129 = vpack.c.b16 %v1617, %v1609
    %v2130 = vpack.c.b16 %v1618, %v1610
    %v2131 = vpack.c.b16 %v1619, %v1611
    %v2132 = vpack.c.b16 %v1620, %v1612
    %v2133 = vpack.c.b16 %v1629, %v1621
    %v2134 = vpack.c.b16 %v1630, %v1622
    %v2135 = vpack.c.b16 %v1631, %v1623
    %v2136 = vpack.c.b16 %v1632, %v1624
    %v2137 = vpack.c.b16 %v1633, %v1625
    %v2138 = vpack.c.b16 %v1634, %v1626
    %v2139 = vpack.c.b16 %v1635, %v1627
    %v2140 = vpack.c.b16 %v1636, %v1628
    %v2141 = vpack.c.b16 %v1645, %v1637
    %v2142 = vpack.c.b16 %v1646, %v1638
    %v2143 = vpack.c.b16 %v1647, %v1639
    %v2144 = vpack.c.b16 %v1648, %v1640
    %v2145 = vpack.c.b16 %v1649, %v1641
    %v2146 = vpack.c.b16 %v1650, %v1642
    %v2147 = vpack.c.b16 %v1651, %v1643
    %v2148 = vpack.c.b16 %v1652, %v1644
    %v2149 = vpack.c.b16 %v1661, %v1653
    %v2150 = vpack.c.b16 %v1662, %v1654
    %v2151 = vpack.c.b16 %v1663, %v1655
    %v2152 = vpack.c.b16 %v1664, %v1656
    %v2153 = vpack.c.b16 %v1665, %v1657
    %v2154 = vpack.c.b16 %v1666, %v1658
    %v2155 = vpack.c.b16 %v1667, %v1659
    %v2156 = vpack.c.b16 %v1668, %v1660
    %v2157 = vpack.c.b16 %v1677, %v1669
    %v2158 = vpack.c.b16 %v1678, %v1670
    %v2159 = vpack.c.b16 %v1679, %v1671
    %v2160 = vpack.c.b16 %v1680, %v1672
    %v2161 = vpack.c.b16 %v1681, %v1673
    %v2162 = vpack.c.b16 %v1682, %v1674
    %v2163 = vpack.c.b16 %v1683, %v1675
    %v2164 = vpack.c.b16 %v1684, %v1676
    %v2165 = vpack.c.b16 %v1693, %v1685
    %v2166 = vpack.c.b16 %v1694, %v1686
    %v2167 = vpack.c.b16 %v1695, %v1687
    %v2168 = vpack.c.b16 %v1696, %v1688
    %v2169 = vpack.c.b16 %v1697, %v1689
    %v2170 = vpack.c.b16 %v1698, %v1690
    %v2171 = vpack.c.b16 %v1699, %v1691
    %v2172 = vpack.c.b16 %v1700, %v1692
    %v2173 = vpack.c.b16 %v1709, %v1701
    %v2174 = vpack.c.b16 %v1710, %v1702
    %v2175 = vpack.c.b16 %v1711, %v1703
    %v2176 = vpack.c.b16 %v1712, %v1704
    %v2177 = vpack.c.b16 %v1713, %v1705
    %v2178 = vpack.c.b16 %v1714, %v1706
    %v2179 = vpack.c.b16 %v1715, %v1707
    %v2180 = vpack.c.b16 %v1716, %v1708
    %v2181 = vpack.c.b16 %v1725, %v1717
    %v2182 = vpack.c.b16 %v1726, %v1718
    %v2183 = vpack.c.b16 %v1727, %v1719
    %v2184 = vpack.c.b16 %v1728, %v1720
    %v2185 = vpack.c.b16 %v1729, %v1721
    %v2186 = vpack.c.b16 %v1730, %v1722
    %v2187 = vpack.c.b16 %v1731, %v1723
    %v2188 = vpack.c.b16 %v1732, %v1724
    %v2189 = vpack.c.b16 %v1741, %v1733
    %v2190 = vpack.c.b16 %v1742, %v1734
    %v2191 = vpack.c.b16 %v1743, %v1735
    %v2192 = vpack.c.b16 %v1744, %v1736
    %v2193 = vpack.c.b16 %v1745, %v1737
    %v2194 = vpack.c.b16 %v1746, %v1738
    %v2195 = vpack.c.b16 %v1747, %v1739
    %v2196 = vpack.c.b16 %v1748, %v1740
    %v2197 = vpack.c.b16 %v1757, %v1749
    %v2198 = vpack.c.b16 %v1758, %v1750
    %v2199 = vpack.c.b16 %v1759, %v1751
    %v2200 = vpack.c.b16 %v1760, %v1752
    %v2201 = vpack.c.b16 %v1761, %v1753
    %v2202 = vpack.c.b16 %v1762, %v1754
    %v2203 = vpack.c.b16 %v1763, %v1755
    %v2204 = vpack.c.b16 %v1764, %v1756
    %v2205 = vpack.c.b16 %v1773, %v1765
    %v2206 = vpack.c.b16 %v1774, %v1766
    %v2207 = vpack.c.b16 %v1775, %v1767
    %v2208 = vpack.c.b16 %v1776, %v1768
    %v2209 = vpack.c.b16 %v1777, %v1769
    %v2210 = vpack.c.b16 %v1778, %v1770
    %v2211 = vpack.c.b16 %v1779, %v1771
    %v2212 = vpack.c.b16 %v1780, %v1772
    %v2213 = vpack.c.b16 %v1789, %v1781
    %v2214 = vpack.c.b16 %v1790, %v1782
    %v2215 = vpack.c.b16 %v1791, %v1783
    %v2216 = vpack.c.b16 %v1792, %v1784
    %v2217 = vpack.c.b16 %v1793, %v1785
    %v2218 = vpack.c.b16 %v1794, %v1786
    %v2219 = vpack.c.b16 %v1795, %v1787
    %v2220 = vpack.c.b16 %v1796, %v1788
    %v2221 = vpack.c.b16 %v1805, %v1797
    %v2222 = vpack.c.b16 %v1806, %v1798
    %v2223 = vpack.c.b16 %v1807, %v1799
    %v2224 = vpack.c.b16 %v1808, %v1800
    %v2225 = vpack.c.b16 %v1809, %v1801
    %v2226 = vpack.c.b16 %v1810, %v1802
    %v2227 = vpack.c.b16 %v1811, %v1803
    %v2228 = vpack.c.b16 %v1812, %v1804
    %v2229 = vpack.c.b16 %v1821, %v1813
    %v2230 = vpack.c.b16 %v1822, %v1814
    %v2231 = vpack.c.b16 %v1823, %v1815
    %v2232 = vpack.c.b16 %v1824, %v1816
    %v2233 = vpack.c.b16 %v1825, %v1817
    %v2234 = vpack.c.b16 %v1826, %v1818
    %v2235 = vpack.c.b16 %v1827, %v1819
    %v2236 = vpack.c.b16 %v1828, %v1820
    %v2237 = vpack.c.b16 %v1837, %v1829
    %v2238 = vpack.c.b16 %v1838, %v1830
    %v2239 = vpack.c.b16 %v1839, %v1831
    %v2240 = vpack.c.b16 %v1840, %v1832
    %v2241 = vpack.c.b16 %v1841, %v1833
    %v2242 = vpack.c.b16 %v1842, %v1834
    %v2243 = vpack.c.b16 %v1843, %v1835
    %v2244 = vpack.c.b16 %v1844, %v1836
    %v2245 = vpack.c.b16 %v1853, %v1845
    %v2246 = vpack.c.b16 %v1854, %v1846
    %v2247 = vpack.c.b16 %v1855, %v1847
    %v2248 = vpack.c.b16 %v1856, %v1848
    %v2249 = vpack.c.b16 %v1857, %v1849
    %v2250 = vpack.c.b16 %v1858, %v1850
    %v2251 = vpack.c.b16 %v1859, %v1851
    %v2252 = vpack.c.b16 %v1860, %v1852
    %vm2645 = vcmask 130048
    %v2647 = vsel %vm2645, %v678, 0
    %2649 = vmatpush.bf16.msra.mxu0 %v1917
    %2650 = vmatpush.bf16.msra.mxu0 %v1909
    %2651 = vmatpush.bf16.msra.mxu0 %v1901
    %2652 = vmatpush.bf16.msra.mxu0 %v1893
    %2653 = vmatpush.bf16.msra.mxu0 %v1885
    %2654 = vmatpush.bf16.msra.mxu0 %v1877
    %2655 = vmatpush.bf16.msra.mxu0 %v1869
    %2656 = vmatpush.bf16.msra.mxu0 %v1861
    %2657 = vmatmul.bf16.gmra.mxu0 %v672
    %v2658 = vpop.f32.mrf.mxu0
    %v2659 = vadd.f32 0.0, %v2658
    %v2660 = vpop.f32.mrf.mxu0
    %2661 = vdwg.mxu0
    %2662 = vmatpush.bf16.msra.mxu0 %v1981
    %2663 = vmatpush.bf16.msra.mxu0 %v1973
    %2664 = vmatpush.bf16.msra.mxu0 %v1965
    %2665 = vmatpush.bf16.msra.mxu0 %v1957
    %2666 = vmatpush.bf16.msra.mxu0 %v1949
    %2667 = vmatpush.bf16.msra.mxu0 %v1941
    %2668 = vmatpush.bf16.msra.mxu0 %v1933
    %2669 = vmatpush.bf16.msra.mxu0 %v1925
    %2670 = vmatmul.bf16.gmra.mxu0 %v673
    %v2671 = vpop.f32.mrf.mxu0
    %v2672 = vadd.f32 %v2659, %v2671
    %v2673 = vpop.f32.mrf.mxu0
    %2674 = vdwg.mxu0
    %2675 = vmatpush.bf16.msra.mxu0 %v2045
    %2676 = vmatpush.bf16.msra.mxu0 %v2037
    %2677 = vmatpush.bf16.msra.mxu0 %v2029
    %2678 = vmatpush.bf16.msra.mxu0 %v2021
    %2679 = vmatpush.bf16.msra.mxu0 %v2013
    %2680 = vmatpush.bf16.msra.mxu0 %v2005
    %2681 = vmatpush.bf16.msra.mxu0 %v1997
    %2682 = vmatpush.bf16.msra.mxu0 %v1989
    %2683 = vmatmul.bf16.gmra.mxu0 %v674
    %v2684 = vpop.f32.mrf.mxu0
    %v2685 = vadd.f32 %v2672, %v2684
    %v2686 = vpop.f32.mrf.mxu0
    %2687 = vdwg.mxu0
    %2688 = vmatpush.bf16.msra.mxu0 %v2109
    %2689 = vmatpush.bf16.msra.mxu0 %v2101
    %2690 = vmatpush.bf16.msra.mxu0 %v2093
    %2691 = vmatpush.bf16.msra.mxu0 %v2085
    %2692 = vmatpush.bf16.msra.mxu0 %v2077
    %2693 = vmatpush.bf16.msra.mxu0 %v2069
    %2694 = vmatpush.bf16.msra.mxu0 %v2061
    %2695 = vmatpush.bf16.msra.mxu0 %v2053
    %2696 = vmatmul.bf16.gmra.mxu0 %v675
    %v2697 = vpop.f32.mrf.mxu0
    %v2698 = vadd.f32 %v2685, %v2697
    %v2699 = vpop.f32.mrf.mxu0
    %2700 = vdwg.mxu0
    %2701 = vmatpush.bf16.msra.mxu0 %v2173
    %2702 = vmatpush.bf16.msra.mxu0 %v2165
    %2703 = vmatpush.bf16.msra.mxu0 %v2157
    %2704 = vmatpush.bf16.msra.mxu0 %v2149
    %2705 = vmatpush.bf16.msra.mxu0 %v2141
    %2706 = vmatpush.bf16.msra.mxu0 %v2133
    %2707 = vmatpush.bf16.msra.mxu0 %v2125
    %2708 = vmatpush.bf16.msra.mxu0 %v2117
    %2709 = vmatmul.bf16.gmra.mxu0 %v676
    %v2710 = vpop.f32.mrf.mxu0
    %v2711 = vadd.f32 %v2698, %v2710
    %v2712 = vpop.f32.mrf.mxu0
    %2713 = vdwg.mxu0
    %2714 = vmatpush.bf16.msra.mxu0 %v2237
    %2715 = vmatpush.bf16.msra.mxu0 %v2229
    %2716 = vmatpush.bf16.msra.mxu0 %v2221
    %2717 = vmatpush.bf16.msra.mxu0 %v2213
    %2718 = vmatpush.bf16.msra.mxu0 %v2205
    %2719 = vmatpush.bf16.msra.mxu0 %v2197
    %2720 = vmatpush.bf16.msra.mxu0 %v2189
    %2721 = vmatpush.bf16.msra.mxu0 %v2181
    %2722 = vmatmul.bf16.gmra.mxu0 %v677
    %v2723 = vpop.f32.mrf.mxu0
    %v2724 = vadd.f32 %v2711, %v2723
    %v2725 = vpop.f32.mrf.mxu0
    %2726 = vdwg.mxu0
    %2727 = vmatpush.bf16.msra.mxu0 0
    %2728 = vmatpush.bf16.msra.mxu0 0
    %2729 = vmatpush.bf16.msra.mxu0 0
    %2730 = vmatpush.bf16.msra.mxu0 0
    %2731 = vmatpush.bf16.msra.mxu0 0
    %2732 = vmatpush.bf16.msra.mxu0 0
    %2733 = vmatpush.bf16.msra.mxu0 0
    %2734 = vmatpush.bf16.msra.mxu0 %v2245
    %2735 = vmatmul.bf16.gmra.mxu0 %v2647
    %v2736 = vpop.f32.mrf.mxu0
    %v2737 = vadd.f32 %v2724, %v2736
    %v2738 = vpop.f32.mrf.mxu0
    %2739 = vdwg.mxu0
    %2740 = vmatpush.bf16.msra.mxu0 %v1918
    %2741 = vmatpush.bf16.msra.mxu0 %v1910
    %2742 = vmatpush.bf16.msra.mxu0 %v1902
    %2743 = vmatpush.bf16.msra.mxu0 %v1894
    %2744 = vmatpush.bf16.msra.mxu0 %v1886
    %2745 = vmatpush.bf16.msra.mxu0 %v1878
    %2746 = vmatpush.bf16.msra.mxu0 %v1870
    %2747 = vmatpush.bf16.msra.mxu0 %v1862
    %2748 = vmatmul.bf16.gmra.mxu0 %v672
    %v2749 = vpop.f32.mrf.mxu0
    %v2750 = vadd.f32 0.0, %v2749
    %v2751 = vpop.f32.mrf.mxu0
    %2752 = vdwg.mxu0
    %2753 = vmatpush.bf16.msra.mxu0 %v1982
    %2754 = vmatpush.bf16.msra.mxu0 %v1974
    %2755 = vmatpush.bf16.msra.mxu0 %v1966
    %2756 = vmatpush.bf16.msra.mxu0 %v1958
    %2757 = vmatpush.bf16.msra.mxu0 %v1950
    %2758 = vmatpush.bf16.msra.mxu0 %v1942
    %2759 = vmatpush.bf16.msra.mxu0 %v1934
    %2760 = vmatpush.bf16.msra.mxu0 %v1926
    %2761 = vmatmul.bf16.gmra.mxu0 %v673
    %v2762 = vpop.f32.mrf.mxu0
    %v2763 = vadd.f32 %v2750, %v2762
    %v2764 = vpop.f32.mrf.mxu0
    %2765 = vdwg.mxu0
    %2766 = vmatpush.bf16.msra.mxu0 %v2046
    %2767 = vmatpush.bf16.msra.mxu0 %v2038
    %2768 = vmatpush.bf16.msra.mxu0 %v2030
    %2769 = vmatpush.bf16.msra.mxu0 %v2022
    %2770 = vmatpush.bf16.msra.mxu0 %v2014
    %2771 = vmatpush.bf16.msra.mxu0 %v2006
    %2772 = vmatpush.bf16.msra.mxu0 %v1998
    %2773 = vmatpush.bf16.msra.mxu0 %v1990
    %2774 = vmatmul.bf16.gmra.mxu0 %v674
    %v2775 = vpop.f32.mrf.mxu0
    %v2776 = vadd.f32 %v2763, %v2775
    %v2777 = vpop.f32.mrf.mxu0
    %2778 = vdwg.mxu0
    %2779 = vmatpush.bf16.msra.mxu0 %v2110
    %2780 = vmatpush.bf16.msra.mxu0 %v2102
    %2781 = vmatpush.bf16.msra.mxu0 %v2094
    %2782 = vmatpush.bf16.msra.mxu0 %v2086
    %2783 = vmatpush.bf16.msra.mxu0 %v2078
    %2784 = vmatpush.bf16.msra.mxu0 %v2070
    %2785 = vmatpush.bf16.msra.mxu0 %v2062
    %2786 = vmatpush.bf16.msra.mxu0 %v2054
    %2787 = vmatmul.bf16.gmra.mxu0 %v675
    %v2788 = vpop.f32.mrf.mxu0
    %v2789 = vadd.f32 %v2776, %v2788
    %v2790 = vpop.f32.mrf.mxu0
    %2791 = vdwg.mxu0
    %2792 = vmatpush.bf16.msra.mxu0 %v2174
    %2793 = vmatpush.bf16.msra.mxu0 %v2166
    %2794 = vmatpush.bf16.msra.mxu0 %v2158
    %2795 = vmatpush.bf16.msra.mxu0 %v2150
    %2796 = vmatpush.bf16.msra.mxu0 %v2142
    %2797 = vmatpush.bf16.msra.mxu0 %v2134
    %2798 = vmatpush.bf16.msra.mxu0 %v2126
    %2799 = vmatpush.bf16.msra.mxu0 %v2118
    %2800 = vmatmul.bf16.gmra.mxu0 %v676
    %v2801 = vpop.f32.mrf.mxu0
    %v2802 = vadd.f32 %v2789, %v2801
    %v2803 = vpop.f32.mrf.mxu0
    %2804 = vdwg.mxu0
    %2805 = vmatpush.bf16.msra.mxu0 %v2238
    %2806 = vmatpush.bf16.msra.mxu0 %v2230
    %2807 = vmatpush.bf16.msra.mxu0 %v2222
    %2808 = vmatpush.bf16.msra.mxu0 %v2214
    %2809 = vmatpush.bf16.msra.mxu0 %v2206
    %2810 = vmatpush.bf16.msra.mxu0 %v2198
    %2811 = vmatpush.bf16.msra.mxu0 %v2190
    %2812 = vmatpush.bf16.msra.mxu0 %v2182
    %2813 = vmatmul.bf16.gmra.mxu0 %v677
    %v2814 = vpop.f32.mrf.mxu0
    %v2815 = vadd.f32 %v2802, %v2814
    %v2816 = vpop.f32.mrf.mxu0
    %2817 = vdwg.mxu0
    %2818 = vmatpush.bf16.msra.mxu0 0
    %2819 = vmatpush.bf16.msra.mxu0 0
    %2820 = vmatpush.bf16.msra.mxu0 0
    %2821 = vmatpush.bf16.msra.mxu0 0
    %2822 = vmatpush.bf16.msra.mxu0 0
    %2823 = vmatpush.bf16.msra.mxu0 0
    %2824 = vmatpush.bf16.msra.mxu0 0
    %2825 = vmatpush.bf16.msra.mxu0 %v2246
    %2826 = vmatmul.bf16.gmra.mxu0 %v2647
    %v2827 = vpop.f32.mrf.mxu0
    %v2828 = vadd.f32 %v2815, %v2827
    %v2829 = vpop.f32.mrf.mxu0
    %2830 = vdwg.mxu0
    %2831 = vmatpush.bf16.msra.mxu0 %v1919
    %2832 = vmatpush.bf16.msra.mxu0 %v1911
    %2833 = vmatpush.bf16.msra.mxu0 %v1903
    %2834 = vmatpush.bf16.msra.mxu0 %v1895
    %2835 = vmatpush.bf16.msra.mxu0 %v1887
    %2836 = vmatpush.bf16.msra.mxu0 %v1879
    %2837 = vmatpush.bf16.msra.mxu0 %v1871
    %2838 = vmatpush.bf16.msra.mxu0 %v1863
    %2839 = vmatmul.bf16.gmra.mxu0 %v672
    %v2840 = vpop.f32.mrf.mxu0
    %v2841 = vadd.f32 0.0, %v2840
    %v2842 = vpop.f32.mrf.mxu0
    %2843 = vdwg.mxu0
    %2844 = vmatpush.bf16.msra.mxu0 %v1983
    %2845 = vmatpush.bf16.msra.mxu0 %v1975
    %2846 = vmatpush.bf16.msra.mxu0 %v1967
    %2847 = vmatpush.bf16.msra.mxu0 %v1959
    %2848 = vmatpush.bf16.msra.mxu0 %v1951
    %2849 = vmatpush.bf16.msra.mxu0 %v1943
    %2850 = vmatpush.bf16.msra.mxu0 %v1935
    %2851 = vmatpush.bf16.msra.mxu0 %v1927
    %2852 = vmatmul.bf16.gmra.mxu0 %v673
    %v2853 = vpop.f32.mrf.mxu0
    %v2854 = vadd.f32 %v2841, %v2853
    %v2855 = vpop.f32.mrf.mxu0
    %2856 = vdwg.mxu0
    %2857 = vmatpush.bf16.msra.mxu0 %v2047
    %2858 = vmatpush.bf16.msra.mxu0 %v2039
    %2859 = vmatpush.bf16.msra.mxu0 %v2031
    %2860 = vmatpush.bf16.msra.mxu0 %v2023
    %2861 = vmatpush.bf16.msra.mxu0 %v2015
    %2862 = vmatpush.bf16.msra.mxu0 %v2007
    %2863 = vmatpush.bf16.msra.mxu0 %v1999
    %2864 = vmatpush.bf16.msra.mxu0 %v1991
    %2865 = vmatmul.bf16.gmra.mxu0 %v674
    %v2866 = vpop.f32.mrf.mxu0
    %v2867 = vadd.f32 %v2854, %v2866
    %v2868 = vpop.f32.mrf.mxu0
    %2869 = vdwg.mxu0
    %2870 = vmatpush.bf16.msra.mxu0 %v2111
    %2871 = vmatpush.bf16.msra.mxu0 %v2103
    %2872 = vmatpush.bf16.msra.mxu0 %v2095
    %2873 = vmatpush.bf16.msra.mxu0 %v2087
    %2874 = vmatpush.bf16.msra.mxu0 %v2079
    %2875 = vmatpush.bf16.msra.mxu0 %v2071
    %2876 = vmatpush.bf16.msra.mxu0 %v2063
    %2877 = vmatpush.bf16.msra.mxu0 %v2055
    %2878 = vmatmul.bf16.gmra.mxu0 %v675
    %v2879 = vpop.f32.mrf.mxu0
    %v2880 = vadd.f32 %v2867, %v2879
    %v2881 = vpop.f32.mrf.mxu0
    %2882 = vdwg.mxu0
    %2883 = vmatpush.bf16.msra.mxu0 %v2175
    %2884 = vmatpush.bf16.msra.mxu0 %v2167
    %2885 = vmatpush.bf16.msra.mxu0 %v2159
    %2886 = vmatpush.bf16.msra.mxu0 %v2151
    %2887 = vmatpush.bf16.msra.mxu0 %v2143
    %2888 = vmatpush.bf16.msra.mxu0 %v2135
    %2889 = vmatpush.bf16.msra.mxu0 %v2127
    %2890 = vmatpush.bf16.msra.mxu0 %v2119
    %2891 = vmatmul.bf16.gmra.mxu0 %v676
    %v2892 = vpop.f32.mrf.mxu0
    %v2893 = vadd.f32 %v2880, %v2892
    %v2894 = vpop.f32.mrf.mxu0
    %2895 = vdwg.mxu0
    %2896 = vmatpush.bf16.msra.mxu0 %v2239
    %2897 = vmatpush.bf16.msra.mxu0 %v2231
    %2898 = vmatpush.bf16.msra.mxu0 %v2223
    %2899 = vmatpush.bf16.msra.mxu0 %v2215
    %2900 = vmatpush.bf16.msra.mxu0 %v2207
    %2901 = vmatpush.bf16.msra.mxu0 %v2199
    %2902 = vmatpush.bf16.msra.mxu0 %v2191
    %2903 = vmatpush.bf16.msra.mxu0 %v2183
    %2904 = vmatmul.bf16.gmra.mxu0 %v677
    %v2905 = vpop.f32.mrf.mxu0
    %v2906 = vadd.f32 %v2893, %v2905
    %v2907 = vpop.f32.mrf.mxu0
    %2908 = vdwg.mxu0
    %2909 = vmatpush.bf16.msra.mxu0 0
    %2910 = vmatpush.bf16.msra.mxu0 0
    %2911 = vmatpush.bf16.msra.mxu0 0
    %2912 = vmatpush.bf16.msra.mxu0 0
    %2913 = vmatpush.bf16.msra.mxu0 0
    %2914 = vmatpush.bf16.msra.mxu0 0
    %2915 = vmatpush.bf16.msra.mxu0 0
    %2916 = vmatpush.bf16.msra.mxu0 %v2247
    %2917 = vmatmul.bf16.gmra.mxu0 %v2647
    %v2918 = vpop.f32.mrf.mxu0
    %v2919 = vadd.f32 %v2906, %v2918
    %v2920 = vpop.f32.mrf.mxu0
    %2921 = vdwg.mxu0
    %2922 = vmatpush.bf16.msra.mxu0 %v1920
    %2923 = vmatpush.bf16.msra.mxu0 %v1912
    %2924 = vmatpush.bf16.msra.mxu0 %v1904
    %2925 = vmatpush.bf16.msra.mxu0 %v1896
    %2926 = vmatpush.bf16.msra.mxu0 %v1888
    %2927 = vmatpush.bf16.msra.mxu0 %v1880
    %2928 = vmatpush.bf16.msra.mxu0 %v1872
    %2929 = vmatpush.bf16.msra.mxu0 %v1864
    %2930 = vmatmul.bf16.gmra.mxu0 %v672
    %v2931 = vpop.f32.mrf.mxu0
    %v2932 = vadd.f32 0.0, %v2931
    %v2933 = vpop.f32.mrf.mxu0
    %2934 = vdwg.mxu0
    %2935 = vmatpush.bf16.msra.mxu0 %v1984
    %2936 = vmatpush.bf16.msra.mxu0 %v1976
    %2937 = vmatpush.bf16.msra.mxu0 %v1968
    %2938 = vmatpush.bf16.msra.mxu0 %v1960
    %2939 = vmatpush.bf16.msra.mxu0 %v1952
    %2940 = vmatpush.bf16.msra.mxu0 %v1944
    %2941 = vmatpush.bf16.msra.mxu0 %v1936
    %2942 = vmatpush.bf16.msra.mxu0 %v1928
    %2943 = vmatmul.bf16.gmra.mxu0 %v673
    %v2944 = vpop.f32.mrf.mxu0
    %v2945 = vadd.f32 %v2932, %v2944
    %v2946 = vpop.f32.mrf.mxu0
    %2947 = vdwg.mxu0
    %2948 = vmatpush.bf16.msra.mxu0 %v2048
    %2949 = vmatpush.bf16.msra.mxu0 %v2040
    %2950 = vmatpush.bf16.msra.mxu0 %v2032
    %2951 = vmatpush.bf16.msra.mxu0 %v2024
    %2952 = vmatpush.bf16.msra.mxu0 %v2016
    %2953 = vmatpush.bf16.msra.mxu0 %v2008
    %2954 = vmatpush.bf16.msra.mxu0 %v2000
    %2955 = vmatpush.bf16.msra.mxu0 %v1992
    %2956 = vmatmul.bf16.gmra.mxu0 %v674
    %v2957 = vpop.f32.mrf.mxu0
    %v2958 = vadd.f32 %v2945, %v2957
    %v2959 = vpop.f32.mrf.mxu0
    %2960 = vdwg.mxu0
    %2961 = vmatpush.bf16.msra.mxu0 %v2112
    %2962 = vmatpush.bf16.msra.mxu0 %v2104
    %2963 = vmatpush.bf16.msra.mxu0 %v2096
    %2964 = vmatpush.bf16.msra.mxu0 %v2088
    %2965 = vmatpush.bf16.msra.mxu0 %v2080
    %2966 = vmatpush.bf16.msra.mxu0 %v2072
    %2967 = vmatpush.bf16.msra.mxu0 %v2064
    %2968 = vmatpush.bf16.msra.mxu0 %v2056
    %2969 = vmatmul.bf16.gmra.mxu0 %v675
    %v2970 = vpop.f32.mrf.mxu0
    %v2971 = vadd.f32 %v2958, %v2970
    %v2972 = vpop.f32.mrf.mxu0
    %2973 = vdwg.mxu0
    %2974 = vmatpush.bf16.msra.mxu0 %v2176
    %2975 = vmatpush.bf16.msra.mxu0 %v2168
    %2976 = vmatpush.bf16.msra.mxu0 %v2160
    %2977 = vmatpush.bf16.msra.mxu0 %v2152
    %2978 = vmatpush.bf16.msra.mxu0 %v2144
    %2979 = vmatpush.bf16.msra.mxu0 %v2136
    %2980 = vmatpush.bf16.msra.mxu0 %v2128
    %2981 = vmatpush.bf16.msra.mxu0 %v2120
    %2982 = vmatmul.bf16.gmra.mxu0 %v676
    %v2983 = vpop.f32.mrf.mxu0
    %v2984 = vadd.f32 %v2971, %v2983
    %v2985 = vpop.f32.mrf.mxu0
    %2986 = vdwg.mxu0
    %2987 = vmatpush.bf16.msra.mxu0 %v2240
    %2988 = vmatpush.bf16.msra.mxu0 %v2232
    %2989 = vmatpush.bf16.msra.mxu0 %v2224
    %2990 = vmatpush.bf16.msra.mxu0 %v2216
    %2991 = vmatpush.bf16.msra.mxu0 %v2208
    %2992 = vmatpush.bf16.msra.mxu0 %v2200
    %2993 = vmatpush.bf16.msra.mxu0 %v2192
    %2994 = vmatpush.bf16.msra.mxu0 %v2184
    %2995 = vmatmul.bf16.gmra.mxu0 %v677
    %v2996 = vpop.f32.mrf.mxu0
    %v2997 = vadd.f32 %v2984, %v2996
    %v2998 = vpop.f32.mrf.mxu0
    %2999 = vdwg.mxu0
    %3000 = vmatpush.bf16.msra.mxu0 0
    %3001 = vmatpush.bf16.msra.mxu0 0
    %3002 = vmatpush.bf16.msra.mxu0 0
    %3003 = vmatpush.bf16.msra.mxu0 0
    %3004 = vmatpush.bf16.msra.mxu0 0
    %3005 = vmatpush.bf16.msra.mxu0 0
    %3006 = vmatpush.bf16.msra.mxu0 0
    %3007 = vmatpush.bf16.msra.mxu0 %v2248
    %3008 = vmatmul.bf16.gmra.mxu0 %v2647
    %v3009 = vpop.f32.mrf.mxu0
    %v3010 = vadd.f32 %v2997, %v3009
    %v3011 = vpop.f32.mrf.mxu0
    %3012 = vdwg.mxu0
    %3013 = vmatpush.bf16.msra.mxu0 %v1921
    %3014 = vmatpush.bf16.msra.mxu0 %v1913
    %3015 = vmatpush.bf16.msra.mxu0 %v1905
    %3016 = vmatpush.bf16.msra.mxu0 %v1897
    %3017 = vmatpush.bf16.msra.mxu0 %v1889
    %3018 = vmatpush.bf16.msra.mxu0 %v1881
    %3019 = vmatpush.bf16.msra.mxu0 %v1873
    %3020 = vmatpush.bf16.msra.mxu0 %v1865
    %3021 = vmatmul.bf16.gmra.mxu0 %v672
    %v3022 = vpop.f32.mrf.mxu0
    %v3023 = vadd.f32 0.0, %v3022
    %v3024 = vpop.f32.mrf.mxu0
    %3025 = vdwg.mxu0
    %3026 = vmatpush.bf16.msra.mxu0 %v1985
    %3027 = vmatpush.bf16.msra.mxu0 %v1977
    %3028 = vmatpush.bf16.msra.mxu0 %v1969
    %3029 = vmatpush.bf16.msra.mxu0 %v1961
    %3030 = vmatpush.bf16.msra.mxu0 %v1953
    %3031 = vmatpush.bf16.msra.mxu0 %v1945
    %3032 = vmatpush.bf16.msra.mxu0 %v1937
    %3033 = vmatpush.bf16.msra.mxu0 %v1929
    %3034 = vmatmul.bf16.gmra.mxu0 %v673
    %v3035 = vpop.f32.mrf.mxu0
    %v3036 = vadd.f32 %v3023, %v3035
    %v3037 = vpop.f32.mrf.mxu0
    %3038 = vdwg.mxu0
    %3039 = vmatpush.bf16.msra.mxu0 %v2049
    %3040 = vmatpush.bf16.msra.mxu0 %v2041
    %3041 = vmatpush.bf16.msra.mxu0 %v2033
    %3042 = vmatpush.bf16.msra.mxu0 %v2025
    %3043 = vmatpush.bf16.msra.mxu0 %v2017
    %3044 = vmatpush.bf16.msra.mxu0 %v2009
    %3045 = vmatpush.bf16.msra.mxu0 %v2001
    %3046 = vmatpush.bf16.msra.mxu0 %v1993
    %3047 = vmatmul.bf16.gmra.mxu0 %v674
    %v3048 = vpop.f32.mrf.mxu0
    %v3049 = vadd.f32 %v3036, %v3048
    %v3050 = vpop.f32.mrf.mxu0
    %3051 = vdwg.mxu0
    %3052 = vmatpush.bf16.msra.mxu0 %v2113
    %3053 = vmatpush.bf16.msra.mxu0 %v2105
    %3054 = vmatpush.bf16.msra.mxu0 %v2097
    %3055 = vmatpush.bf16.msra.mxu0 %v2089
    %3056 = vmatpush.bf16.msra.mxu0 %v2081
    %3057 = vmatpush.bf16.msra.mxu0 %v2073
    %3058 = vmatpush.bf16.msra.mxu0 %v2065
    %3059 = vmatpush.bf16.msra.mxu0 %v2057
    %3060 = vmatmul.bf16.gmra.mxu0 %v675
    %v3061 = vpop.f32.mrf.mxu0
    %v3062 = vadd.f32 %v3049, %v3061
    %v3063 = vpop.f32.mrf.mxu0
    %3064 = vdwg.mxu0
    %3065 = vmatpush.bf16.msra.mxu0 %v2177
    %3066 = vmatpush.bf16.msra.mxu0 %v2169
    %3067 = vmatpush.bf16.msra.mxu0 %v2161
    %3068 = vmatpush.bf16.msra.mxu0 %v2153
    %3069 = vmatpush.bf16.msra.mxu0 %v2145
    %3070 = vmatpush.bf16.msra.mxu0 %v2137
    %3071 = vmatpush.bf16.msra.mxu0 %v2129
    %3072 = vmatpush.bf16.msra.mxu0 %v2121
    %3073 = vmatmul.bf16.gmra.mxu0 %v676
    %v3074 = vpop.f32.mrf.mxu0
    %v3075 = vadd.f32 %v3062, %v3074
    %v3076 = vpop.f32.mrf.mxu0
    %3077 = vdwg.mxu0
    %3078 = vmatpush.bf16.msra.mxu0 %v2241
    %3079 = vmatpush.bf16.msra.mxu0 %v2233
    %3080 = vmatpush.bf16.msra.mxu0 %v2225
    %3081 = vmatpush.bf16.msra.mxu0 %v2217
    %3082 = vmatpush.bf16.msra.mxu0 %v2209
    %3083 = vmatpush.bf16.msra.mxu0 %v2201
    %3084 = vmatpush.bf16.msra.mxu0 %v2193
    %3085 = vmatpush.bf16.msra.mxu0 %v2185
    %3086 = vmatmul.bf16.gmra.mxu0 %v677
    %v3087 = vpop.f32.mrf.mxu0
    %v3088 = vadd.f32 %v3075, %v3087
    %v3089 = vpop.f32.mrf.mxu0
    %3090 = vdwg.mxu0
    %3091 = vmatpush.bf16.msra.mxu0 0
    %3092 = vmatpush.bf16.msra.mxu0 0
    %3093 = vmatpush.bf16.msra.mxu0 0
    %3094 = vmatpush.bf16.msra.mxu0 0
    %3095 = vmatpush.bf16.msra.mxu0 0
    %3096 = vmatpush.bf16.msra.mxu0 0
    %3097 = vmatpush.bf16.msra.mxu0 0
    %3098 = vmatpush.bf16.msra.mxu0 %v2249
    %3099 = vmatmul.bf16.gmra.mxu0 %v2647
    %v3100 = vpop.f32.mrf.mxu0
    %v3101 = vadd.f32 %v3088, %v3100
    %v3102 = vpop.f32.mrf.mxu0
    %3103 = vdwg.mxu0
    %3104 = vmatpush.bf16.msra.mxu0 %v1922
    %3105 = vmatpush.bf16.msra.mxu0 %v1914
    %3106 = vmatpush.bf16.msra.mxu0 %v1906
    %3107 = vmatpush.bf16.msra.mxu0 %v1898
    %3108 = vmatpush.bf16.msra.mxu0 %v1890
    %3109 = vmatpush.bf16.msra.mxu0 %v1882
    %3110 = vmatpush.bf16.msra.mxu0 %v1874
    %3111 = vmatpush.bf16.msra.mxu0 %v1866
    %3112 = vmatmul.bf16.gmra.mxu0 %v672
    %v3113 = vpop.f32.mrf.mxu0
    %v3114 = vadd.f32 0.0, %v3113
    %v3115 = vpop.f32.mrf.mxu0
    %3116 = vdwg.mxu0
    %3117 = vmatpush.bf16.msra.mxu0 %v1986
    %3118 = vmatpush.bf16.msra.mxu0 %v1978
    %3119 = vmatpush.bf16.msra.mxu0 %v1970
    %3120 = vmatpush.bf16.msra.mxu0 %v1962
    %3121 = vmatpush.bf16.msra.mxu0 %v1954
    %3122 = vmatpush.bf16.msra.mxu0 %v1946
    %3123 = vmatpush.bf16.msra.mxu0 %v1938
    %3124 = vmatpush.bf16.msra.mxu0 %v1930
    %3125 = vmatmul.bf16.gmra.mxu0 %v673
    %v3126 = vpop.f32.mrf.mxu0
    %v3127 = vadd.f32 %v3114, %v3126
    %v3128 = vpop.f32.mrf.mxu0
    %3129 = vdwg.mxu0
    %3130 = vmatpush.bf16.msra.mxu0 %v2050
    %3131 = vmatpush.bf16.msra.mxu0 %v2042
    %3132 = vmatpush.bf16.msra.mxu0 %v2034
    %3133 = vmatpush.bf16.msra.mxu0 %v2026
    %3134 = vmatpush.bf16.msra.mxu0 %v2018
    %3135 = vmatpush.bf16.msra.mxu0 %v2010
    %3136 = vmatpush.bf16.msra.mxu0 %v2002
    %3137 = vmatpush.bf16.msra.mxu0 %v1994
    %3138 = vmatmul.bf16.gmra.mxu0 %v674
    %v3139 = vpop.f32.mrf.mxu0
    %v3140 = vadd.f32 %v3127, %v3139
    %v3141 = vpop.f32.mrf.mxu0
    %3142 = vdwg.mxu0
    %3143 = vmatpush.bf16.msra.mxu0 %v2114
    %3144 = vmatpush.bf16.msra.mxu0 %v2106
    %3145 = vmatpush.bf16.msra.mxu0 %v2098
    %3146 = vmatpush.bf16.msra.mxu0 %v2090
    %3147 = vmatpush.bf16.msra.mxu0 %v2082
    %3148 = vmatpush.bf16.msra.mxu0 %v2074
    %3149 = vmatpush.bf16.msra.mxu0 %v2066
    %3150 = vmatpush.bf16.msra.mxu0 %v2058
    %3151 = vmatmul.bf16.gmra.mxu0 %v675
    %v3152 = vpop.f32.mrf.mxu0
    %v3153 = vadd.f32 %v3140, %v3152
    %v3154 = vpop.f32.mrf.mxu0
    %3155 = vdwg.mxu0
    %3156 = vmatpush.bf16.msra.mxu0 %v2178
    %3157 = vmatpush.bf16.msra.mxu0 %v2170
    %3158 = vmatpush.bf16.msra.mxu0 %v2162
    %3159 = vmatpush.bf16.msra.mxu0 %v2154
    %3160 = vmatpush.bf16.msra.mxu0 %v2146
    %3161 = vmatpush.bf16.msra.mxu0 %v2138
    %3162 = vmatpush.bf16.msra.mxu0 %v2130
    %3163 = vmatpush.bf16.msra.mxu0 %v2122
    %3164 = vmatmul.bf16.gmra.mxu0 %v676
    %v3165 = vpop.f32.mrf.mxu0
    %v3166 = vadd.f32 %v3153, %v3165
    %v3167 = vpop.f32.mrf.mxu0
    %3168 = vdwg.mxu0
    %3169 = vmatpush.bf16.msra.mxu0 %v2242
    %3170 = vmatpush.bf16.msra.mxu0 %v2234
    %3171 = vmatpush.bf16.msra.mxu0 %v2226
    %3172 = vmatpush.bf16.msra.mxu0 %v2218
    %3173 = vmatpush.bf16.msra.mxu0 %v2210
    %3174 = vmatpush.bf16.msra.mxu0 %v2202
    %3175 = vmatpush.bf16.msra.mxu0 %v2194
    %3176 = vmatpush.bf16.msra.mxu0 %v2186
    %3177 = vmatmul.bf16.gmra.mxu0 %v677
    %v3178 = vpop.f32.mrf.mxu0
    %v3179 = vadd.f32 %v3166, %v3178
    %v3180 = vpop.f32.mrf.mxu0
    %3181 = vdwg.mxu0
    %3182 = vmatpush.bf16.msra.mxu0 0
    %3183 = vmatpush.bf16.msra.mxu0 0
    %3184 = vmatpush.bf16.msra.mxu0 0
    %3185 = vmatpush.bf16.msra.mxu0 0
    %3186 = vmatpush.bf16.msra.mxu0 0
    %3187 = vmatpush.bf16.msra.mxu0 0
    %3188 = vmatpush.bf16.msra.mxu0 0
    %3189 = vmatpush.bf16.msra.mxu0 %v2250
    %3190 = vmatmul.bf16.gmra.mxu0 %v2647
    %v3191 = vpop.f32.mrf.mxu0
    %v3192 = vadd.f32 %v3179, %v3191
    %v3193 = vpop.f32.mrf.mxu0
    %3194 = vdwg.mxu0
    %3195 = vmatpush.bf16.msra.mxu0 %v1923
    %3196 = vmatpush.bf16.msra.mxu0 %v1915
    %3197 = vmatpush.bf16.msra.mxu0 %v1907
    %3198 = vmatpush.bf16.msra.mxu0 %v1899
    %3199 = vmatpush.bf16.msra.mxu0 %v1891
    %3200 = vmatpush.bf16.msra.mxu0 %v1883
    %3201 = vmatpush.bf16.msra.mxu0 %v1875
    %3202 = vmatpush.bf16.msra.mxu0 %v1867
    %3203 = vmatmul.bf16.gmra.mxu0 %v672
    %v3204 = vpop.f32.mrf.mxu0
    %v3205 = vadd.f32 0.0, %v3204
    %v3206 = vpop.f32.mrf.mxu0
    %3207 = vdwg.mxu0
    %3208 = vmatpush.bf16.msra.mxu0 %v1987
    %3209 = vmatpush.bf16.msra.mxu0 %v1979
    %3210 = vmatpush.bf16.msra.mxu0 %v1971
    %3211 = vmatpush.bf16.msra.mxu0 %v1963
    %3212 = vmatpush.bf16.msra.mxu0 %v1955
    %3213 = vmatpush.bf16.msra.mxu0 %v1947
    %3214 = vmatpush.bf16.msra.mxu0 %v1939
    %3215 = vmatpush.bf16.msra.mxu0 %v1931
    %3216 = vmatmul.bf16.gmra.mxu0 %v673
    %v3217 = vpop.f32.mrf.mxu0
    %v3218 = vadd.f32 %v3205, %v3217
    %v3219 = vpop.f32.mrf.mxu0
    %3220 = vdwg.mxu0
    %3221 = vmatpush.bf16.msra.mxu0 %v2051
    %3222 = vmatpush.bf16.msra.mxu0 %v2043
    %3223 = vmatpush.bf16.msra.mxu0 %v2035
    %3224 = vmatpush.bf16.msra.mxu0 %v2027
    %3225 = vmatpush.bf16.msra.mxu0 %v2019
    %3226 = vmatpush.bf16.msra.mxu0 %v2011
    %3227 = vmatpush.bf16.msra.mxu0 %v2003
    %3228 = vmatpush.bf16.msra.mxu0 %v1995
    %3229 = vmatmul.bf16.gmra.mxu0 %v674
    %v3230 = vpop.f32.mrf.mxu0
    %v3231 = vadd.f32 %v3218, %v3230
    %v3232 = vpop.f32.mrf.mxu0
    %3233 = vdwg.mxu0
    %3234 = vmatpush.bf16.msra.mxu0 %v2115
    %3235 = vmatpush.bf16.msra.mxu0 %v2107
    %3236 = vmatpush.bf16.msra.mxu0 %v2099
    %3237 = vmatpush.bf16.msra.mxu0 %v2091
    %3238 = vmatpush.bf16.msra.mxu0 %v2083
    %3239 = vmatpush.bf16.msra.mxu0 %v2075
    %3240 = vmatpush.bf16.msra.mxu0 %v2067
    %3241 = vmatpush.bf16.msra.mxu0 %v2059
    %3242 = vmatmul.bf16.gmra.mxu0 %v675
    %v3243 = vpop.f32.mrf.mxu0
    %v3244 = vadd.f32 %v3231, %v3243
    %v3245 = vpop.f32.mrf.mxu0
    %3246 = vdwg.mxu0
    %3247 = vmatpush.bf16.msra.mxu0 %v2179
    %3248 = vmatpush.bf16.msra.mxu0 %v2171
    %3249 = vmatpush.bf16.msra.mxu0 %v2163
    %3250 = vmatpush.bf16.msra.mxu0 %v2155
    %3251 = vmatpush.bf16.msra.mxu0 %v2147
    %3252 = vmatpush.bf16.msra.mxu0 %v2139
    %3253 = vmatpush.bf16.msra.mxu0 %v2131
    %3254 = vmatpush.bf16.msra.mxu0 %v2123
    %3255 = vmatmul.bf16.gmra.mxu0 %v676
    %v3256 = vpop.f32.mrf.mxu0
    %v3257 = vadd.f32 %v3244, %v3256
    %v3258 = vpop.f32.mrf.mxu0
    %3259 = vdwg.mxu0
    %3260 = vmatpush.bf16.msra.mxu0 %v2243
    %3261 = vmatpush.bf16.msra.mxu0 %v2235
    %3262 = vmatpush.bf16.msra.mxu0 %v2227
    %3263 = vmatpush.bf16.msra.mxu0 %v2219
    %3264 = vmatpush.bf16.msra.mxu0 %v2211
    %3265 = vmatpush.bf16.msra.mxu0 %v2203
    %3266 = vmatpush.bf16.msra.mxu0 %v2195
    %3267 = vmatpush.bf16.msra.mxu0 %v2187
    %3268 = vmatmul.bf16.gmra.mxu0 %v677
    %v3269 = vpop.f32.mrf.mxu0
    %v3270 = vadd.f32 %v3257, %v3269
    %v3271 = vpop.f32.mrf.mxu0
    %3272 = vdwg.mxu0
    %3273 = vmatpush.bf16.msra.mxu0 0
    %3274 = vmatpush.bf16.msra.mxu0 0
    %3275 = vmatpush.bf16.msra.mxu0 0
    %3276 = vmatpush.bf16.msra.mxu0 0
    %3277 = vmatpush.bf16.msra.mxu0 0
    %3278 = vmatpush.bf16.msra.mxu0 0
    %3279 = vmatpush.bf16.msra.mxu0 0
    %3280 = vmatpush.bf16.msra.mxu0 %v2251
    %3281 = vmatmul.bf16.gmra.mxu0 %v2647
    %v3282 = vpop.f32.mrf.mxu0
    %v3283 = vadd.f32 %v3270, %v3282
    %v3284 = vpop.f32.mrf.mxu0
    %3285 = vdwg.mxu0
    %3286 = vmatpush.bf16.msra.mxu0 %v1924
    %3287 = vmatpush.bf16.msra.mxu0 %v1916
    %3288 = vmatpush.bf16.msra.mxu0 %v1908
    %3289 = vmatpush.bf16.msra.mxu0 %v1900
    %3290 = vmatpush.bf16.msra.mxu0 %v1892
    %3291 = vmatpush.bf16.msra.mxu0 %v1884
    %3292 = vmatpush.bf16.msra.mxu0 %v1876
    %3293 = vmatpush.bf16.msra.mxu0 %v1868
    %3294 = vmatmul.bf16.gmra.mxu0 %v672
    %v3295 = vpop.f32.mrf.mxu0
    %v3296 = vadd.f32 0.0, %v3295
    %v3297 = vpop.f32.mrf.mxu0
    %3298 = vdwg.mxu0
    %3299 = vmatpush.bf16.msra.mxu0 %v1988
    %3300 = vmatpush.bf16.msra.mxu0 %v1980
    %3301 = vmatpush.bf16.msra.mxu0 %v1972
    %3302 = vmatpush.bf16.msra.mxu0 %v1964
    %3303 = vmatpush.bf16.msra.mxu0 %v1956
    %3304 = vmatpush.bf16.msra.mxu0 %v1948
    %3305 = vmatpush.bf16.msra.mxu0 %v1940
    %3306 = vmatpush.bf16.msra.mxu0 %v1932
    %3307 = vmatmul.bf16.gmra.mxu0 %v673
    %v3308 = vpop.f32.mrf.mxu0
    %v3309 = vadd.f32 %v3296, %v3308
    %v3310 = vpop.f32.mrf.mxu0
    %3311 = vdwg.mxu0
    %3312 = vmatpush.bf16.msra.mxu0 %v2052
    %3313 = vmatpush.bf16.msra.mxu0 %v2044
    %3314 = vmatpush.bf16.msra.mxu0 %v2036
    %3315 = vmatpush.bf16.msra.mxu0 %v2028
    %3316 = vmatpush.bf16.msra.mxu0 %v2020
    %3317 = vmatpush.bf16.msra.mxu0 %v2012
    %3318 = vmatpush.bf16.msra.mxu0 %v2004
    %3319 = vmatpush.bf16.msra.mxu0 %v1996
    %3320 = vmatmul.bf16.gmra.mxu0 %v674
    %v3321 = vpop.f32.mrf.mxu0
    %v3322 = vadd.f32 %v3309, %v3321
    %v3323 = vpop.f32.mrf.mxu0
    %3324 = vdwg.mxu0
    %3325 = vmatpush.bf16.msra.mxu0 %v2116
    %3326 = vmatpush.bf16.msra.mxu0 %v2108
    %3327 = vmatpush.bf16.msra.mxu0 %v2100
    %3328 = vmatpush.bf16.msra.mxu0 %v2092
    %3329 = vmatpush.bf16.msra.mxu0 %v2084
    %3330 = vmatpush.bf16.msra.mxu0 %v2076
    %3331 = vmatpush.bf16.msra.mxu0 %v2068
    %3332 = vmatpush.bf16.msra.mxu0 %v2060
    %3333 = vmatmul.bf16.gmra.mxu0 %v675
    %v3334 = vpop.f32.mrf.mxu0
    %v3335 = vadd.f32 %v3322, %v3334
    %v3336 = vpop.f32.mrf.mxu0
    %3337 = vdwg.mxu0
    %3338 = vmatpush.bf16.msra.mxu0 %v2180
    %3339 = vmatpush.bf16.msra.mxu0 %v2172
    %3340 = vmatpush.bf16.msra.mxu0 %v2164
    %3341 = vmatpush.bf16.msra.mxu0 %v2156
    %3342 = vmatpush.bf16.msra.mxu0 %v2148
    %3343 = vmatpush.bf16.msra.mxu0 %v2140
    %3344 = vmatpush.bf16.msra.mxu0 %v2132
    %3345 = vmatpush.bf16.msra.mxu0 %v2124
    %3346 = vmatmul.bf16.gmra.mxu0 %v676
    %v3347 = vpop.f32.mrf.mxu0
    %v3348 = vadd.f32 %v3335, %v3347
    %v3349 = vpop.f32.mrf.mxu0
    %3350 = vdwg.mxu0
    %3351 = vmatpush.bf16.msra.mxu0 %v2244
    %3352 = vmatpush.bf16.msra.mxu0 %v2236
    %3353 = vmatpush.bf16.msra.mxu0 %v2228
    %3354 = vmatpush.bf16.msra.mxu0 %v2220
    %3355 = vmatpush.bf16.msra.mxu0 %v2212
    %3356 = vmatpush.bf16.msra.mxu0 %v2204
    %3357 = vmatpush.bf16.msra.mxu0 %v2196
    %3358 = vmatpush.bf16.msra.mxu0 %v2188
    %3359 = vmatmul.bf16.gmra.mxu0 %v677
    %v3360 = vpop.f32.mrf.mxu0
    %v3361 = vadd.f32 %v3348, %v3360
    %v3362 = vpop.f32.mrf.mxu0
    %3363 = vdwg.mxu0
    %3364 = vmatpush.bf16.msra.mxu0 0
    %3365 = vmatpush.bf16.msra.mxu0 0
    %3366 = vmatpush.bf16.msra.mxu0 0
    %3367 = vmatpush.bf16.msra.mxu0 0
    %3368 = vmatpush.bf16.msra.mxu0 0
    %3369 = vmatpush.bf16.msra.mxu0 0
    %3370 = vmatpush.bf16.msra.mxu0 0
    %3371 = vmatpush.bf16.msra.mxu0 %v2252
    %3372 = vmatmul.bf16.gmra.mxu0 %v2647
    %v3373 = vpop.f32.mrf.mxu0
    %v3374 = vadd.f32 %v3361, %v3373
    %v3375 = vpop.f32.mrf.mxu0
    %3376 = vdwg.mxu0
    %v3377 = vrot.slane %v2737, 4
    %v3378 = vadd.f32 %v2737, %v3377
    %v3379 = vrot.slane %v3378, 2
    %v3380 = vadd.f32 %v3378, %v3379
    %v3381 = vrot.slane %v3380, 1
    %v3382 = vadd.f32 %v3380, %v3381
    %v3383 = vrot.slane %v2828, 4
    %v3384 = vadd.f32 %v2828, %v3383
    %v3385 = vrot.slane %v3384, 2
    %v3386 = vadd.f32 %v3384, %v3385
    %v3387 = vrot.slane %v3386, 1
    %v3388 = vadd.f32 %v3386, %v3387
    %v3389 = vrot.slane %v2919, 4
    %v3390 = vadd.f32 %v2919, %v3389
    %v3391 = vrot.slane %v3390, 2
    %v3392 = vadd.f32 %v3390, %v3391
    %v3393 = vrot.slane %v3392, 1
    %v3394 = vadd.f32 %v3392, %v3393
    %v3395 = vrot.slane %v3010, 4
    %v3396 = vadd.f32 %v3010, %v3395
    %v3397 = vrot.slane %v3396, 2
    %v3398 = vadd.f32 %v3396, %v3397
    %v3399 = vrot.slane %v3398, 1
    %v3400 = vadd.f32 %v3398, %v3399
    %v3401 = vrot.slane %v3101, 4
    %v3402 = vadd.f32 %v3101, %v3401
    %v3403 = vrot.slane %v3402, 2
    %v3404 = vadd.f32 %v3402, %v3403
    %v3405 = vrot.slane %v3404, 1
    %v3406 = vadd.f32 %v3404, %v3405
    %v3407 = vrot.slane %v3192, 4
    %v3408 = vadd.f32 %v3192, %v3407
    %v3409 = vrot.slane %v3408, 2
    %v3410 = vadd.f32 %v3408, %v3409
    %v3411 = vrot.slane %v3410, 1
    %v3412 = vadd.f32 %v3410, %v3411
    %v3413 = vrot.slane %v3283, 4
    %v3414 = vadd.f32 %v3283, %v3413
    %v3415 = vrot.slane %v3414, 2
    %v3416 = vadd.f32 %v3414, %v3415
    %v3417 = vrot.slane %v3416, 1
    %v3418 = vadd.f32 %v3416, %v3417
    %v3419 = vrot.slane %v3374, 4
    %v3420 = vadd.f32 %v3374, %v3419
    %v3421 = vrot.slane %v3420, 2
    %v3422 = vadd.f32 %v3420, %v3421
    %v3423 = vrot.slane %v3422, 1
    %v3424 = vadd.f32 %v3422, %v3423
    %v3425 = vrcp.pop 8.0
    %v3426 = vmul.f32 8.0, %v3425
    %v3427 = vsub.f32 1.0, %v3426
    %v3428 = vmul.f32 %v3425, %v3427
    %v3429 = vadd.f32 %v3425, %v3428
    %vm3430 = vweird.f32 %v3425
    %v3431 = vsel %vm3430, %v3425, %v3429
    %v3432 = vmul.f32 %v3382, %v3431
    %v3433 = vmul.f32 %v3388, %v3431
    %v3434 = vmul.f32 %v3394, %v3431
    %v3435 = vmul.f32 %v3400, %v3431
    %v3436 = vmul.f32 %v3406, %v3431
    %v3437 = vmul.f32 %v3412, %v3431
    %v3438 = vmul.f32 %v3418, %v3431
    %v3439 = vmul.f32 %v3424, %v3431
    %v3440 = vmul.f32 %v2737, %v2737
    %v3441 = vmul.f32 %v2828, %v2828
    %v3442 = vmul.f32 %v2919, %v2919
    %v3443 = vmul.f32 %v3010, %v3010
    %v3444 = vmul.f32 %v3101, %v3101
    %v3445 = vmul.f32 %v3192, %v3192
    %v3446 = vmul.f32 %v3283, %v3283
    %v3447 = vmul.f32 %v3374, %v3374
    %v3448 = vrot.slane %v3440, 4
    %v3449 = vadd.f32 %v3440, %v3448
    %v3450 = vrot.slane %v3449, 2
    %v3451 = vadd.f32 %v3449, %v3450
    %v3452 = vrot.slane %v3451, 1
    %v3453 = vadd.f32 %v3451, %v3452
    %v3454 = vrot.slane %v3441, 4
    %v3455 = vadd.f32 %v3441, %v3454
    %v3456 = vrot.slane %v3455, 2
    %v3457 = vadd.f32 %v3455, %v3456
    %v3458 = vrot.slane %v3457, 1
    %v3459 = vadd.f32 %v3457, %v3458
    %v3460 = vrot.slane %v3442, 4
    %v3461 = vadd.f32 %v3442, %v3460
    %v3462 = vrot.slane %v3461, 2
    %v3463 = vadd.f32 %v3461, %v3462
    %v3464 = vrot.slane %v3463, 1
    %v3465 = vadd.f32 %v3463, %v3464
    %v3466 = vrot.slane %v3443, 4
    %v3467 = vadd.f32 %v3443, %v3466
    %v3468 = vrot.slane %v3467, 2
    %v3469 = vadd.f32 %v3467, %v3468
    %v3470 = vrot.slane %v3469, 1
    %v3471 = vadd.f32 %v3469, %v3470
    %v3472 = vrot.slane %v3444, 4
    %v3473 = vadd.f32 %v3444, %v3472
    %v3474 = vrot.slane %v3473, 2
    %v3475 = vadd.f32 %v3473, %v3474
    %v3476 = vrot.slane %v3475, 1
    %v3477 = vadd.f32 %v3475, %v3476
    %v3478 = vrot.slane %v3445, 4
    %v3479 = vadd.f32 %v3445, %v3478
    %v3480 = vrot.slane %v3479, 2
    %v3481 = vadd.f32 %v3479, %v3480
    %v3482 = vrot.slane %v3481, 1
    %v3483 = vadd.f32 %v3481, %v3482
    %v3484 = vrot.slane %v3446, 4
    %v3485 = vadd.f32 %v3446, %v3484
    %v3486 = vrot.slane %v3485, 2
    %v3487 = vadd.f32 %v3485, %v3486
    %v3488 = vrot.slane %v3487, 1
    %v3489 = vadd.f32 %v3487, %v3488
    %v3490 = vrot.slane %v3447, 4
    %v3491 = vadd.f32 %v3447, %v3490
    %v3492 = vrot.slane %v3491, 2
    %v3493 = vadd.f32 %v3491, %v3492
    %v3494 = vrot.slane %v3493, 1
    %v3495 = vadd.f32 %v3493, %v3494
    %v3496 = vmul.f32 %v3453, %v3431
    %v3497 = vmul.f32 %v3459, %v3431
    %v3498 = vmul.f32 %v3465, %v3431
    %v3499 = vmul.f32 %v3471, %v3431
    %v3500 = vmul.f32 %v3477, %v3431
    %v3501 = vmul.f32 %v3483, %v3431
    %v3502 = vmul.f32 %v3489, %v3431
    %v3503 = vmul.f32 %v3495, %v3431
    %v3504 = vmul.f32 %v3432, %v3432
    %v3505 = vmul.f32 %v3433, %v3433
    %v3506 = vmul.f32 %v3434, %v3434
    %v3507 = vmul.f32 %v3435, %v3435
    %v3508 = vmul.f32 %v3436, %v3436
    %v3509 = vmul.f32 %v3437, %v3437
    %v3510 = vmul.f32 %v3438, %v3438
    %v3511 = vmul.f32 %v3439, %v3439
    %v3512 = vsub.f32 %v3496, %v3504
    %v3513 = vsub.f32 %v3497, %v3505
    %v3514 = vsub.f32 %v3498, %v3506
    %v3515 = vsub.f32 %v3499, %v3507
    %v3516 = vsub.f32 %v3500, %v3508
    %v3517 = vsub.f32 %v3501, %v3509
    %v3518 = vsub.f32 %v3502, %v3510
    %v3519 = vsub.f32 %v3503, %v3511
    %v3520 = vmax.f32 %v3512, 0.0
    %v3521 = vmax.f32 %v3513, 0.0
    %v3522 = vmax.f32 %v3514, 0.0
    %v3523 = vmax.f32 %v3515, 0.0
    %v3524 = vmax.f32 %v3516, 0.0
    %v3525 = vmax.f32 %v3517, 0.0
    %v3526 = vmax.f32 %v3518, 0.0
    %v3527 = vmax.f32 %v3519, 0.0
    %v3528 = vadd.f32 %v3520, 1e-05
    %v3529 = vadd.f32 %v3521, 1e-05
    %v3530 = vadd.f32 %v3522, 1e-05
    %v3531 = vadd.f32 %v3523, 1e-05
    %v3532 = vadd.f32 %v3524, 1e-05
    %v3533 = vadd.f32 %v3525, 1e-05
    %v3534 = vadd.f32 %v3526, 1e-05
    %v3535 = vadd.f32 %v3527, 1e-05
    %v3536 = vrsqrt.pop %v3528
    %v3537 = vmul.f32 %v3536, %v3528
    %v3538 = vmul.f32 %v3537, %v3536
    %v3539 = vmul.f32 0.5, %v3538
    %v3540 = vsub.f32 1.5, %v3539
    %v3541 = vmul.f32 %v3536, %v3540
    %vm3542 = vweird.f32 %v3528
    %vm3543 = vweird.f32 %v3536
    %vm3544 = vmor %vm3542, %vm3543
    %v3545 = vsel %vm3544, %v3536, %v3541
    %v3546 = vrsqrt.pop %v3529
    %v3547 = vmul.f32 %v3546, %v3529
    %v3548 = vmul.f32 %v3547, %v3546
    %v3549 = vmul.f32 0.5, %v3548
    %v3550 = vsub.f32 1.5, %v3549
    %v3551 = vmul.f32 %v3546, %v3550
    %vm3552 = vweird.f32 %v3529
    %vm3553 = vweird.f32 %v3546
    %vm3554 = vmor %vm3552, %vm3553
    %v3555 = vsel %vm3554, %v3546, %v3551
    %v3556 = vrsqrt.pop %v3530
    %v3557 = vmul.f32 %v3556, %v3530
    %v3558 = vmul.f32 %v3557, %v3556
    %v3559 = vmul.f32 0.5, %v3558
    %v3560 = vsub.f32 1.5, %v3559
    %v3561 = vmul.f32 %v3556, %v3560
    %vm3562 = vweird.f32 %v3530
    %vm3563 = vweird.f32 %v3556
    %vm3564 = vmor %vm3562, %vm3563
    %v3565 = vsel %vm3564, %v3556, %v3561
    %v3566 = vrsqrt.pop %v3531
    %v3567 = vmul.f32 %v3566, %v3531
    %v3568 = vmul.f32 %v3567, %v3566
    %v3569 = vmul.f32 0.5, %v3568
    %v3570 = vsub.f32 1.5, %v3569
    %v3571 = vmul.f32 %v3566, %v3570
    %vm3572 = vweird.f32 %v3531
    %vm3573 = vweird.f32 %v3566
    %vm3574 = vmor %vm3572, %vm3573
    %v3575 = vsel %vm3574, %v3566, %v3571
    %v3576 = vrsqrt.pop %v3532
    %v3577 = vmul.f32 %v3576, %v3532
    %v3578 = vmul.f32 %v3577, %v3576
    %v3579 = vmul.f32 0.5, %v3578
    %v3580 = vsub.f32 1.5, %v3579
    %v3581 = vmul.f32 %v3576, %v3580
    %vm3582 = vweird.f32 %v3532
    %vm3583 = vweird.f32 %v3576
    %vm3584 = vmor %vm3582, %vm3583
    %v3585 = vsel %vm3584, %v3576, %v3581
    %v3586 = vrsqrt.pop %v3533
    %v3587 = vmul.f32 %v3586, %v3533
    %v3588 = vmul.f32 %v3587, %v3586
    %v3589 = vmul.f32 0.5, %v3588
    %v3590 = vsub.f32 1.5, %v3589
    %v3591 = vmul.f32 %v3586, %v3590
    %vm3592 = vweird.f32 %v3533
    %vm3593 = vweird.f32 %v3586
    %vm3594 = vmor %vm3592, %vm3593
    %v3595 = vsel %vm3594, %v3586, %v3591
    %v3596 = vrsqrt.pop %v3534
    %v3597 = vmul.f32 %v3596, %v3534
    %v3598 = vmul.f32 %v3597, %v3596
    %v3599 = vmul.f32 0.5, %v3598
    %v3600 = vsub.f32 1.5, %v3599
    %v3601 = vmul.f32 %v3596, %v3600
    %vm3602 = vweird.f32 %v3534
    %vm3603 = vweird.f32 %v3596
    %vm3604 = vmor %vm3602, %vm3603
    %v3605 = vsel %vm3604, %v3596, %v3601
    %v3606 = vrsqrt.pop %v3535
    %v3607 = vmul.f32 %v3606, %v3535
    %v3608 = vmul.f32 %v3607, %v3606
    %v3609 = vmul.f32 0.5, %v3608
    %v3610 = vsub.f32 1.5, %v3609
    %v3611 = vmul.f32 %v3606, %v3610
    %vm3612 = vweird.f32 %v3535
    %vm3613 = vweird.f32 %v3606
    %vm3614 = vmor %vm3612, %vm3613
    %v3615 = vsel %vm3614, %v3606, %v3611
    %v3616 = vld [vmem:[#allocation7] sm:$0xff]
    %v3625 = vrot.slane %v3555, 7
    %v3626 = vrot.slane %v3565, 6
    %v3627 = vrot.slane %v3575, 5
    %v3628 = vrot.slane %v3585, 4
    %v3629 = vrot.slane %v3595, 3
    %v3630 = vrot.slane %v3605, 2
    %v3631 = vrot.slane %v3615, 1
    %vm3632 = vcmask 1040384
    %v3633 = vsel %vm3632, %v3545, %v3625
    %vm3634 = vcmask 1042434
    %v3635 = vsel %vm3634, %v3626, %v3627
    %vm3636 = vcmask 1041408
    %v3637 = vsel %vm3636, %v3633, %v3635
    %vm3638 = vcmask 1044484
    %v3639 = vsel %vm3638, %v3628, %v3629
    %vm3640 = vcmask 1046534
    %v3641 = vsel %vm3640, %v3630, %v3631
    %vm3642 = vcmask 1045508
    %v3643 = vsel %vm3642, %v3639, %v3641
    %vm3644 = vcmask 1043456
    %v3645 = vsel %vm3644, %v3637, %v3643
    %v3647 = vmul.f32 %v3616, %v3645
    %v3648 = vld [vmem:[#allocation8] sm:$0xff]
    %v3650 = vperm.slane %v3647, 0
    %v3651 = vperm.slane %v3647, 1
    %v3652 = vperm.slane %v3647, 2
    %v3653 = vperm.slane %v3647, 3
    %v3654 = vperm.slane %v3647, 4
    %v3655 = vperm.slane %v3647, 5
    %v3656 = vperm.slane %v3647, 6
    %v3657 = vperm.slane %v3647, 7
    %v3666 = vmul.f32 %v3432, %v3650
    %v3667 = vmul.f32 %v3433, %v3651
    %v3668 = vmul.f32 %v3434, %v3652
    %v3669 = vmul.f32 %v3435, %v3653
    %v3670 = vmul.f32 %v3436, %v3654
    %v3671 = vmul.f32 %v3437, %v3655
    %v3672 = vmul.f32 %v3438, %v3656
    %v3673 = vmul.f32 %v3439, %v3657
    %v3682 = vrot.slane %v3667, 7
    %v3683 = vrot.slane %v3668, 6
    %v3684 = vrot.slane %v3669, 5
    %v3685 = vrot.slane %v3670, 4
    %v3686 = vrot.slane %v3671, 3
    %v3687 = vrot.slane %v3672, 2
    %v3688 = vrot.slane %v3673, 1
    %v3689 = vsel %vm3632, %v3666, %v3682
    %v3690 = vsel %vm3634, %v3683, %v3684
    %v3691 = vsel %vm3636, %v3689, %v3690
    %v3692 = vsel %vm3638, %v3685, %v3686
    %v3693 = vsel %vm3640, %v3687, %v3688
    %v3694 = vsel %vm3642, %v3692, %v3693
    %v3695 = vsel %vm3644, %v3691, %v3694
    %v3697 = vsub.f32 %v3648, %v3695
    %v3698 = vmul.f32 %v2737, %v3650
    %v3699 = vmul.f32 %v2828, %v3651
    %v3700 = vmul.f32 %v2919, %v3652
    %v3701 = vmul.f32 %v3010, %v3653
    %v3702 = vmul.f32 %v3101, %v3654
    %v3703 = vmul.f32 %v3192, %v3655
    %v3704 = vmul.f32 %v3283, %v3656
    %v3705 = vmul.f32 %v3374, %v3657
    %v3707 = vperm.slane %v3697, 0
    %v3708 = vperm.slane %v3697, 1
    %v3709 = vperm.slane %v3697, 2
    %v3710 = vperm.slane %v3697, 3
    %v3711 = vperm.slane %v3697, 4
    %v3712 = vperm.slane %v3697, 5
    %v3713 = vperm.slane %v3697, 6
    %v3714 = vperm.slane %v3697, 7
    %v3723 = vadd.f32 %v3698, %v3707
    %v3724 = vadd.f32 %v3699, %v3708
    %v3725 = vadd.f32 %v3700, %v3709
    %v3726 = vadd.f32 %v3701, %v3710
    %v3727 = vadd.f32 %v3702, %v3711
    %v3728 = vadd.f32 %v3703, %v3712
    %v3729 = vadd.f32 %v3704, %v3713
    %v3730 = vadd.f32 %v3705, %v3714
    %v3731 = vmax.f32 %v3723, 0.0
    %v3732 = vmax.f32 %v3724, 0.0
    %v3733 = vmax.f32 %v3725, 0.0
    %v3734 = vmax.f32 %v3726, 0.0
    %v3735 = vmax.f32 %v3727, 0.0
    %v3736 = vmax.f32 %v3728, 0.0
    %v3737 = vmax.f32 %v3729, 0.0
    %v3738 = vmax.f32 %v3730, 0.0
    %v3739 = vpack.c.bf16 %v3731, %v3731
    %v3740 = vpack.c.bf16 %v3732, %v3732
    %v3741 = vpack.c.bf16 %v3733, %v3733
    %v3742 = vpack.c.bf16 %v3734, %v3734
    %v3743 = vpack.c.bf16 %v3735, %v3735
    %v3744 = vpack.c.bf16 %v3736, %v3736
    %v3745 = vpack.c.bf16 %v3737, %v3737
    %v3746 = vpack.c.bf16 %v3738, %v3738
    %v3747 = vld [vmem:[#allocation10] sm:$0xff]
    %v3748 = vld [vmem:[#allocation10 + $0x8] sm:$0xff]
    %v3749 = vld [vmem:[#allocation10 + $0x10] sm:$0xff]
    %v3750 = vld [vmem:[#allocation10 + $0x18] sm:$0xff]
    %v3751 = vld [vmem:[#allocation10 + $0x20] sm:$0xff]
    %v3752 = vld [vmem:[#allocation10 + $0x28] sm:$0xff]
    %v3753 = vld [vmem:[#allocation10 + $0x30] sm:$0xff]
    %v3754 = vld [vmem:[#allocation10 + $0x38] sm:$0xff]
    %v3755 = vld [vmem:[#allocation10 + $0x40] sm:$0xff]
    %v3756 = vld [vmem:[#allocation10 + $0x48] sm:$0xff]
    %v3757 = vld [vmem:[#allocation10 + $0x50] sm:$0xff]
    %v3758 = vld [vmem:[#allocation10 + $0x58] sm:$0xff]
    %v3759 = vld [vmem:[#allocation10 + $0x60] sm:$0xff]
    %v3760 = vld [vmem:[#allocation10 + $0x68] sm:$0xff]
    %v3761 = vld [vmem:[#allocation10 + $0x70] sm:$0xff]
    %v3762 = vld [vmem:[#allocation10 + $0x78] sm:$0xff]
    %v3763 = vld [vmem:[#allocation10 + $0x80] sm:$0xff]
    %v3764 = vld [vmem:[#allocation10 + $0x88] sm:$0xff]
    %v3765 = vld [vmem:[#allocation10 + $0x90] sm:$0xff]
    %v3766 = vld [vmem:[#allocation10 + $0x98] sm:$0xff]
    %v3767 = vld [vmem:[#allocation10 + $0xa0] sm:$0xff]
    %v3768 = vld [vmem:[#allocation10 + $0xa8] sm:$0xff]
    %v3769 = vld [vmem:[#allocation10 + $0xb0] sm:$0xff]
    %v3770 = vld [vmem:[#allocation10 + $0xb8] sm:$0xff]
    %v3771 = vld [vmem:[#allocation10 + $0xc0] sm:$0xff]
    %v3772 = vld [vmem:[#allocation10 + $0xc8] sm:$0xff]
    %v3773 = vld [vmem:[#allocation10 + $0xd0] sm:$0xff]
    %v3774 = vld [vmem:[#allocation10 + $0xd8] sm:$0xff]
    %v3775 = vld [vmem:[#allocation10 + $0xe0] sm:$0xff]
    %v3776 = vld [vmem:[#allocation10 + $0xe8] sm:$0xff]
    %v3777 = vld [vmem:[#allocation10 + $0xf0] sm:$0xff]
    %v3778 = vld [vmem:[#allocation10 + $0xf8] sm:$0xff]
    %v3779 = vld [vmem:[#allocation10 + $0x100] sm:$0xff]
    %v3780 = vld [vmem:[#allocation10 + $0x108] sm:$0xff]
    %v3781 = vld [vmem:[#allocation10 + $0x110] sm:$0xff]
    %v3782 = vld [vmem:[#allocation10 + $0x118] sm:$0xff]
    %v3783 = vld [vmem:[#allocation10 + $0x120] sm:$0xff]
    %v3784 = vld [vmem:[#allocation10 + $0x128] sm:$0xff]
    %v3785 = vld [vmem:[#allocation10 + $0x130] sm:$0xff]
    %v3786 = vld [vmem:[#allocation10 + $0x138] sm:$0xff]
    %v3787 = vld [vmem:[#allocation10 + $0x140] sm:$0xff]
    %v3788 = vld [vmem:[#allocation10 + $0x148] sm:$0xff]
    %v3789 = vld [vmem:[#allocation10 + $0x150] sm:$0xff]
    %v3790 = vld [vmem:[#allocation10 + $0x158] sm:$0xff]
    %v3791 = vld [vmem:[#allocation10 + $0x160] sm:$0xff]
    %v3792 = vld [vmem:[#allocation10 + $0x168] sm:$0xff]
    %v3793 = vld [vmem:[#allocation10 + $0x170] sm:$0xff]
    %v3794 = vld [vmem:[#allocation10 + $0x178] sm:$0xff]
    %v3795 = vld [vmem:[#allocation10 + $0x180] sm:$0xff]
    %v3796 = vld [vmem:[#allocation10 + $0x188] sm:$0xff]
    %v3797 = vld [vmem:[#allocation10 + $0x190] sm:$0xff]
    %v3798 = vld [vmem:[#allocation10 + $0x198] sm:$0xff]
    %v3799 = vld [vmem:[#allocation10 + $0x1a0] sm:$0xff]
    %v3800 = vld [vmem:[#allocation10 + $0x1a8] sm:$0xff]
    %v3801 = vld [vmem:[#allocation10 + $0x1b0] sm:$0xff]
    %v3802 = vld [vmem:[#allocation10 + $0x1b8] sm:$0xff]
    %v3803 = vld [vmem:[#allocation10 + $0x1c0] sm:$0xff]
    %v3804 = vld [vmem:[#allocation10 + $0x1c8] sm:$0xff]
    %v3805 = vld [vmem:[#allocation10 + $0x1d0] sm:$0xff]
    %v3806 = vld [vmem:[#allocation10 + $0x1d8] sm:$0xff]
    %v3807 = vld [vmem:[#allocation10 + $0x1e0] sm:$0xff]
    %v3808 = vld [vmem:[#allocation10 + $0x1e8] sm:$0xff]
    %v3809 = vld [vmem:[#allocation10 + $0x1f0] sm:$0xff]
    %v3810 = vld [vmem:[#allocation10 + $0x1f8] sm:$0xff]
    %v3811 = vld [vmem:[#allocation10 + $0x200] sm:$0xff]
    %v3812 = vld [vmem:[#allocation10 + $0x208] sm:$0xff]
    %v3813 = vld [vmem:[#allocation10 + $0x210] sm:$0xff]
    %v3814 = vld [vmem:[#allocation10 + $0x218] sm:$0xff]
    %v3815 = vld [vmem:[#allocation10 + $0x220] sm:$0xff]
    %v3816 = vld [vmem:[#allocation10 + $0x228] sm:$0xff]
    %v3817 = vld [vmem:[#allocation10 + $0x230] sm:$0xff]
    %v3818 = vld [vmem:[#allocation10 + $0x238] sm:$0xff]
    %v3819 = vld [vmem:[#allocation10 + $0x240] sm:$0xff]
    %v3820 = vld [vmem:[#allocation10 + $0x248] sm:$0xff]
    %v3821 = vld [vmem:[#allocation10 + $0x250] sm:$0xff]
    %v3822 = vld [vmem:[#allocation10 + $0x258] sm:$0xff]
    %v3823 = vld [vmem:[#allocation10 + $0x260] sm:$0xff]
    %v3824 = vld [vmem:[#allocation10 + $0x268] sm:$0xff]
    %v3825 = vld [vmem:[#allocation10 + $0x270] sm:$0xff]
    %v3826 = vld [vmem:[#allocation10 + $0x278] sm:$0xff]
    %v3827 = vld [vmem:[#allocation10 + $0x280] sm:$0xff]
    %v3828 = vld [vmem:[#allocation10 + $0x288] sm:$0xff]
    %v3829 = vld [vmem:[#allocation10 + $0x290] sm:$0xff]
    %v3830 = vld [vmem:[#allocation10 + $0x298] sm:$0xff]
    %v3831 = vld [vmem:[#allocation10 + $0x2a0] sm:$0xff]
    %v3832 = vld [vmem:[#allocation10 + $0x2a8] sm:$0xff]
    %v3833 = vld [vmem:[#allocation10 + $0x2b0] sm:$0xff]
    %v3834 = vld [vmem:[#allocation10 + $0x2b8] sm:$0xff]
    %v3835 = vld [vmem:[#allocation10 + $0x2c0] sm:$0xff]
    %v3836 = vld [vmem:[#allocation10 + $0x2c8] sm:$0xff]
    %v3837 = vld [vmem:[#allocation10 + $0x2d0] sm:$0xff]
    %v3838 = vld [vmem:[#allocation10 + $0x2d8] sm:$0xff]
    %v3839 = vld [vmem:[#allocation10 + $0x2e0] sm:$0xff]
    %v3840 = vld [vmem:[#allocation10 + $0x2e8] sm:$0xff]
    %v3841 = vld [vmem:[#allocation10 + $0x2f0] sm:$0xff]
    %v3842 = vld [vmem:[#allocation10 + $0x2f8] sm:$0xff]
    %v3843 = vld [vmem:[#allocation10 + $0x300] sm:$0xff]
    %v3844 = vld [vmem:[#allocation10 + $0x308] sm:$0xff]
    %v3845 = vld [vmem:[#allocation10 + $0x310] sm:$0xff]
    %v3846 = vld [vmem:[#allocation10 + $0x318] sm:$0xff]
    %v3847 = vld [vmem:[#allocation10 + $0x320] sm:$0xff]
    %v3848 = vld [vmem:[#allocation10 + $0x328] sm:$0xff]
    %v3849 = vld [vmem:[#allocation10 + $0x330] sm:$0xff]
    %v3850 = vld [vmem:[#allocation10 + $0x338] sm:$0xff]
    %v3851 = vld [vmem:[#allocation10 + $0x340] sm:$0xff]
    %v3852 = vld [vmem:[#allocation10 + $0x348] sm:$0xff]
    %v3853 = vld [vmem:[#allocation10 + $0x350] sm:$0xff]
    %v3854 = vld [vmem:[#allocation10 + $0x358] sm:$0xff]
    %v3855 = vld [vmem:[#allocation10 + $0x360] sm:$0xff]
    %v3856 = vld [vmem:[#allocation10 + $0x368] sm:$0xff]
    %v3857 = vld [vmem:[#allocation10 + $0x370] sm:$0xff]
    %v3858 = vld [vmem:[#allocation10 + $0x378] sm:$0xff]
    %v3859 = vld [vmem:[#allocation10 + $0x380] sm:$0xff]
    %v3860 = vld [vmem:[#allocation10 + $0x388] sm:$0xff]
    %v3861 = vld [vmem:[#allocation10 + $0x390] sm:$0xff]
    %v3862 = vld [vmem:[#allocation10 + $0x398] sm:$0xff]
    %v3863 = vld [vmem:[#allocation10 + $0x3a0] sm:$0xff]
    %v3864 = vld [vmem:[#allocation10 + $0x3a8] sm:$0xff]
    %v3865 = vld [vmem:[#allocation10 + $0x3b0] sm:$0xff]
    %v3866 = vld [vmem:[#allocation10 + $0x3b8] sm:$0xff]
    %v3867 = vld [vmem:[#allocation10 + $0x3c0] sm:$0xff]
    %v3868 = vld [vmem:[#allocation10 + $0x3c8] sm:$0xff]
    %v3869 = vld [vmem:[#allocation10 + $0x3d0] sm:$0xff]
    %v3870 = vld [vmem:[#allocation10 + $0x3d8] sm:$0xff]
    %v3871 = vld [vmem:[#allocation10 + $0x3e0] sm:$0xff]
    %v3872 = vld [vmem:[#allocation10 + $0x3e8] sm:$0xff]
    %v3873 = vld [vmem:[#allocation10 + $0x3f0] sm:$0xff]
    %v3874 = vld [vmem:[#allocation10 + $0x3f8] sm:$0xff]
    %v3875 = vld [vmem:[#allocation10 + $0x400] sm:$0xff]
    %v3876 = vld [vmem:[#allocation10 + $0x408] sm:$0xff]
    %v3877 = vld [vmem:[#allocation10 + $0x410] sm:$0xff]
    %v3878 = vld [vmem:[#allocation10 + $0x418] sm:$0xff]
    %v3879 = vld [vmem:[#allocation10 + $0x420] sm:$0xff]
    %v3880 = vld [vmem:[#allocation10 + $0x428] sm:$0xff]
    %v3881 = vld [vmem:[#allocation10 + $0x430] sm:$0xff]
    %v3882 = vld [vmem:[#allocation10 + $0x438] sm:$0xff]
    %v3883 = vld [vmem:[#allocation10 + $0x440] sm:$0xff]
    %v3884 = vld [vmem:[#allocation10 + $0x448] sm:$0xff]
    %v3885 = vld [vmem:[#allocation10 + $0x450] sm:$0xff]
    %v3886 = vld [vmem:[#allocation10 + $0x458] sm:$0xff]
    %v3887 = vld [vmem:[#allocation10 + $0x460] sm:$0xff]
    %v3888 = vld [vmem:[#allocation10 + $0x468] sm:$0xff]
    %v3889 = vld [vmem:[#allocation10 + $0x470] sm:$0xff]
    %v3890 = vld [vmem:[#allocation10 + $0x478] sm:$0xff]
    %v3891 = vld [vmem:[#allocation10 + $0x480] sm:$0xff]
    %v3892 = vld [vmem:[#allocation10 + $0x488] sm:$0xff]
    %v3893 = vld [vmem:[#allocation10 + $0x490] sm:$0xff]
    %v3894 = vld [vmem:[#allocation10 + $0x498] sm:$0xff]
    %v3895 = vld [vmem:[#allocation10 + $0x4a0] sm:$0xff]
    %v3896 = vld [vmem:[#allocation10 + $0x4a8] sm:$0xff]
    %v3897 = vld [vmem:[#allocation10 + $0x4b0] sm:$0xff]
    %v3898 = vld [vmem:[#allocation10 + $0x4b8] sm:$0xff]
    %v3899 = vld [vmem:[#allocation10 + $0x4c0] sm:$0xff]
    %v3900 = vld [vmem:[#allocation10 + $0x4c8] sm:$0xff]
    %v3901 = vld [vmem:[#allocation10 + $0x4d0] sm:$0xff]
    %v3902 = vld [vmem:[#allocation10 + $0x4d8] sm:$0xff]
    %v3903 = vld [vmem:[#allocation10 + $0x4e0] sm:$0xff]
    %v3904 = vld [vmem:[#allocation10 + $0x4e8] sm:$0xff]
    %v3905 = vld [vmem:[#allocation10 + $0x4f0] sm:$0xff]
    %v3906 = vld [vmem:[#allocation10 + $0x4f8] sm:$0xff]
    %v3907 = vld [vmem:[#allocation10 + $0x500] sm:$0xff]
    %v3908 = vld [vmem:[#allocation10 + $0x508] sm:$0xff]
    %v3909 = vld [vmem:[#allocation10 + $0x510] sm:$0xff]
    %v3910 = vld [vmem:[#allocation10 + $0x518] sm:$0xff]
    %v3911 = vld [vmem:[#allocation10 + $0x520] sm:$0xff]
    %v3912 = vld [vmem:[#allocation10 + $0x528] sm:$0xff]
    %v3913 = vld [vmem:[#allocation10 + $0x530] sm:$0xff]
    %v3914 = vld [vmem:[#allocation10 + $0x538] sm:$0xff]
    %v3915 = vld [vmem:[#allocation10 + $0x540] sm:$0xff]
    %v3916 = vld [vmem:[#allocation10 + $0x548] sm:$0xff]
    %v3917 = vld [vmem:[#allocation10 + $0x550] sm:$0xff]
    %v3918 = vld [vmem:[#allocation10 + $0x558] sm:$0xff]
    %v3919 = vld [vmem:[#allocation10 + $0x560] sm:$0xff]
    %v3920 = vld [vmem:[#allocation10 + $0x568] sm:$0xff]
    %v3921 = vld [vmem:[#allocation10 + $0x570] sm:$0xff]
    %v3922 = vld [vmem:[#allocation10 + $0x578] sm:$0xff]
    %v3923 = vld [vmem:[#allocation10 + $0x580] sm:$0xff]
    %v3924 = vld [vmem:[#allocation10 + $0x588] sm:$0xff]
    %v3925 = vld [vmem:[#allocation10 + $0x590] sm:$0xff]
    %v3926 = vld [vmem:[#allocation10 + $0x598] sm:$0xff]
    %v3927 = vld [vmem:[#allocation10 + $0x5a0] sm:$0xff]
    %v3928 = vld [vmem:[#allocation10 + $0x5a8] sm:$0xff]
    %v3929 = vld [vmem:[#allocation10 + $0x5b0] sm:$0xff]
    %v3930 = vld [vmem:[#allocation10 + $0x5b8] sm:$0xff]
    %v3931 = vld [vmem:[#allocation10 + $0x5c0] sm:$0xff]
    %v3932 = vld [vmem:[#allocation10 + $0x5c8] sm:$0xff]
    %v3933 = vld [vmem:[#allocation10 + $0x5d0] sm:$0xff]
    %v3934 = vld [vmem:[#allocation10 + $0x5d8] sm:$0xff]
    %v3935 = vld [vmem:[#allocation10 + $0x5e0] sm:$0xff]
    %v3936 = vld [vmem:[#allocation10 + $0x5e8] sm:$0xff]
    %v3937 = vld [vmem:[#allocation10 + $0x5f0] sm:$0xff]
    %v3938 = vld [vmem:[#allocation10 + $0x5f8] sm:$0xff]
    %v3939 = vld [vmem:[#allocation10 + $0x600] sm:$0xff]
    %v3940 = vld [vmem:[#allocation10 + $0x608] sm:$0xff]
    %v3941 = vld [vmem:[#allocation10 + $0x610] sm:$0xff]
    %v3942 = vld [vmem:[#allocation10 + $0x618] sm:$0xff]
    %v3943 = vld [vmem:[#allocation10 + $0x620] sm:$0xff]
    %v3944 = vld [vmem:[#allocation10 + $0x628] sm:$0xff]
    %v3945 = vld [vmem:[#allocation10 + $0x630] sm:$0xff]
    %v3946 = vld [vmem:[#allocation10 + $0x638] sm:$0xff]
    %v3947 = vld [vmem:[#allocation10 + $0x640] sm:$0xff]
    %v3948 = vld [vmem:[#allocation10 + $0x648] sm:$0xff]
    %v3949 = vld [vmem:[#allocation10 + $0x650] sm:$0xff]
    %v3950 = vld [vmem:[#allocation10 + $0x658] sm:$0xff]
    %v3951 = vld [vmem:[#allocation10 + $0x660] sm:$0xff]
    %v3952 = vld [vmem:[#allocation10 + $0x668] sm:$0xff]
    %v3953 = vld [vmem:[#allocation10 + $0x670] sm:$0xff]
    %v3954 = vld [vmem:[#allocation10 + $0x678] sm:$0xff]
    %v3955 = vld [vmem:[#allocation10 + $0x680] sm:$0xff]
    %v3956 = vld [vmem:[#allocation10 + $0x688] sm:$0xff]
    %v3957 = vld [vmem:[#allocation10 + $0x690] sm:$0xff]
    %v3958 = vld [vmem:[#allocation10 + $0x698] sm:$0xff]
    %v3959 = vld [vmem:[#allocation10 + $0x6a0] sm:$0xff]
    %v3960 = vld [vmem:[#allocation10 + $0x6a8] sm:$0xff]
    %v3961 = vld [vmem:[#allocation10 + $0x6b0] sm:$0xff]
    %v3962 = vld [vmem:[#allocation10 + $0x6b8] sm:$0xff]
    %v3963 = vld [vmem:[#allocation10 + $0x6c0] sm:$0xff]
    %v3964 = vld [vmem:[#allocation10 + $0x6c8] sm:$0xff]
    %v3965 = vld [vmem:[#allocation10 + $0x6d0] sm:$0xff]
    %v3966 = vld [vmem:[#allocation10 + $0x6d8] sm:$0xff]
    %v3967 = vld [vmem:[#allocation10 + $0x6e0] sm:$0xff]
    %v3968 = vld [vmem:[#allocation10 + $0x6e8] sm:$0xff]
    %v3969 = vld [vmem:[#allocation10 + $0x6f0] sm:$0xff]
    %v3970 = vld [vmem:[#allocation10 + $0x6f8] sm:$0xff]
    %v3971 = vld [vmem:[#allocation10 + $0x700] sm:$0xff]
    %v3972 = vld [vmem:[#allocation10 + $0x708] sm:$0xff]
    %v3973 = vld [vmem:[#allocation10 + $0x710] sm:$0xff]
    %v3974 = vld [vmem:[#allocation10 + $0x718] sm:$0xff]
    %v3975 = vld [vmem:[#allocation10 + $0x720] sm:$0xff]
    %v3976 = vld [vmem:[#allocation10 + $0x728] sm:$0xff]
    %v3977 = vld [vmem:[#allocation10 + $0x730] sm:$0xff]
    %v3978 = vld [vmem:[#allocation10 + $0x738] sm:$0xff]
    %v3979 = vld [vmem:[#allocation10 + $0x740] sm:$0xff]
    %v3980 = vld [vmem:[#allocation10 + $0x748] sm:$0xff]
    %v3981 = vld [vmem:[#allocation10 + $0x750] sm:$0xff]
    %v3982 = vld [vmem:[#allocation10 + $0x758] sm:$0xff]
    %v3983 = vld [vmem:[#allocation10 + $0x760] sm:$0xff]
    %v3984 = vld [vmem:[#allocation10 + $0x768] sm:$0xff]
    %v3985 = vld [vmem:[#allocation10 + $0x770] sm:$0xff]
    %v3986 = vld [vmem:[#allocation10 + $0x778] sm:$0xff]
    %v3987 = vld [vmem:[#allocation10 + $0x780] sm:$0xff]
    %v3988 = vld [vmem:[#allocation10 + $0x788] sm:$0xff]
    %v3989 = vld [vmem:[#allocation10 + $0x790] sm:$0xff]
    %v3990 = vld [vmem:[#allocation10 + $0x798] sm:$0xff]
    %v3991 = vld [vmem:[#allocation10 + $0x7a0] sm:$0xff]
    %v3992 = vld [vmem:[#allocation10 + $0x7a8] sm:$0xff]
    %v3993 = vld [vmem:[#allocation10 + $0x7b0] sm:$0xff]
    %v3994 = vld [vmem:[#allocation10 + $0x7b8] sm:$0xff]
    %v3995 = vld [vmem:[#allocation10 + $0x7c0] sm:$0xff]
    %v3996 = vld [vmem:[#allocation10 + $0x7c8] sm:$0xff]
    %v3997 = vld [vmem:[#allocation10 + $0x7d0] sm:$0xff]
    %v3998 = vld [vmem:[#allocation10 + $0x7d8] sm:$0xff]
    %v3999 = vld [vmem:[#allocation10 + $0x7e0] sm:$0xff]
    %v4000 = vld [vmem:[#allocation10 + $0x7e8] sm:$0xff]
    %v4001 = vld [vmem:[#allocation10 + $0x7f0] sm:$0xff]
    %v4002 = vld [vmem:[#allocation10 + $0x7f8] sm:$0xff]
    %v4259 = vunpack.c.l.b16 %v3747
    %v4260 = vunpack.c.h.b16 %v3747
    %v4261 = vunpack.c.l.b16 %v3748
    %v4262 = vunpack.c.h.b16 %v3748
    %v4263 = vunpack.c.l.b16 %v3749
    %v4264 = vunpack.c.h.b16 %v3749
    %v4265 = vunpack.c.l.b16 %v3750
    %v4266 = vunpack.c.h.b16 %v3750
    %v4267 = vunpack.c.l.b16 %v3751
    %v4268 = vunpack.c.h.b16 %v3751
    %v4269 = vunpack.c.l.b16 %v3752
    %v4270 = vunpack.c.h.b16 %v3752
    %v4271 = vunpack.c.l.b16 %v3753
    %v4272 = vunpack.c.h.b16 %v3753
    %v4273 = vunpack.c.l.b16 %v3754
    %v4274 = vunpack.c.h.b16 %v3754
    %v4275 = vunpack.c.l.b16 %v3755
    %v4276 = vunpack.c.h.b16 %v3755
    %v4277 = vunpack.c.l.b16 %v3756
    %v4278 = vunpack.c.h.b16 %v3756
    %v4279 = vunpack.c.l.b16 %v3757
    %v4280 = vunpack.c.h.b16 %v3757
    %v4281 = vunpack.c.l.b16 %v3758
    %v4282 = vunpack.c.h.b16 %v3758
    %v4283 = vunpack.c.l.b16 %v3759
    %v4284 = vunpack.c.h.b16 %v3759
    %v4285 = vunpack.c.l.b16 %v3760
    %v4286 = vunpack.c.h.b16 %v3760
    %v4287 = vunpack.c.l.b16 %v3761
    %v4288 = vunpack.c.h.b16 %v3761
    %v4289 = vunpack.c.l.b16 %v3762
    %v4290 = vunpack.c.h.b16 %v3762
    %v4291 = vunpack.c.l.b16 %v3763
    %v4292 = vunpack.c.h.b16 %v3763
    %v4293 = vunpack.c.l.b16 %v3764
    %v4294 = vunpack.c.h.b16 %v3764
    %v4295 = vunpack.c.l.b16 %v3765
    %v4296 = vunpack.c.h.b16 %v3765
    %v4297 = vunpack.c.l.b16 %v3766
    %v4298 = vunpack.c.h.b16 %v3766
    %v4299 = vunpack.c.l.b16 %v3767
    %v4300 = vunpack.c.h.b16 %v3767
    %v4301 = vunpack.c.l.b16 %v3768
    %v4302 = vunpack.c.h.b16 %v3768
    %v4303 = vunpack.c.l.b16 %v3769
    %v4304 = vunpack.c.h.b16 %v3769
    %v4305 = vunpack.c.l.b16 %v3770
    %v4306 = vunpack.c.h.b16 %v3770
    %v4307 = vunpack.c.l.b16 %v3771
    %v4308 = vunpack.c.h.b16 %v3771
    %v4309 = vunpack.c.l.b16 %v3772
    %v4310 = vunpack.c.h.b16 %v3772
    %v4311 = vunpack.c.l.b16 %v3773
    %v4312 = vunpack.c.h.b16 %v3773
    %v4313 = vunpack.c.l.b16 %v3774
    %v4314 = vunpack.c.h.b16 %v3774
    %v4315 = vunpack.c.l.b16 %v3775
    %v4316 = vunpack.c.h.b16 %v3775
    %v4317 = vunpack.c.l.b16 %v3776
    %v4318 = vunpack.c.h.b16 %v3776
    %v4319 = vunpack.c.l.b16 %v3777
    %v4320 = vunpack.c.h.b16 %v3777
    %v4321 = vunpack.c.l.b16 %v3778
    %v4322 = vunpack.c.h.b16 %v3778
    %v4323 = vunpack.c.l.b16 %v3779
    %v4324 = vunpack.c.h.b16 %v3779
    %v4325 = vunpack.c.l.b16 %v3780
    %v4326 = vunpack.c.h.b16 %v3780
    %v4327 = vunpack.c.l.b16 %v3781
    %v4328 = vunpack.c.h.b16 %v3781
    %v4329 = vunpack.c.l.b16 %v3782
    %v4330 = vunpack.c.h.b16 %v3782
    %v4331 = vunpack.c.l.b16 %v3783
    %v4332 = vunpack.c.h.b16 %v3783
    %v4333 = vunpack.c.l.b16 %v3784
    %v4334 = vunpack.c.h.b16 %v3784
    %v4335 = vunpack.c.l.b16 %v3785
    %v4336 = vunpack.c.h.b16 %v3785
    %v4337 = vunpack.c.l.b16 %v3786
    %v4338 = vunpack.c.h.b16 %v3786
    %v4339 = vunpack.c.l.b16 %v3787
    %v4340 = vunpack.c.h.b16 %v3787
    %v4341 = vunpack.c.l.b16 %v3788
    %v4342 = vunpack.c.h.b16 %v3788
    %v4343 = vunpack.c.l.b16 %v3789
    %v4344 = vunpack.c.h.b16 %v3789
    %v4345 = vunpack.c.l.b16 %v3790
    %v4346 = vunpack.c.h.b16 %v3790
    %v4347 = vunpack.c.l.b16 %v3791
    %v4348 = vunpack.c.h.b16 %v3791
    %v4349 = vunpack.c.l.b16 %v3792
    %v4350 = vunpack.c.h.b16 %v3792
    %v4351 = vunpack.c.l.b16 %v3793
    %v4352 = vunpack.c.h.b16 %v3793
    %v4353 = vunpack.c.l.b16 %v3794
    %v4354 = vunpack.c.h.b16 %v3794
    %v4355 = vunpack.c.l.b16 %v3795
    %v4356 = vunpack.c.h.b16 %v3795
    %v4357 = vunpack.c.l.b16 %v3796
    %v4358 = vunpack.c.h.b16 %v3796
    %v4359 = vunpack.c.l.b16 %v3797
    %v4360 = vunpack.c.h.b16 %v3797
    %v4361 = vunpack.c.l.b16 %v3798
    %v4362 = vunpack.c.h.b16 %v3798
    %v4363 = vunpack.c.l.b16 %v3799
    %v4364 = vunpack.c.h.b16 %v3799
    %v4365 = vunpack.c.l.b16 %v3800
    %v4366 = vunpack.c.h.b16 %v3800
    %v4367 = vunpack.c.l.b16 %v3801
    %v4368 = vunpack.c.h.b16 %v3801
    %v4369 = vunpack.c.l.b16 %v3802
    %v4370 = vunpack.c.h.b16 %v3802
    %v4371 = vunpack.c.l.b16 %v3803
    %v4372 = vunpack.c.h.b16 %v3803
    %v4373 = vunpack.c.l.b16 %v3804
    %v4374 = vunpack.c.h.b16 %v3804
    %v4375 = vunpack.c.l.b16 %v3805
    %v4376 = vunpack.c.h.b16 %v3805
    %v4377 = vunpack.c.l.b16 %v3806
    %v4378 = vunpack.c.h.b16 %v3806
    %v4379 = vunpack.c.l.b16 %v3807
    %v4380 = vunpack.c.h.b16 %v3807
    %v4381 = vunpack.c.l.b16 %v3808
    %v4382 = vunpack.c.h.b16 %v3808
    %v4383 = vunpack.c.l.b16 %v3809
    %v4384 = vunpack.c.h.b16 %v3809
    %v4385 = vunpack.c.l.b16 %v3810
    %v4386 = vunpack.c.h.b16 %v3810
    %v4387 = vunpack.c.l.b16 %v3811
    %v4388 = vunpack.c.h.b16 %v3811
    %v4389 = vunpack.c.l.b16 %v3812
    %v4390 = vunpack.c.h.b16 %v3812
    %v4391 = vunpack.c.l.b16 %v3813
    %v4392 = vunpack.c.h.b16 %v3813
    %v4393 = vunpack.c.l.b16 %v3814
    %v4394 = vunpack.c.h.b16 %v3814
    %v4395 = vunpack.c.l.b16 %v3815
    %v4396 = vunpack.c.h.b16 %v3815
    %v4397 = vunpack.c.l.b16 %v3816
    %v4398 = vunpack.c.h.b16 %v3816
    %v4399 = vunpack.c.l.b16 %v3817
    %v4400 = vunpack.c.h.b16 %v3817
    %v4401 = vunpack.c.l.b16 %v3818
    %v4402 = vunpack.c.h.b16 %v3818
    %v4403 = vunpack.c.l.b16 %v3819
    %v4404 = vunpack.c.h.b16 %v3819
    %v4405 = vunpack.c.l.b16 %v3820
    %v4406 = vunpack.c.h.b16 %v3820
    %v4407 = vunpack.c.l.b16 %v3821
    %v4408 = vunpack.c.h.b16 %v3821
    %v4409 = vunpack.c.l.b16 %v3822
    %v4410 = vunpack.c.h.b16 %v3822
    %v4411 = vunpack.c.l.b16 %v3823
    %v4412 = vunpack.c.h.b16 %v3823
    %v4413 = vunpack.c.l.b16 %v3824
    %v4414 = vunpack.c.h.b16 %v3824
    %v4415 = vunpack.c.l.b16 %v3825
    %v4416 = vunpack.c.h.b16 %v3825
    %v4417 = vunpack.c.l.b16 %v3826
    %v4418 = vunpack.c.h.b16 %v3826
    %v4419 = vunpack.c.l.b16 %v3827
    %v4420 = vunpack.c.h.b16 %v3827
    %v4421 = vunpack.c.l.b16 %v3828
    %v4422 = vunpack.c.h.b16 %v3828
    %v4423 = vunpack.c.l.b16 %v3829
    %v4424 = vunpack.c.h.b16 %v3829
    %v4425 = vunpack.c.l.b16 %v3830
    %v4426 = vunpack.c.h.b16 %v3830
    %v4427 = vunpack.c.l.b16 %v3831
    %v4428 = vunpack.c.h.b16 %v3831
    %v4429 = vunpack.c.l.b16 %v3832
    %v4430 = vunpack.c.h.b16 %v3832
    %v4431 = vunpack.c.l.b16 %v3833
    %v4432 = vunpack.c.h.b16 %v3833
    %v4433 = vunpack.c.l.b16 %v3834
    %v4434 = vunpack.c.h.b16 %v3834
    %v4435 = vunpack.c.l.b16 %v3835
    %v4436 = vunpack.c.h.b16 %v3835
    %v4437 = vunpack.c.l.b16 %v3836
    %v4438 = vunpack.c.h.b16 %v3836
    %v4439 = vunpack.c.l.b16 %v3837
    %v4440 = vunpack.c.h.b16 %v3837
    %v4441 = vunpack.c.l.b16 %v3838
    %v4442 = vunpack.c.h.b16 %v3838
    %v4443 = vunpack.c.l.b16 %v3839
    %v4444 = vunpack.c.h.b16 %v3839
    %v4445 = vunpack.c.l.b16 %v3840
    %v4446 = vunpack.c.h.b16 %v3840
    %v4447 = vunpack.c.l.b16 %v3841
    %v4448 = vunpack.c.h.b16 %v3841
    %v4449 = vunpack.c.l.b16 %v3842
    %v4450 = vunpack.c.h.b16 %v3842
    %v4451 = vunpack.c.l.b16 %v3843
    %v4452 = vunpack.c.h.b16 %v3843
    %v4453 = vunpack.c.l.b16 %v3844
    %v4454 = vunpack.c.h.b16 %v3844
    %v4455 = vunpack.c.l.b16 %v3845
    %v4456 = vunpack.c.h.b16 %v3845
    %v4457 = vunpack.c.l.b16 %v3846
    %v4458 = vunpack.c.h.b16 %v3846
    %v4459 = vunpack.c.l.b16 %v3847
    %v4460 = vunpack.c.h.b16 %v3847
    %v4461 = vunpack.c.l.b16 %v3848
    %v4462 = vunpack.c.h.b16 %v3848
    %v4463 = vunpack.c.l.b16 %v3849
    %v4464 = vunpack.c.h.b16 %v3849
    %v4465 = vunpack.c.l.b16 %v3850
    %v4466 = vunpack.c.h.b16 %v3850
    %v4467 = vunpack.c.l.b16 %v3851
    %v4468 = vunpack.c.h.b16 %v3851
    %v4469 = vunpack.c.l.b16 %v3852
    %v4470 = vunpack.c.h.b16 %v3852
    %v4471 = vunpack.c.l.b16 %v3853
    %v4472 = vunpack.c.h.b16 %v3853
    %v4473 = vunpack.c.l.b16 %v3854
    %v4474 = vunpack.c.h.b16 %v3854
    %v4475 = vunpack.c.l.b16 %v3855
    %v4476 = vunpack.c.h.b16 %v3855
    %v4477 = vunpack.c.l.b16 %v3856
    %v4478 = vunpack.c.h.b16 %v3856
    %v4479 = vunpack.c.l.b16 %v3857
    %v4480 = vunpack.c.h.b16 %v3857
    %v4481 = vunpack.c.l.b16 %v3858
    %v4482 = vunpack.c.h.b16 %v3858
    %v4483 = vunpack.c.l.b16 %v3859
    %v4484 = vunpack.c.h.b16 %v3859
    %v4485 = vunpack.c.l.b16 %v3860
    %v4486 = vunpack.c.h.b16 %v3860
    %v4487 = vunpack.c.l.b16 %v3861
    %v4488 = vunpack.c.h.b16 %v3861
    %v4489 = vunpack.c.l.b16 %v3862
    %v4490 = vunpack.c.h.b16 %v3862
    %v4491 = vunpack.c.l.b16 %v3863
    %v4492 = vunpack.c.h.b16 %v3863
    %v4493 = vunpack.c.l.b16 %v3864
    %v4494 = vunpack.c.h.b16 %v3864
    %v4495 = vunpack.c.l.b16 %v3865
    %v4496 = vunpack.c.h.b16 %v3865
    %v4497 = vunpack.c.l.b16 %v3866
    %v4498 = vunpack.c.h.b16 %v3866
    %v4499 = vunpack.c.l.b16 %v3867
    %v4500 = vunpack.c.h.b16 %v3867
    %v4501 = vunpack.c.l.b16 %v3868
    %v4502 = vunpack.c.h.b16 %v3868
    %v4503 = vunpack.c.l.b16 %v3869
    %v4504 = vunpack.c.h.b16 %v3869
    %v4505 = vunpack.c.l.b16 %v3870
    %v4506 = vunpack.c.h.b16 %v3870
    %v4507 = vunpack.c.l.b16 %v3871
    %v4508 = vunpack.c.h.b16 %v3871
    %v4509 = vunpack.c.l.b16 %v3872
    %v4510 = vunpack.c.h.b16 %v3872
    %v4511 = vunpack.c.l.b16 %v3873
    %v4512 = vunpack.c.h.b16 %v3873
    %v4513 = vunpack.c.l.b16 %v3874
    %v4514 = vunpack.c.h.b16 %v3874
    %v4515 = vunpack.c.l.b16 %v3875
    %v4516 = vunpack.c.h.b16 %v3875
    %v4517 = vunpack.c.l.b16 %v3876
    %v4518 = vunpack.c.h.b16 %v3876
    %v4519 = vunpack.c.l.b16 %v3877
    %v4520 = vunpack.c.h.b16 %v3877
    %v4521 = vunpack.c.l.b16 %v3878
    %v4522 = vunpack.c.h.b16 %v3878
    %v4523 = vunpack.c.l.b16 %v3879
    %v4524 = vunpack.c.h.b16 %v3879
    %v4525 = vunpack.c.l.b16 %v3880
    %v4526 = vunpack.c.h.b16 %v3880
    %v4527 = vunpack.c.l.b16 %v3881
    %v4528 = vunpack.c.h.b16 %v3881
    %v4529 = vunpack.c.l.b16 %v3882
    %v4530 = vunpack.c.h.b16 %v3882
    %v4531 = vunpack.c.l.b16 %v3883
    %v4532 = vunpack.c.h.b16 %v3883
    %v4533 = vunpack.c.l.b16 %v3884
    %v4534 = vunpack.c.h.b16 %v3884
    %v4535 = vunpack.c.l.b16 %v3885
    %v4536 = vunpack.c.h.b16 %v3885
    %v4537 = vunpack.c.l.b16 %v3886
    %v4538 = vunpack.c.h.b16 %v3886
    %v4539 = vunpack.c.l.b16 %v3887
    %v4540 = vunpack.c.h.b16 %v3887
    %v4541 = vunpack.c.l.b16 %v3888
    %v4542 = vunpack.c.h.b16 %v3888
    %v4543 = vunpack.c.l.b16 %v3889
    %v4544 = vunpack.c.h.b16 %v3889
    %v4545 = vunpack.c.l.b16 %v3890
    %v4546 = vunpack.c.h.b16 %v3890
    %v4547 = vunpack.c.l.b16 %v3891
    %v4548 = vunpack.c.h.b16 %v3891
    %v4549 = vunpack.c.l.b16 %v3892
    %v4550 = vunpack.c.h.b16 %v3892
    %v4551 = vunpack.c.l.b16 %v3893
    %v4552 = vunpack.c.h.b16 %v3893
    %v4553 = vunpack.c.l.b16 %v3894
    %v4554 = vunpack.c.h.b16 %v3894
    %v4555 = vunpack.c.l.b16 %v3895
    %v4556 = vunpack.c.h.b16 %v3895
    %v4557 = vunpack.c.l.b16 %v3896
    %v4558 = vunpack.c.h.b16 %v3896
    %v4559 = vunpack.c.l.b16 %v3897
    %v4560 = vunpack.c.h.b16 %v3897
    %v4561 = vunpack.c.l.b16 %v3898
    %v4562 = vunpack.c.h.b16 %v3898
    %v4563 = vunpack.c.l.b16 %v3899
    %v4564 = vunpack.c.h.b16 %v3899
    %v4565 = vunpack.c.l.b16 %v3900
    %v4566 = vunpack.c.h.b16 %v3900
    %v4567 = vunpack.c.l.b16 %v3901
    %v4568 = vunpack.c.h.b16 %v3901
    %v4569 = vunpack.c.l.b16 %v3902
    %v4570 = vunpack.c.h.b16 %v3902
    %v4571 = vunpack.c.l.b16 %v3903
    %v4572 = vunpack.c.h.b16 %v3903
    %v4573 = vunpack.c.l.b16 %v3904
    %v4574 = vunpack.c.h.b16 %v3904
    %v4575 = vunpack.c.l.b16 %v3905
    %v4576 = vunpack.c.h.b16 %v3905
    %v4577 = vunpack.c.l.b16 %v3906
    %v4578 = vunpack.c.h.b16 %v3906
    %v4579 = vunpack.c.l.b16 %v3907
    %v4580 = vunpack.c.h.b16 %v3907
    %v4581 = vunpack.c.l.b16 %v3908
    %v4582 = vunpack.c.h.b16 %v3908
    %v4583 = vunpack.c.l.b16 %v3909
    %v4584 = vunpack.c.h.b16 %v3909
    %v4585 = vunpack.c.l.b16 %v3910
    %v4586 = vunpack.c.h.b16 %v3910
    %v4587 = vunpack.c.l.b16 %v3911
    %v4588 = vunpack.c.h.b16 %v3911
    %v4589 = vunpack.c.l.b16 %v3912
    %v4590 = vunpack.c.h.b16 %v3912
    %v4591 = vunpack.c.l.b16 %v3913
    %v4592 = vunpack.c.h.b16 %v3913
    %v4593 = vunpack.c.l.b16 %v3914
    %v4594 = vunpack.c.h.b16 %v3914
    %v4595 = vunpack.c.l.b16 %v3915
    %v4596 = vunpack.c.h.b16 %v3915
    %v4597 = vunpack.c.l.b16 %v3916
    %v4598 = vunpack.c.h.b16 %v3916
    %v4599 = vunpack.c.l.b16 %v3917
    %v4600 = vunpack.c.h.b16 %v3917
    %v4601 = vunpack.c.l.b16 %v3918
    %v4602 = vunpack.c.h.b16 %v3918
    %v4603 = vunpack.c.l.b16 %v3919
    %v4604 = vunpack.c.h.b16 %v3919
    %v4605 = vunpack.c.l.b16 %v3920
    %v4606 = vunpack.c.h.b16 %v3920
    %v4607 = vunpack.c.l.b16 %v3921
    %v4608 = vunpack.c.h.b16 %v3921
    %v4609 = vunpack.c.l.b16 %v3922
    %v4610 = vunpack.c.h.b16 %v3922
    %v4611 = vunpack.c.l.b16 %v3923
    %v4612 = vunpack.c.h.b16 %v3923
    %v4613 = vunpack.c.l.b16 %v3924
    %v4614 = vunpack.c.h.b16 %v3924
    %v4615 = vunpack.c.l.b16 %v3925
    %v4616 = vunpack.c.h.b16 %v3925
    %v4617 = vunpack.c.l.b16 %v3926
    %v4618 = vunpack.c.h.b16 %v3926
    %v4619 = vunpack.c.l.b16 %v3927
    %v4620 = vunpack.c.h.b16 %v3927
    %v4621 = vunpack.c.l.b16 %v3928
    %v4622 = vunpack.c.h.b16 %v3928
    %v4623 = vunpack.c.l.b16 %v3929
    %v4624 = vunpack.c.h.b16 %v3929
    %v4625 = vunpack.c.l.b16 %v3930
    %v4626 = vunpack.c.h.b16 %v3930
    %v4627 = vunpack.c.l.b16 %v3931
    %v4628 = vunpack.c.h.b16 %v3931
    %v4629 = vunpack.c.l.b16 %v3932
    %v4630 = vunpack.c.h.b16 %v3932
    %v4631 = vunpack.c.l.b16 %v3933
    %v4632 = vunpack.c.h.b16 %v3933
    %v4633 = vunpack.c.l.b16 %v3934
    %v4634 = vunpack.c.h.b16 %v3934
    %v4635 = vunpack.c.l.b16 %v3935
    %v4636 = vunpack.c.h.b16 %v3935
    %v4637 = vunpack.c.l.b16 %v3936
    %v4638 = vunpack.c.h.b16 %v3936
    %v4639 = vunpack.c.l.b16 %v3937
    %v4640 = vunpack.c.h.b16 %v3937
    %v4641 = vunpack.c.l.b16 %v3938
    %v4642 = vunpack.c.h.b16 %v3938
    %v4643 = vunpack.c.l.b16 %v3939
    %v4644 = vunpack.c.h.b16 %v3939
    %v4645 = vunpack.c.l.b16 %v3940
    %v4646 = vunpack.c.h.b16 %v3940
    %v4647 = vunpack.c.l.b16 %v3941
    %v4648 = vunpack.c.h.b16 %v3941
    %v4649 = vunpack.c.l.b16 %v3942
    %v4650 = vunpack.c.h.b16 %v3942
    %v4651 = vunpack.c.l.b16 %v3943
    %v4652 = vunpack.c.h.b16 %v3943
    %v4653 = vunpack.c.l.b16 %v3944
    %v4654 = vunpack.c.h.b16 %v3944
    %v4655 = vunpack.c.l.b16 %v3945
    %v4656 = vunpack.c.h.b16 %v3945
    %v4657 = vunpack.c.l.b16 %v3946
    %v4658 = vunpack.c.h.b16 %v3946
    %v4659 = vunpack.c.l.b16 %v3947
    %v4660 = vunpack.c.h.b16 %v3947
    %v4661 = vunpack.c.l.b16 %v3948
    %v4662 = vunpack.c.h.b16 %v3948
    %v4663 = vunpack.c.l.b16 %v3949
    %v4664 = vunpack.c.h.b16 %v3949
    %v4665 = vunpack.c.l.b16 %v3950
    %v4666 = vunpack.c.h.b16 %v3950
    %v4667 = vunpack.c.l.b16 %v3951
    %v4668 = vunpack.c.h.b16 %v3951
    %v4669 = vunpack.c.l.b16 %v3952
    %v4670 = vunpack.c.h.b16 %v3952
    %v4671 = vunpack.c.l.b16 %v3953
    %v4672 = vunpack.c.h.b16 %v3953
    %v4673 = vunpack.c.l.b16 %v3954
    %v4674 = vunpack.c.h.b16 %v3954
    %v4675 = vunpack.c.l.b16 %v3955
    %v4676 = vunpack.c.h.b16 %v3955
    %v4677 = vunpack.c.l.b16 %v3956
    %v4678 = vunpack.c.h.b16 %v3956
    %v4679 = vunpack.c.l.b16 %v3957
    %v4680 = vunpack.c.h.b16 %v3957
    %v4681 = vunpack.c.l.b16 %v3958
    %v4682 = vunpack.c.h.b16 %v3958
    %v4683 = vunpack.c.l.b16 %v3959
    %v4684 = vunpack.c.h.b16 %v3959
    %v4685 = vunpack.c.l.b16 %v3960
    %v4686 = vunpack.c.h.b16 %v3960
    %v4687 = vunpack.c.l.b16 %v3961
    %v4688 = vunpack.c.h.b16 %v3961
    %v4689 = vunpack.c.l.b16 %v3962
    %v4690 = vunpack.c.h.b16 %v3962
    %v4691 = vunpack.c.l.b16 %v3963
    %v4692 = vunpack.c.h.b16 %v3963
    %v4693 = vunpack.c.l.b16 %v3964
    %v4694 = vunpack.c.h.b16 %v3964
    %v4695 = vunpack.c.l.b16 %v3965
    %v4696 = vunpack.c.h.b16 %v3965
    %v4697 = vunpack.c.l.b16 %v3966
    %v4698 = vunpack.c.h.b16 %v3966
    %v4699 = vunpack.c.l.b16 %v3967
    %v4700 = vunpack.c.h.b16 %v3967
    %v4701 = vunpack.c.l.b16 %v3968
    %v4702 = vunpack.c.h.b16 %v3968
    %v4703 = vunpack.c.l.b16 %v3969
    %v4704 = vunpack.c.h.b16 %v3969
    %v4705 = vunpack.c.l.b16 %v3970
    %v4706 = vunpack.c.h.b16 %v3970
    %v4707 = vunpack.c.l.b16 %v3971
    %v4708 = vunpack.c.h.b16 %v3971
    %v4709 = vunpack.c.l.b16 %v3972
    %v4710 = vunpack.c.h.b16 %v3972
    %v4711 = vunpack.c.l.b16 %v3973
    %v4712 = vunpack.c.h.b16 %v3973
    %v4713 = vunpack.c.l.b16 %v3974
    %v4714 = vunpack.c.h.b16 %v3974
    %v4715 = vunpack.c.l.b16 %v3975
    %v4716 = vunpack.c.h.b16 %v3975
    %v4717 = vunpack.c.l.b16 %v3976
    %v4718 = vunpack.c.h.b16 %v3976
    %v4719 = vunpack.c.l.b16 %v3977
    %v4720 = vunpack.c.h.b16 %v3977
    %v4721 = vunpack.c.l.b16 %v3978
    %v4722 = vunpack.c.h.b16 %v3978
    %v4723 = vunpack.c.l.b16 %v3979
    %v4724 = vunpack.c.h.b16 %v3979
    %v4725 = vunpack.c.l.b16 %v3980
    %v4726 = vunpack.c.h.b16 %v3980
    %v4727 = vunpack.c.l.b16 %v3981
    %v4728 = vunpack.c.h.b16 %v3981
    %v4729 = vunpack.c.l.b16 %v3982
    %v4730 = vunpack.c.h.b16 %v3982
    %v4731 = vunpack.c.l.b16 %v3983
    %v4732 = vunpack.c.h.b16 %v3983
    %v4733 = vunpack.c.l.b16 %v3984
    %v4734 = vunpack.c.h.b16 %v3984
    %v4735 = vunpack.c.l.b16 %v3985
    %v4736 = vunpack.c.h.b16 %v3985
    %v4737 = vunpack.c.l.b16 %v3986
    %v4738 = vunpack.c.h.b16 %v3986
    %v4739 = vunpack.c.l.b16 %v3987
    %v4740 = vunpack.c.h.b16 %v3987
    %v4741 = vunpack.c.l.b16 %v3988
    %v4742 = vunpack.c.h.b16 %v3988
    %v4743 = vunpack.c.l.b16 %v3989
    %v4744 = vunpack.c.h.b16 %v3989
    %v4745 = vunpack.c.l.b16 %v3990
    %v4746 = vunpack.c.h.b16 %v3990
    %v4747 = vunpack.c.l.b16 %v3991
    %v4748 = vunpack.c.h.b16 %v3991
    %v4749 = vunpack.c.l.b16 %v3992
    %v4750 = vunpack.c.h.b16 %v3992
    %v4751 = vunpack.c.l.b16 %v3993
    %v4752 = vunpack.c.h.b16 %v3993
    %v4753 = vunpack.c.l.b16 %v3994
    %v4754 = vunpack.c.h.b16 %v3994
    %v4755 = vunpack.c.l.b16 %v3995
    %v4756 = vunpack.c.h.b16 %v3995
    %v4757 = vunpack.c.l.b16 %v3996
    %v4758 = vunpack.c.h.b16 %v3996
    %v4759 = vunpack.c.l.b16 %v3997
    %v4760 = vunpack.c.h.b16 %v3997
    %v4761 = vunpack.c.l.b16 %v3998
    %v4762 = vunpack.c.h.b16 %v3998
    %v4763 = vunpack.c.l.b16 %v3999
    %v4764 = vunpack.c.h.b16 %v3999
    %v4765 = vunpack.c.l.b16 %v4000
    %v4766 = vunpack.c.h.b16 %v4000
    %v4767 = vunpack.c.l.b16 %v4001
    %v4768 = vunpack.c.h.b16 %v4001
    %v4769 = vunpack.c.l.b16 %v4002
    %v4770 = vunpack.c.h.b16 %v4002
    %v4771 = vpack.c.b16 %v4263, %v4259
    %v4772 = vpack.c.b16 %v4264, %v4260
    %v4773 = vpack.c.b16 %v4265, %v4261
    %v4774 = vpack.c.b16 %v4266, %v4262
    %v4775 = vpack.c.b16 %v4271, %v4267
    %v4776 = vpack.c.b16 %v4272, %v4268
    %v4777 = vpack.c.b16 %v4273, %v4269
    %v4778 = vpack.c.b16 %v4274, %v4270
    %v4779 = vpack.c.b16 %v4279, %v4275
    %v4780 = vpack.c.b16 %v4280, %v4276
    %v4781 = vpack.c.b16 %v4281, %v4277
    %v4782 = vpack.c.b16 %v4282, %v4278
    %v4783 = vpack.c.b16 %v4287, %v4283
    %v4784 = vpack.c.b16 %v4288, %v4284
    %v4785 = vpack.c.b16 %v4289, %v4285
    %v4786 = vpack.c.b16 %v4290, %v4286
    %v4787 = vpack.c.b16 %v4295, %v4291
    %v4788 = vpack.c.b16 %v4296, %v4292
    %v4789 = vpack.c.b16 %v4297, %v4293
    %v4790 = vpack.c.b16 %v4298, %v4294
    %v4791 = vpack.c.b16 %v4303, %v4299
    %v4792 = vpack.c.b16 %v4304, %v4300
    %v4793 = vpack.c.b16 %v4305, %v4301
    %v4794 = vpack.c.b16 %v4306, %v4302
    %v4795 = vpack.c.b16 %v4311, %v4307
    %v4796 = vpack.c.b16 %v4312, %v4308
    %v4797 = vpack.c.b16 %v4313, %v4309
    %v4798 = vpack.c.b16 %v4314, %v4310
    %v4799 = vpack.c.b16 %v4319, %v4315
    %v4800 = vpack.c.b16 %v4320, %v4316
    %v4801 = vpack.c.b16 %v4321, %v4317
    %v4802 = vpack.c.b16 %v4322, %v4318
    %v4803 = vpack.c.b16 %v4327, %v4323
    %v4804 = vpack.c.b16 %v4328, %v4324
    %v4805 = vpack.c.b16 %v4329, %v4325
    %v4806 = vpack.c.b16 %v4330, %v4326
    %v4807 = vpack.c.b16 %v4335, %v4331
    %v4808 = vpack.c.b16 %v4336, %v4332
    %v4809 = vpack.c.b16 %v4337, %v4333
    %v4810 = vpack.c.b16 %v4338, %v4334
    %v4811 = vpack.c.b16 %v4343, %v4339
    %v4812 = vpack.c.b16 %v4344, %v4340
    %v4813 = vpack.c.b16 %v4345, %v4341
    %v4814 = vpack.c.b16 %v4346, %v4342
    %v4815 = vpack.c.b16 %v4351, %v4347
    %v4816 = vpack.c.b16 %v4352, %v4348
    %v4817 = vpack.c.b16 %v4353, %v4349
    %v4818 = vpack.c.b16 %v4354, %v4350
    %v4819 = vpack.c.b16 %v4359, %v4355
    %v4820 = vpack.c.b16 %v4360, %v4356
    %v4821 = vpack.c.b16 %v4361, %v4357
    %v4822 = vpack.c.b16 %v4362, %v4358
    %v4823 = vpack.c.b16 %v4367, %v4363
    %v4824 = vpack.c.b16 %v4368, %v4364
    %v4825 = vpack.c.b16 %v4369, %v4365
    %v4826 = vpack.c.b16 %v4370, %v4366
    %v4827 = vpack.c.b16 %v4375, %v4371
    %v4828 = vpack.c.b16 %v4376, %v4372
    %v4829 = vpack.c.b16 %v4377, %v4373
    %v4830 = vpack.c.b16 %v4378, %v4374
    %v4831 = vpack.c.b16 %v4383, %v4379
    %v4832 = vpack.c.b16 %v4384, %v4380
    %v4833 = vpack.c.b16 %v4385, %v4381
    %v4834 = vpack.c.b16 %v4386, %v4382
    %v4835 = vpack.c.b16 %v4391, %v4387
    %v4836 = vpack.c.b16 %v4392, %v4388
    %v4837 = vpack.c.b16 %v4393, %v4389
    %v4838 = vpack.c.b16 %v4394, %v4390
    %v4839 = vpack.c.b16 %v4399, %v4395
    %v4840 = vpack.c.b16 %v4400, %v4396
    %v4841 = vpack.c.b16 %v4401, %v4397
    %v4842 = vpack.c.b16 %v4402, %v4398
    %v4843 = vpack.c.b16 %v4407, %v4403
    %v4844 = vpack.c.b16 %v4408, %v4404
    %v4845 = vpack.c.b16 %v4409, %v4405
    %v4846 = vpack.c.b16 %v4410, %v4406
    %v4847 = vpack.c.b16 %v4415, %v4411
    %v4848 = vpack.c.b16 %v4416, %v4412
    %v4849 = vpack.c.b16 %v4417, %v4413
    %v4850 = vpack.c.b16 %v4418, %v4414
    %v4851 = vpack.c.b16 %v4423, %v4419
    %v4852 = vpack.c.b16 %v4424, %v4420
    %v4853 = vpack.c.b16 %v4425, %v4421
    %v4854 = vpack.c.b16 %v4426, %v4422
    %v4855 = vpack.c.b16 %v4431, %v4427
    %v4856 = vpack.c.b16 %v4432, %v4428
    %v4857 = vpack.c.b16 %v4433, %v4429
    %v4858 = vpack.c.b16 %v4434, %v4430
    %v4859 = vpack.c.b16 %v4439, %v4435
    %v4860 = vpack.c.b16 %v4440, %v4436
    %v4861 = vpack.c.b16 %v4441, %v4437
    %v4862 = vpack.c.b16 %v4442, %v4438
    %v4863 = vpack.c.b16 %v4447, %v4443
    %v4864 = vpack.c.b16 %v4448, %v4444
    %v4865 = vpack.c.b16 %v4449, %v4445
    %v4866 = vpack.c.b16 %v4450, %v4446
    %v4867 = vpack.c.b16 %v4455, %v4451
    %v4868 = vpack.c.b16 %v4456, %v4452
    %v4869 = vpack.c.b16 %v4457, %v4453
    %v4870 = vpack.c.b16 %v4458, %v4454
    %v4871 = vpack.c.b16 %v4463, %v4459
    %v4872 = vpack.c.b16 %v4464, %v4460
    %v4873 = vpack.c.b16 %v4465, %v4461
    %v4874 = vpack.c.b16 %v4466, %v4462
    %v4875 = vpack.c.b16 %v4471, %v4467
    %v4876 = vpack.c.b16 %v4472, %v4468
    %v4877 = vpack.c.b16 %v4473, %v4469
    %v4878 = vpack.c.b16 %v4474, %v4470
    %v4879 = vpack.c.b16 %v4479, %v4475
    %v4880 = vpack.c.b16 %v4480, %v4476
    %v4881 = vpack.c.b16 %v4481, %v4477
    %v4882 = vpack.c.b16 %v4482, %v4478
    %v4883 = vpack.c.b16 %v4487, %v4483
    %v4884 = vpack.c.b16 %v4488, %v4484
    %v4885 = vpack.c.b16 %v4489, %v4485
    %v4886 = vpack.c.b16 %v4490, %v4486
    %v4887 = vpack.c.b16 %v4495, %v4491
    %v4888 = vpack.c.b16 %v4496, %v4492
    %v4889 = vpack.c.b16 %v4497, %v4493
    %v4890 = vpack.c.b16 %v4498, %v4494
    %v4891 = vpack.c.b16 %v4503, %v4499
    %v4892 = vpack.c.b16 %v4504, %v4500
    %v4893 = vpack.c.b16 %v4505, %v4501
    %v4894 = vpack.c.b16 %v4506, %v4502
    %v4895 = vpack.c.b16 %v4511, %v4507
    %v4896 = vpack.c.b16 %v4512, %v4508
    %v4897 = vpack.c.b16 %v4513, %v4509
    %v4898 = vpack.c.b16 %v4514, %v4510
    %v4899 = vpack.c.b16 %v4519, %v4515
    %v4900 = vpack.c.b16 %v4520, %v4516
    %v4901 = vpack.c.b16 %v4521, %v4517
    %v4902 = vpack.c.b16 %v4522, %v4518
    %v4903 = vpack.c.b16 %v4527, %v4523
    %v4904 = vpack.c.b16 %v4528, %v4524
    %v4905 = vpack.c.b16 %v4529, %v4525
    %v4906 = vpack.c.b16 %v4530, %v4526
    %v4907 = vpack.c.b16 %v4535, %v4531
    %v4908 = vpack.c.b16 %v4536, %v4532
    %v4909 = vpack.c.b16 %v4537, %v4533
    %v4910 = vpack.c.b16 %v4538, %v4534
    %v4911 = vpack.c.b16 %v4543, %v4539
    %v4912 = vpack.c.b16 %v4544, %v4540
    %v4913 = vpack.c.b16 %v4545, %v4541
    %v4914 = vpack.c.b16 %v4546, %v4542
    %v4915 = vpack.c.b16 %v4551, %v4547
    %v4916 = vpack.c.b16 %v4552, %v4548
    %v4917 = vpack.c.b16 %v4553, %v4549
    %v4918 = vpack.c.b16 %v4554, %v4550
    %v4919 = vpack.c.b16 %v4559, %v4555
    %v4920 = vpack.c.b16 %v4560, %v4556
    %v4921 = vpack.c.b16 %v4561, %v4557
    %v4922 = vpack.c.b16 %v4562, %v4558
    %v4923 = vpack.c.b16 %v4567, %v4563
    %v4924 = vpack.c.b16 %v4568, %v4564
    %v4925 = vpack.c.b16 %v4569, %v4565
    %v4926 = vpack.c.b16 %v4570, %v4566
    %v4927 = vpack.c.b16 %v4575, %v4571
    %v4928 = vpack.c.b16 %v4576, %v4572
    %v4929 = vpack.c.b16 %v4577, %v4573
    %v4930 = vpack.c.b16 %v4578, %v4574
    %v4931 = vpack.c.b16 %v4583, %v4579
    %v4932 = vpack.c.b16 %v4584, %v4580
    %v4933 = vpack.c.b16 %v4585, %v4581
    %v4934 = vpack.c.b16 %v4586, %v4582
    %v4935 = vpack.c.b16 %v4591, %v4587
    %v4936 = vpack.c.b16 %v4592, %v4588
    %v4937 = vpack.c.b16 %v4593, %v4589
    %v4938 = vpack.c.b16 %v4594, %v4590
    %v4939 = vpack.c.b16 %v4599, %v4595
    %v4940 = vpack.c.b16 %v4600, %v4596
    %v4941 = vpack.c.b16 %v4601, %v4597
    %v4942 = vpack.c.b16 %v4602, %v4598
    %v4943 = vpack.c.b16 %v4607, %v4603
    %v4944 = vpack.c.b16 %v4608, %v4604
    %v4945 = vpack.c.b16 %v4609, %v4605
    %v4946 = vpack.c.b16 %v4610, %v4606
    %v4947 = vpack.c.b16 %v4615, %v4611
    %v4948 = vpack.c.b16 %v4616, %v4612
    %v4949 = vpack.c.b16 %v4617, %v4613
    %v4950 = vpack.c.b16 %v4618, %v4614
    %v4951 = vpack.c.b16 %v4623, %v4619
    %v4952 = vpack.c.b16 %v4624, %v4620
    %v4953 = vpack.c.b16 %v4625, %v4621
    %v4954 = vpack.c.b16 %v4626, %v4622
    %v4955 = vpack.c.b16 %v4631, %v4627
    %v4956 = vpack.c.b16 %v4632, %v4628
    %v4957 = vpack.c.b16 %v4633, %v4629
    %v4958 = vpack.c.b16 %v4634, %v4630
    %v4959 = vpack.c.b16 %v4639, %v4635
    %v4960 = vpack.c.b16 %v4640, %v4636
    %v4961 = vpack.c.b16 %v4641, %v4637
    %v4962 = vpack.c.b16 %v4642, %v4638
    %v4963 = vpack.c.b16 %v4647, %v4643
    %v4964 = vpack.c.b16 %v4648, %v4644
    %v4965 = vpack.c.b16 %v4649, %v4645
    %v4966 = vpack.c.b16 %v4650, %v4646
    %v4967 = vpack.c.b16 %v4655, %v4651
    %v4968 = vpack.c.b16 %v4656, %v4652
    %v4969 = vpack.c.b16 %v4657, %v4653
    %v4970 = vpack.c.b16 %v4658, %v4654
    %v4971 = vpack.c.b16 %v4663, %v4659
    %v4972 = vpack.c.b16 %v4664, %v4660
    %v4973 = vpack.c.b16 %v4665, %v4661
    %v4974 = vpack.c.b16 %v4666, %v4662
    %v4975 = vpack.c.b16 %v4671, %v4667
    %v4976 = vpack.c.b16 %v4672, %v4668
    %v4977 = vpack.c.b16 %v4673, %v4669
    %v4978 = vpack.c.b16 %v4674, %v4670
    %v4979 = vpack.c.b16 %v4679, %v4675
    %v4980 = vpack.c.b16 %v4680, %v4676
    %v4981 = vpack.c.b16 %v4681, %v4677
    %v4982 = vpack.c.b16 %v4682, %v4678
    %v4983 = vpack.c.b16 %v4687, %v4683
    %v4984 = vpack.c.b16 %v4688, %v4684
    %v4985 = vpack.c.b16 %v4689, %v4685
    %v4986 = vpack.c.b16 %v4690, %v4686
    %v4987 = vpack.c.b16 %v4695, %v4691
    %v4988 = vpack.c.b16 %v4696, %v4692
    %v4989 = vpack.c.b16 %v4697, %v4693
    %v4990 = vpack.c.b16 %v4698, %v4694
    %v4991 = vpack.c.b16 %v4703, %v4699
    %v4992 = vpack.c.b16 %v4704, %v4700
    %v4993 = vpack.c.b16 %v4705, %v4701
    %v4994 = vpack.c.b16 %v4706, %v4702
    %v4995 = vpack.c.b16 %v4711, %v4707
    %v4996 = vpack.c.b16 %v4712, %v4708
    %v4997 = vpack.c.b16 %v4713, %v4709
    %v4998 = vpack.c.b16 %v4714, %v4710
    %v4999 = vpack.c.b16 %v4719, %v4715
    %v5000 = vpack.c.b16 %v4720, %v4716
    %v5001 = vpack.c.b16 %v4721, %v4717
    %v5002 = vpack.c.b16 %v4722, %v4718
    %v5003 = vpack.c.b16 %v4727, %v4723
    %v5004 = vpack.c.b16 %v4728, %v4724
    %v5005 = vpack.c.b16 %v4729, %v4725
    %v5006 = vpack.c.b16 %v4730, %v4726
    %v5007 = vpack.c.b16 %v4735, %v4731
    %v5008 = vpack.c.b16 %v4736, %v4732
    %v5009 = vpack.c.b16 %v4737, %v4733
    %v5010 = vpack.c.b16 %v4738, %v4734
    %v5011 = vpack.c.b16 %v4743, %v4739
    %v5012 = vpack.c.b16 %v4744, %v4740
    %v5013 = vpack.c.b16 %v4745, %v4741
    %v5014 = vpack.c.b16 %v4746, %v4742
    %v5015 = vpack.c.b16 %v4751, %v4747
    %v5016 = vpack.c.b16 %v4752, %v4748
    %v5017 = vpack.c.b16 %v4753, %v4749
    %v5018 = vpack.c.b16 %v4754, %v4750
    %v5019 = vpack.c.b16 %v4759, %v4755
    %v5020 = vpack.c.b16 %v4760, %v4756
    %v5021 = vpack.c.b16 %v4761, %v4757
    %v5022 = vpack.c.b16 %v4762, %v4758
    %v5023 = vpack.c.b16 %v4767, %v4763
    %v5024 = vpack.c.b16 %v4768, %v4764
    %v5025 = vpack.c.b16 %v4769, %v4765
    %v5026 = vpack.c.b16 %v4770, %v4766
    %5283 = vmatpush.bf16.msra.mxu0 %v4799
    %5284 = vmatpush.bf16.msra.mxu0 %v4795
    %5285 = vmatpush.bf16.msra.mxu0 %v4791
    %5286 = vmatpush.bf16.msra.mxu0 %v4787
    %5287 = vmatpush.bf16.msra.mxu0 %v4783
    %5288 = vmatpush.bf16.msra.mxu0 %v4779
    %5289 = vmatpush.bf16.msra.mxu0 %v4775
    %5290 = vmatpush.bf16.msra.mxu0 %v4771
    %5291 = vmatmul.bf16.gmra.mxu0 %v3739
    %v5292 = vpop.f32.mrf.mxu0
    %v5293 = vadd.f32 0.0, %v5292
    %v5294 = vpop.f32.mrf.mxu0
    %5295 = vdwg.mxu0
    %5296 = vmatpush.bf16.msra.mxu0 %v4831
    %5297 = vmatpush.bf16.msra.mxu0 %v4827
    %5298 = vmatpush.bf16.msra.mxu0 %v4823
    %5299 = vmatpush.bf16.msra.mxu0 %v4819
    %5300 = vmatpush.bf16.msra.mxu0 %v4815
    %5301 = vmatpush.bf16.msra.mxu0 %v4811
    %5302 = vmatpush.bf16.msra.mxu0 %v4807
    %5303 = vmatpush.bf16.msra.mxu0 %v4803
    %5304 = vmatmul.bf16.gmra.mxu0 %v3740
    %v5305 = vpop.f32.mrf.mxu0
    %v5306 = vadd.f32 %v5293, %v5305
    %v5307 = vpop.f32.mrf.mxu0
    %5308 = vdwg.mxu0
    %5309 = vmatpush.bf16.msra.mxu0 %v4863
    %5310 = vmatpush.bf16.msra.mxu0 %v4859
    %5311 = vmatpush.bf16.msra.mxu0 %v4855
    %5312 = vmatpush.bf16.msra.mxu0 %v4851
    %5313 = vmatpush.bf16.msra.mxu0 %v4847
    %5314 = vmatpush.bf16.msra.mxu0 %v4843
    %5315 = vmatpush.bf16.msra.mxu0 %v4839
    %5316 = vmatpush.bf16.msra.mxu0 %v4835
    %5317 = vmatmul.bf16.gmra.mxu0 %v3741
    %v5318 = vpop.f32.mrf.mxu0
    %v5319 = vadd.f32 %v5306, %v5318
    %v5320 = vpop.f32.mrf.mxu0
    %5321 = vdwg.mxu0
    %5322 = vmatpush.bf16.msra.mxu0 %v4895
    %5323 = vmatpush.bf16.msra.mxu0 %v4891
    %5324 = vmatpush.bf16.msra.mxu0 %v4887
    %5325 = vmatpush.bf16.msra.mxu0 %v4883
    %5326 = vmatpush.bf16.msra.mxu0 %v4879
    %5327 = vmatpush.bf16.msra.mxu0 %v4875
    %5328 = vmatpush.bf16.msra.mxu0 %v4871
    %5329 = vmatpush.bf16.msra.mxu0 %v4867
    %5330 = vmatmul.bf16.gmra.mxu0 %v3742
    %v5331 = vpop.f32.mrf.mxu0
    %v5332 = vadd.f32 %v5319, %v5331
    %v5333 = vpop.f32.mrf.mxu0
    %5334 = vdwg.mxu0
    %5335 = vmatpush.bf16.msra.mxu0 %v4927
    %5336 = vmatpush.bf16.msra.mxu0 %v4923
    %5337 = vmatpush.bf16.msra.mxu0 %v4919
    %5338 = vmatpush.bf16.msra.mxu0 %v4915
    %5339 = vmatpush.bf16.msra.mxu0 %v4911
    %5340 = vmatpush.bf16.msra.mxu0 %v4907
    %5341 = vmatpush.bf16.msra.mxu0 %v4903
    %5342 = vmatpush.bf16.msra.mxu0 %v4899
    %5343 = vmatmul.bf16.gmra.mxu0 %v3743
    %v5344 = vpop.f32.mrf.mxu0
    %v5345 = vadd.f32 %v5332, %v5344
    %v5346 = vpop.f32.mrf.mxu0
    %5347 = vdwg.mxu0
    %5348 = vmatpush.bf16.msra.mxu0 %v4959
    %5349 = vmatpush.bf16.msra.mxu0 %v4955
    %5350 = vmatpush.bf16.msra.mxu0 %v4951
    %5351 = vmatpush.bf16.msra.mxu0 %v4947
    %5352 = vmatpush.bf16.msra.mxu0 %v4943
    %5353 = vmatpush.bf16.msra.mxu0 %v4939
    %5354 = vmatpush.bf16.msra.mxu0 %v4935
    %5355 = vmatpush.bf16.msra.mxu0 %v4931
    %5356 = vmatmul.bf16.gmra.mxu0 %v3744
    %v5357 = vpop.f32.mrf.mxu0
    %v5358 = vadd.f32 %v5345, %v5357
    %v5359 = vpop.f32.mrf.mxu0
    %5360 = vdwg.mxu0
    %5361 = vmatpush.bf16.msra.mxu0 %v4991
    %5362 = vmatpush.bf16.msra.mxu0 %v4987
    %5363 = vmatpush.bf16.msra.mxu0 %v4983
    %5364 = vmatpush.bf16.msra.mxu0 %v4979
    %5365 = vmatpush.bf16.msra.mxu0 %v4975
    %5366 = vmatpush.bf16.msra.mxu0 %v4971
    %5367 = vmatpush.bf16.msra.mxu0 %v4967
    %5368 = vmatpush.bf16.msra.mxu0 %v4963
    %5369 = vmatmul.bf16.gmra.mxu0 %v3745
    %v5370 = vpop.f32.mrf.mxu0
    %v5371 = vadd.f32 %v5358, %v5370
    %v5372 = vpop.f32.mrf.mxu0
    %5373 = vdwg.mxu0
    %5374 = vmatpush.bf16.msra.mxu0 %v5023
    %5375 = vmatpush.bf16.msra.mxu0 %v5019
    %5376 = vmatpush.bf16.msra.mxu0 %v5015
    %5377 = vmatpush.bf16.msra.mxu0 %v5011
    %5378 = vmatpush.bf16.msra.mxu0 %v5007
    %5379 = vmatpush.bf16.msra.mxu0 %v5003
    %5380 = vmatpush.bf16.msra.mxu0 %v4999
    %5381 = vmatpush.bf16.msra.mxu0 %v4995
    %5382 = vmatmul.bf16.gmra.mxu0 %v3746
    %v5383 = vpop.f32.mrf.mxu0
    %v5384 = vadd.f32 %v5371, %v5383
    %v5385 = vpop.f32.mrf.mxu0
    %5386 = vdwg.mxu0
    %5387 = vmatpush.bf16.msra.mxu0 %v4800
    %5388 = vmatpush.bf16.msra.mxu0 %v4796
    %5389 = vmatpush.bf16.msra.mxu0 %v4792
    %5390 = vmatpush.bf16.msra.mxu0 %v4788
    %5391 = vmatpush.bf16.msra.mxu0 %v4784
    %5392 = vmatpush.bf16.msra.mxu0 %v4780
    %5393 = vmatpush.bf16.msra.mxu0 %v4776
    %5394 = vmatpush.bf16.msra.mxu0 %v4772
    %5395 = vmatmul.bf16.gmra.mxu0 %v3739
    %v5396 = vpop.f32.mrf.mxu0
    %v5397 = vadd.f32 0.0, %v5396
    %v5398 = vpop.f32.mrf.mxu0
    %5399 = vdwg.mxu0
    %5400 = vmatpush.bf16.msra.mxu0 %v4832
    %5401 = vmatpush.bf16.msra.mxu0 %v4828
    %5402 = vmatpush.bf16.msra.mxu0 %v4824
    %5403 = vmatpush.bf16.msra.mxu0 %v4820
    %5404 = vmatpush.bf16.msra.mxu0 %v4816
    %5405 = vmatpush.bf16.msra.mxu0 %v4812
    %5406 = vmatpush.bf16.msra.mxu0 %v4808
    %5407 = vmatpush.bf16.msra.mxu0 %v4804
    %5408 = vmatmul.bf16.gmra.mxu0 %v3740
    %v5409 = vpop.f32.mrf.mxu0
    %v5410 = vadd.f32 %v5397, %v5409
    %v5411 = vpop.f32.mrf.mxu0
    %5412 = vdwg.mxu0
    %5413 = vmatpush.bf16.msra.mxu0 %v4864
    %5414 = vmatpush.bf16.msra.mxu0 %v4860
    %5415 = vmatpush.bf16.msra.mxu0 %v4856
    %5416 = vmatpush.bf16.msra.mxu0 %v4852
    %5417 = vmatpush.bf16.msra.mxu0 %v4848
    %5418 = vmatpush.bf16.msra.mxu0 %v4844
    %5419 = vmatpush.bf16.msra.mxu0 %v4840
    %5420 = vmatpush.bf16.msra.mxu0 %v4836
    %5421 = vmatmul.bf16.gmra.mxu0 %v3741
    %v5422 = vpop.f32.mrf.mxu0
    %v5423 = vadd.f32 %v5410, %v5422
    %v5424 = vpop.f32.mrf.mxu0
    %5425 = vdwg.mxu0
    %5426 = vmatpush.bf16.msra.mxu0 %v4896
    %5427 = vmatpush.bf16.msra.mxu0 %v4892
    %5428 = vmatpush.bf16.msra.mxu0 %v4888
    %5429 = vmatpush.bf16.msra.mxu0 %v4884
    %5430 = vmatpush.bf16.msra.mxu0 %v4880
    %5431 = vmatpush.bf16.msra.mxu0 %v4876
    %5432 = vmatpush.bf16.msra.mxu0 %v4872
    %5433 = vmatpush.bf16.msra.mxu0 %v4868
    %5434 = vmatmul.bf16.gmra.mxu0 %v3742
    %v5435 = vpop.f32.mrf.mxu0
    %v5436 = vadd.f32 %v5423, %v5435
    %v5437 = vpop.f32.mrf.mxu0
    %5438 = vdwg.mxu0
    %5439 = vmatpush.bf16.msra.mxu0 %v4928
    %5440 = vmatpush.bf16.msra.mxu0 %v4924
    %5441 = vmatpush.bf16.msra.mxu0 %v4920
    %5442 = vmatpush.bf16.msra.mxu0 %v4916
    %5443 = vmatpush.bf16.msra.mxu0 %v4912
    %5444 = vmatpush.bf16.msra.mxu0 %v4908
    %5445 = vmatpush.bf16.msra.mxu0 %v4904
    %5446 = vmatpush.bf16.msra.mxu0 %v4900
    %5447 = vmatmul.bf16.gmra.mxu0 %v3743
    %v5448 = vpop.f32.mrf.mxu0
    %v5449 = vadd.f32 %v5436, %v5448
    %v5450 = vpop.f32.mrf.mxu0
    %5451 = vdwg.mxu0
    %5452 = vmatpush.bf16.msra.mxu0 %v4960
    %5453 = vmatpush.bf16.msra.mxu0 %v4956
    %5454 = vmatpush.bf16.msra.mxu0 %v4952
    %5455 = vmatpush.bf16.msra.mxu0 %v4948
    %5456 = vmatpush.bf16.msra.mxu0 %v4944
    %5457 = vmatpush.bf16.msra.mxu0 %v4940
    %5458 = vmatpush.bf16.msra.mxu0 %v4936
    %5459 = vmatpush.bf16.msra.mxu0 %v4932
    %5460 = vmatmul.bf16.gmra.mxu0 %v3744
    %v5461 = vpop.f32.mrf.mxu0
    %v5462 = vadd.f32 %v5449, %v5461
    %v5463 = vpop.f32.mrf.mxu0
    %5464 = vdwg.mxu0
    %5465 = vmatpush.bf16.msra.mxu0 %v4992
    %5466 = vmatpush.bf16.msra.mxu0 %v4988
    %5467 = vmatpush.bf16.msra.mxu0 %v4984
    %5468 = vmatpush.bf16.msra.mxu0 %v4980
    %5469 = vmatpush.bf16.msra.mxu0 %v4976
    %5470 = vmatpush.bf16.msra.mxu0 %v4972
    %5471 = vmatpush.bf16.msra.mxu0 %v4968
    %5472 = vmatpush.bf16.msra.mxu0 %v4964
    %5473 = vmatmul.bf16.gmra.mxu0 %v3745
    %v5474 = vpop.f32.mrf.mxu0
    %v5475 = vadd.f32 %v5462, %v5474
    %v5476 = vpop.f32.mrf.mxu0
    %5477 = vdwg.mxu0
    %5478 = vmatpush.bf16.msra.mxu0 %v5024
    %5479 = vmatpush.bf16.msra.mxu0 %v5020
    %5480 = vmatpush.bf16.msra.mxu0 %v5016
    %5481 = vmatpush.bf16.msra.mxu0 %v5012
    %5482 = vmatpush.bf16.msra.mxu0 %v5008
    %5483 = vmatpush.bf16.msra.mxu0 %v5004
    %5484 = vmatpush.bf16.msra.mxu0 %v5000
    %5485 = vmatpush.bf16.msra.mxu0 %v4996
    %5486 = vmatmul.bf16.gmra.mxu0 %v3746
    %v5487 = vpop.f32.mrf.mxu0
    %v5488 = vadd.f32 %v5475, %v5487
    %v5489 = vpop.f32.mrf.mxu0
    %5490 = vdwg.mxu0
    %5491 = vmatpush.bf16.msra.mxu0 %v4801
    %5492 = vmatpush.bf16.msra.mxu0 %v4797
    %5493 = vmatpush.bf16.msra.mxu0 %v4793
    %5494 = vmatpush.bf16.msra.mxu0 %v4789
    %5495 = vmatpush.bf16.msra.mxu0 %v4785
    %5496 = vmatpush.bf16.msra.mxu0 %v4781
    %5497 = vmatpush.bf16.msra.mxu0 %v4777
    %5498 = vmatpush.bf16.msra.mxu0 %v4773
    %5499 = vmatmul.bf16.gmra.mxu0 %v3739
    %v5500 = vpop.f32.mrf.mxu0
    %v5501 = vadd.f32 0.0, %v5500
    %v5502 = vpop.f32.mrf.mxu0
    %5503 = vdwg.mxu0
    %5504 = vmatpush.bf16.msra.mxu0 %v4833
    %5505 = vmatpush.bf16.msra.mxu0 %v4829
    %5506 = vmatpush.bf16.msra.mxu0 %v4825
    %5507 = vmatpush.bf16.msra.mxu0 %v4821
    %5508 = vmatpush.bf16.msra.mxu0 %v4817
    %5509 = vmatpush.bf16.msra.mxu0 %v4813
    %5510 = vmatpush.bf16.msra.mxu0 %v4809
    %5511 = vmatpush.bf16.msra.mxu0 %v4805
    %5512 = vmatmul.bf16.gmra.mxu0 %v3740
    %v5513 = vpop.f32.mrf.mxu0
    %v5514 = vadd.f32 %v5501, %v5513
    %v5515 = vpop.f32.mrf.mxu0
    %5516 = vdwg.mxu0
    %5517 = vmatpush.bf16.msra.mxu0 %v4865
    %5518 = vmatpush.bf16.msra.mxu0 %v4861
    %5519 = vmatpush.bf16.msra.mxu0 %v4857
    %5520 = vmatpush.bf16.msra.mxu0 %v4853
    %5521 = vmatpush.bf16.msra.mxu0 %v4849
    %5522 = vmatpush.bf16.msra.mxu0 %v4845
    %5523 = vmatpush.bf16.msra.mxu0 %v4841
    %5524 = vmatpush.bf16.msra.mxu0 %v4837
    %5525 = vmatmul.bf16.gmra.mxu0 %v3741
    %v5526 = vpop.f32.mrf.mxu0
    %v5527 = vadd.f32 %v5514, %v5526
    %v5528 = vpop.f32.mrf.mxu0
    %5529 = vdwg.mxu0
    %5530 = vmatpush.bf16.msra.mxu0 %v4897
    %5531 = vmatpush.bf16.msra.mxu0 %v4893
    %5532 = vmatpush.bf16.msra.mxu0 %v4889
    %5533 = vmatpush.bf16.msra.mxu0 %v4885
    %5534 = vmatpush.bf16.msra.mxu0 %v4881
    %5535 = vmatpush.bf16.msra.mxu0 %v4877
    %5536 = vmatpush.bf16.msra.mxu0 %v4873
    %5537 = vmatpush.bf16.msra.mxu0 %v4869
    %5538 = vmatmul.bf16.gmra.mxu0 %v3742
    %v5539 = vpop.f32.mrf.mxu0
    %v5540 = vadd.f32 %v5527, %v5539
    %v5541 = vpop.f32.mrf.mxu0
    %5542 = vdwg.mxu0
    %5543 = vmatpush.bf16.msra.mxu0 %v4929
    %5544 = vmatpush.bf16.msra.mxu0 %v4925
    %5545 = vmatpush.bf16.msra.mxu0 %v4921
    %5546 = vmatpush.bf16.msra.mxu0 %v4917
    %5547 = vmatpush.bf16.msra.mxu0 %v4913
    %5548 = vmatpush.bf16.msra.mxu0 %v4909
    %5549 = vmatpush.bf16.msra.mxu0 %v4905
    %5550 = vmatpush.bf16.msra.mxu0 %v4901
    %5551 = vmatmul.bf16.gmra.mxu0 %v3743
    %v5552 = vpop.f32.mrf.mxu0
    %v5553 = vadd.f32 %v5540, %v5552
    %v5554 = vpop.f32.mrf.mxu0
    %5555 = vdwg.mxu0
    %5556 = vmatpush.bf16.msra.mxu0 %v4961
    %5557 = vmatpush.bf16.msra.mxu0 %v4957
    %5558 = vmatpush.bf16.msra.mxu0 %v4953
    %5559 = vmatpush.bf16.msra.mxu0 %v4949
    %5560 = vmatpush.bf16.msra.mxu0 %v4945
    %5561 = vmatpush.bf16.msra.mxu0 %v4941
    %5562 = vmatpush.bf16.msra.mxu0 %v4937
    %5563 = vmatpush.bf16.msra.mxu0 %v4933
    %5564 = vmatmul.bf16.gmra.mxu0 %v3744
    %v5565 = vpop.f32.mrf.mxu0
    %v5566 = vadd.f32 %v5553, %v5565
    %v5567 = vpop.f32.mrf.mxu0
    %5568 = vdwg.mxu0
    %5569 = vmatpush.bf16.msra.mxu0 %v4993
    %5570 = vmatpush.bf16.msra.mxu0 %v4989
    %5571 = vmatpush.bf16.msra.mxu0 %v4985
    %5572 = vmatpush.bf16.msra.mxu0 %v4981
    %5573 = vmatpush.bf16.msra.mxu0 %v4977
    %5574 = vmatpush.bf16.msra.mxu0 %v4973
    %5575 = vmatpush.bf16.msra.mxu0 %v4969
    %5576 = vmatpush.bf16.msra.mxu0 %v4965
    %5577 = vmatmul.bf16.gmra.mxu0 %v3745
    %v5578 = vpop.f32.mrf.mxu0
    %v5579 = vadd.f32 %v5566, %v5578
    %v5580 = vpop.f32.mrf.mxu0
    %5581 = vdwg.mxu0
    %5582 = vmatpush.bf16.msra.mxu0 %v5025
    %5583 = vmatpush.bf16.msra.mxu0 %v5021
    %5584 = vmatpush.bf16.msra.mxu0 %v5017
    %5585 = vmatpush.bf16.msra.mxu0 %v5013
    %5586 = vmatpush.bf16.msra.mxu0 %v5009
    %5587 = vmatpush.bf16.msra.mxu0 %v5005
    %5588 = vmatpush.bf16.msra.mxu0 %v5001
    %5589 = vmatpush.bf16.msra.mxu0 %v4997
    %5590 = vmatmul.bf16.gmra.mxu0 %v3746
    %v5591 = vpop.f32.mrf.mxu0
    %v5592 = vadd.f32 %v5579, %v5591
    %v5593 = vpop.f32.mrf.mxu0
    %5594 = vdwg.mxu0
    %5595 = vmatpush.bf16.msra.mxu0 %v4802
    %5596 = vmatpush.bf16.msra.mxu0 %v4798
    %5597 = vmatpush.bf16.msra.mxu0 %v4794
    %5598 = vmatpush.bf16.msra.mxu0 %v4790
    %5599 = vmatpush.bf16.msra.mxu0 %v4786
    %5600 = vmatpush.bf16.msra.mxu0 %v4782
    %5601 = vmatpush.bf16.msra.mxu0 %v4778
    %5602 = vmatpush.bf16.msra.mxu0 %v4774
    %5603 = vmatmul.bf16.gmra.mxu0 %v3739
    %v5604 = vpop.f32.mrf.mxu0
    %v5605 = vadd.f32 0.0, %v5604
    %v5606 = vpop.f32.mrf.mxu0
    %5607 = vdwg.mxu0
    %5608 = vmatpush.bf16.msra.mxu0 %v4834
    %5609 = vmatpush.bf16.msra.mxu0 %v4830
    %5610 = vmatpush.bf16.msra.mxu0 %v4826
    %5611 = vmatpush.bf16.msra.mxu0 %v4822
    %5612 = vmatpush.bf16.msra.mxu0 %v4818
    %5613 = vmatpush.bf16.msra.mxu0 %v4814
    %5614 = vmatpush.bf16.msra.mxu0 %v4810
    %5615 = vmatpush.bf16.msra.mxu0 %v4806
    %5616 = vmatmul.bf16.gmra.mxu0 %v3740
    %v5617 = vpop.f32.mrf.mxu0
    %v5618 = vadd.f32 %v5605, %v5617
    %v5619 = vpop.f32.mrf.mxu0
    %5620 = vdwg.mxu0
    %5621 = vmatpush.bf16.msra.mxu0 %v4866
    %5622 = vmatpush.bf16.msra.mxu0 %v4862
    %5623 = vmatpush.bf16.msra.mxu0 %v4858
    %5624 = vmatpush.bf16.msra.mxu0 %v4854
    %5625 = vmatpush.bf16.msra.mxu0 %v4850
    %5626 = vmatpush.bf16.msra.mxu0 %v4846
    %5627 = vmatpush.bf16.msra.mxu0 %v4842
    %5628 = vmatpush.bf16.msra.mxu0 %v4838
    %5629 = vmatmul.bf16.gmra.mxu0 %v3741
    %v5630 = vpop.f32.mrf.mxu0
    %v5631 = vadd.f32 %v5618, %v5630
    %v5632 = vpop.f32.mrf.mxu0
    %5633 = vdwg.mxu0
    %5634 = vmatpush.bf16.msra.mxu0 %v4898
    %5635 = vmatpush.bf16.msra.mxu0 %v4894
    %5636 = vmatpush.bf16.msra.mxu0 %v4890
    %5637 = vmatpush.bf16.msra.mxu0 %v4886
    %5638 = vmatpush.bf16.msra.mxu0 %v4882
    %5639 = vmatpush.bf16.msra.mxu0 %v4878
    %5640 = vmatpush.bf16.msra.mxu0 %v4874
    %5641 = vmatpush.bf16.msra.mxu0 %v4870
    %5642 = vmatmul.bf16.gmra.mxu0 %v3742
    %v5643 = vpop.f32.mrf.mxu0
    %v5644 = vadd.f32 %v5631, %v5643
    %v5645 = vpop.f32.mrf.mxu0
    %5646 = vdwg.mxu0
    %5647 = vmatpush.bf16.msra.mxu0 %v4930
    %5648 = vmatpush.bf16.msra.mxu0 %v4926
    %5649 = vmatpush.bf16.msra.mxu0 %v4922
    %5650 = vmatpush.bf16.msra.mxu0 %v4918
    %5651 = vmatpush.bf16.msra.mxu0 %v4914
    %5652 = vmatpush.bf16.msra.mxu0 %v4910
    %5653 = vmatpush.bf16.msra.mxu0 %v4906
    %5654 = vmatpush.bf16.msra.mxu0 %v4902
    %5655 = vmatmul.bf16.gmra.mxu0 %v3743
    %v5656 = vpop.f32.mrf.mxu0
    %v5657 = vadd.f32 %v5644, %v5656
    %v5658 = vpop.f32.mrf.mxu0
    %5659 = vdwg.mxu0
    %5660 = vmatpush.bf16.msra.mxu0 %v4962
    %5661 = vmatpush.bf16.msra.mxu0 %v4958
    %5662 = vmatpush.bf16.msra.mxu0 %v4954
    %5663 = vmatpush.bf16.msra.mxu0 %v4950
    %5664 = vmatpush.bf16.msra.mxu0 %v4946
    %5665 = vmatpush.bf16.msra.mxu0 %v4942
    %5666 = vmatpush.bf16.msra.mxu0 %v4938
    %5667 = vmatpush.bf16.msra.mxu0 %v4934
    %5668 = vmatmul.bf16.gmra.mxu0 %v3744
    %v5669 = vpop.f32.mrf.mxu0
    %v5670 = vadd.f32 %v5657, %v5669
    %v5671 = vpop.f32.mrf.mxu0
    %5672 = vdwg.mxu0
    %5673 = vmatpush.bf16.msra.mxu0 %v4994
    %5674 = vmatpush.bf16.msra.mxu0 %v4990
    %5675 = vmatpush.bf16.msra.mxu0 %v4986
    %5676 = vmatpush.bf16.msra.mxu0 %v4982
    %5677 = vmatpush.bf16.msra.mxu0 %v4978
    %5678 = vmatpush.bf16.msra.mxu0 %v4974
    %5679 = vmatpush.bf16.msra.mxu0 %v4970
    %5680 = vmatpush.bf16.msra.mxu0 %v4966
    %5681 = vmatmul.bf16.gmra.mxu0 %v3745
    %v5682 = vpop.f32.mrf.mxu0
    %v5683 = vadd.f32 %v5670, %v5682
    %v5684 = vpop.f32.mrf.mxu0
    %5685 = vdwg.mxu0
    %5686 = vmatpush.bf16.msra.mxu0 %v5026
    %5687 = vmatpush.bf16.msra.mxu0 %v5022
    %5688 = vmatpush.bf16.msra.mxu0 %v5018
    %5689 = vmatpush.bf16.msra.mxu0 %v5014
    %5690 = vmatpush.bf16.msra.mxu0 %v5010
    %5691 = vmatpush.bf16.msra.mxu0 %v5006
    %5692 = vmatpush.bf16.msra.mxu0 %v5002
    %5693 = vmatpush.bf16.msra.mxu0 %v4998
    %5694 = vmatmul.bf16.gmra.mxu0 %v3746
    %v5695 = vpop.f32.mrf.mxu0
    %v5696 = vadd.f32 %v5683, %v5695
    %v5697 = vpop.f32.mrf.mxu0
    %5698 = vdwg.mxu0
    %v5699 = vrot.slane %v5384, 4
    %v5700 = vadd.f32 %v5384, %v5699
    %v5701 = vrot.slane %v5700, 2
    %v5702 = vadd.f32 %v5700, %v5701
    %v5703 = vrot.slane %v5702, 1
    %v5704 = vadd.f32 %v5702, %v5703
    %v5705 = vrot.slane %v5488, 4
    %v5706 = vadd.f32 %v5488, %v5705
    %v5707 = vrot.slane %v5706, 2
    %v5708 = vadd.f32 %v5706, %v5707
    %v5709 = vrot.slane %v5708, 1
    %v5710 = vadd.f32 %v5708, %v5709
    %v5711 = vrot.slane %v5592, 4
    %v5712 = vadd.f32 %v5592, %v5711
    %v5713 = vrot.slane %v5712, 2
    %v5714 = vadd.f32 %v5712, %v5713
    %v5715 = vrot.slane %v5714, 1
    %v5716 = vadd.f32 %v5714, %v5715
    %v5717 = vrot.slane %v5696, 4
    %v5718 = vadd.f32 %v5696, %v5717
    %v5719 = vrot.slane %v5718, 2
    %v5720 = vadd.f32 %v5718, %v5719
    %v5721 = vrot.slane %v5720, 1
    %v5722 = vadd.f32 %v5720, %v5721
    %v5723 = vmul.f32 %v5704, %v3431
    %v5724 = vmul.f32 %v5710, %v3431
    %v5725 = vmul.f32 %v5716, %v3431
    %v5726 = vmul.f32 %v5722, %v3431
    %v5727 = vmul.f32 %v5384, %v5384
    %v5728 = vmul.f32 %v5488, %v5488
    %v5729 = vmul.f32 %v5592, %v5592
    %v5730 = vmul.f32 %v5696, %v5696
    %v5731 = vrot.slane %v5727, 4
    %v5732 = vadd.f32 %v5727, %v5731
    %v5733 = vrot.slane %v5732, 2
    %v5734 = vadd.f32 %v5732, %v5733
    %v5735 = vrot.slane %v5734, 1
    %v5736 = vadd.f32 %v5734, %v5735
    %v5737 = vrot.slane %v5728, 4
    %v5738 = vadd.f32 %v5728, %v5737
    %v5739 = vrot.slane %v5738, 2
    %v5740 = vadd.f32 %v5738, %v5739
    %v5741 = vrot.slane %v5740, 1
    %v5742 = vadd.f32 %v5740, %v5741
    %v5743 = vrot.slane %v5729, 4
    %v5744 = vadd.f32 %v5729, %v5743
    %v5745 = vrot.slane %v5744, 2
    %v5746 = vadd.f32 %v5744, %v5745
    %v5747 = vrot.slane %v5746, 1
    %v5748 = vadd.f32 %v5746, %v5747
    %v5749 = vrot.slane %v5730, 4
    %v5750 = vadd.f32 %v5730, %v5749
    %v5751 = vrot.slane %v5750, 2
    %v5752 = vadd.f32 %v5750, %v5751
    %v5753 = vrot.slane %v5752, 1
    %v5754 = vadd.f32 %v5752, %v5753
    %v5755 = vmul.f32 %v5736, %v3431
    %v5756 = vmul.f32 %v5742, %v3431
    %v5757 = vmul.f32 %v5748, %v3431
    %v5758 = vmul.f32 %v5754, %v3431
    %v5759 = vmul.f32 %v5723, %v5723
    %v5760 = vmul.f32 %v5724, %v5724
    %v5761 = vmul.f32 %v5725, %v5725
    %v5762 = vmul.f32 %v5726, %v5726
    %v5763 = vsub.f32 %v5755, %v5759
    %v5764 = vsub.f32 %v5756, %v5760
    %v5765 = vsub.f32 %v5757, %v5761
    %v5766 = vsub.f32 %v5758, %v5762
    %v5767 = vmax.f32 %v5763, 0.0
    %v5768 = vmax.f32 %v5764, 0.0
    %v5769 = vmax.f32 %v5765, 0.0
    %v5770 = vmax.f32 %v5766, 0.0
    %v5771 = vadd.f32 %v5767, 1e-05
    %v5772 = vadd.f32 %v5768, 1e-05
    %v5773 = vadd.f32 %v5769, 1e-05
    %v5774 = vadd.f32 %v5770, 1e-05
    %v5775 = vrsqrt.pop %v5771
    %v5776 = vmul.f32 %v5775, %v5771
    %v5777 = vmul.f32 %v5776, %v5775
    %v5778 = vmul.f32 0.5, %v5777
    %v5779 = vsub.f32 1.5, %v5778
    %v5780 = vmul.f32 %v5775, %v5779
    %vm5781 = vweird.f32 %v5771
    %vm5782 = vweird.f32 %v5775
    %vm5783 = vmor %vm5781, %vm5782
    %v5784 = vsel %vm5783, %v5775, %v5780
    %v5785 = vrsqrt.pop %v5772
    %v5786 = vmul.f32 %v5785, %v5772
    %v5787 = vmul.f32 %v5786, %v5785
    %v5788 = vmul.f32 0.5, %v5787
    %v5789 = vsub.f32 1.5, %v5788
    %v5790 = vmul.f32 %v5785, %v5789
    %vm5791 = vweird.f32 %v5772
    %vm5792 = vweird.f32 %v5785
    %vm5793 = vmor %vm5791, %vm5792
    %v5794 = vsel %vm5793, %v5785, %v5790
    %v5795 = vrsqrt.pop %v5773
    %v5796 = vmul.f32 %v5795, %v5773
    %v5797 = vmul.f32 %v5796, %v5795
    %v5798 = vmul.f32 0.5, %v5797
    %v5799 = vsub.f32 1.5, %v5798
    %v5800 = vmul.f32 %v5795, %v5799
    %vm5801 = vweird.f32 %v5773
    %vm5802 = vweird.f32 %v5795
    %vm5803 = vmor %vm5801, %vm5802
    %v5804 = vsel %vm5803, %v5795, %v5800
    %v5805 = vrsqrt.pop %v5774
    %v5806 = vmul.f32 %v5805, %v5774
    %v5807 = vmul.f32 %v5806, %v5805
    %v5808 = vmul.f32 0.5, %v5807
    %v5809 = vsub.f32 1.5, %v5808
    %v5810 = vmul.f32 %v5805, %v5809
    %vm5811 = vweird.f32 %v5774
    %vm5812 = vweird.f32 %v5805
    %vm5813 = vmor %vm5811, %vm5812
    %v5814 = vsel %vm5813, %v5805, %v5810
    %v5815 = vld [vmem:[#allocation11] sm:$0xf]
    %v5820 = vrot.slane %v5794, 7
    %v5821 = vrot.slane %v5804, 6
    %v5822 = vrot.slane %v5814, 5
    %v5823 = vsel %vm3632, %v5784, %v5820
    %v5824 = vsel %vm3634, %v5821, %v5822
    %v5825 = vsel %vm3636, %v5823, %v5824
    %v5827 = vmul.f32 %v5815, %v5825
    %v5828 = vld [vmem:[#allocation13] sm:$0xf]
    %v5830 = vperm.slane %v5827, 0
    %v5831 = vperm.slane %v5827, 1
    %v5832 = vperm.slane %v5827, 2
    %v5833 = vperm.slane %v5827, 3
    %v5838 = vmul.f32 %v5723, %v5830
    %v5839 = vmul.f32 %v5724, %v5831
    %v5840 = vmul.f32 %v5725, %v5832
    %v5841 = vmul.f32 %v5726, %v5833
    %v5846 = vrot.slane %v5839, 7
    %v5847 = vrot.slane %v5840, 6
    %v5848 = vrot.slane %v5841, 5
    %v5849 = vsel %vm3632, %v5838, %v5846
    %v5850 = vsel %vm3634, %v5847, %v5848
    %v5851 = vsel %vm3636, %v5849, %v5850
    %v5853 = vsub.f32 %v5828, %v5851
    %v5854 = vmul.f32 %v5384, %v5830
    %v5855 = vmul.f32 %v5488, %v5831
    %v5856 = vmul.f32 %v5592, %v5832
    %v5857 = vmul.f32 %v5696, %v5833
    %v5859 = vperm.slane %v5853, 0
    %v5860 = vperm.slane %v5853, 1
    %v5861 = vperm.slane %v5853, 2
    %v5862 = vperm.slane %v5853, 3
    %v5867 = vadd.f32 %v5854, %v5859
    %v5868 = vadd.f32 %v5855, %v5860
    %v5869 = vadd.f32 %v5856, %v5861
    %v5870 = vadd.f32 %v5857, %v5862
    %v5871 = vmax.f32 %v5867, 0.0
    %v5872 = vmax.f32 %v5868, 0.0
    %v5873 = vmax.f32 %v5869, 0.0
    %v5874 = vmax.f32 %v5870, 0.0
    %v5875 = vpack.c.bf16 %v5871, %v5871
    %v5876 = vpack.c.bf16 %v5872, %v5872
    %v5877 = vpack.c.bf16 %v5873, %v5873
    %v5878 = vpack.c.bf16 %v5874, %v5874
    %v5879 = vld [vmem:[#allocation14] sm:$0xff]
    %v5880 = vld [vmem:[#allocation14 + $0x8] sm:$0xff]
    %v5881 = vld [vmem:[#allocation14 + $0x10] sm:$0xff]
    %v5882 = vld [vmem:[#allocation14 + $0x18] sm:$0xff]
    %v5883 = vld [vmem:[#allocation14 + $0x20] sm:$0xff]
    %v5884 = vld [vmem:[#allocation14 + $0x28] sm:$0xff]
    %v5885 = vld [vmem:[#allocation14 + $0x30] sm:$0xff]
    %v5886 = vld [vmem:[#allocation14 + $0x38] sm:$0xff]
    %v5887 = vld [vmem:[#allocation14 + $0x40] sm:$0xff]
    %v5888 = vld [vmem:[#allocation14 + $0x48] sm:$0xff]
    %v5889 = vld [vmem:[#allocation14 + $0x50] sm:$0xff]
    %v5890 = vld [vmem:[#allocation14 + $0x58] sm:$0xff]
    %v5891 = vld [vmem:[#allocation14 + $0x60] sm:$0xff]
    %v5892 = vld [vmem:[#allocation14 + $0x68] sm:$0xff]
    %v5893 = vld [vmem:[#allocation14 + $0x70] sm:$0xff]
    %v5894 = vld [vmem:[#allocation14 + $0x78] sm:$0xff]
    %v5895 = vld [vmem:[#allocation14 + $0x80] sm:$0xff]
    %v5896 = vld [vmem:[#allocation14 + $0x88] sm:$0xff]
    %v5897 = vld [vmem:[#allocation14 + $0x90] sm:$0xff]
    %v5898 = vld [vmem:[#allocation14 + $0x98] sm:$0xff]
    %v5899 = vld [vmem:[#allocation14 + $0xa0] sm:$0xff]
    %v5900 = vld [vmem:[#allocation14 + $0xa8] sm:$0xff]
    %v5901 = vld [vmem:[#allocation14 + $0xb0] sm:$0xff]
    %v5902 = vld [vmem:[#allocation14 + $0xb8] sm:$0xff]
    %v5903 = vld [vmem:[#allocation14 + $0xc0] sm:$0xff]
    %v5904 = vld [vmem:[#allocation14 + $0xc8] sm:$0xff]
    %v5905 = vld [vmem:[#allocation14 + $0xd0] sm:$0xff]
    %v5906 = vld [vmem:[#allocation14 + $0xd8] sm:$0xff]
    %v5907 = vld [vmem:[#allocation14 + $0xe0] sm:$0xff]
    %v5908 = vld [vmem:[#allocation14 + $0xe8] sm:$0xff]
    %v5909 = vld [vmem:[#allocation14 + $0xf0] sm:$0xff]
    %v5910 = vld [vmem:[#allocation14 + $0xf8] sm:$0xff]
    %v5911 = vld [vmem:[#allocation14 + $0x100] sm:$0xff]
    %v5912 = vld [vmem:[#allocation14 + $0x108] sm:$0xff]
    %v5913 = vld [vmem:[#allocation14 + $0x110] sm:$0xff]
    %v5914 = vld [vmem:[#allocation14 + $0x118] sm:$0xff]
    %v5915 = vld [vmem:[#allocation14 + $0x120] sm:$0xff]
    %v5916 = vld [vmem:[#allocation14 + $0x128] sm:$0xff]
    %v5917 = vld [vmem:[#allocation14 + $0x130] sm:$0xff]
    %v5918 = vld [vmem:[#allocation14 + $0x138] sm:$0xff]
    %v5919 = vld [vmem:[#allocation14 + $0x140] sm:$0xff]
    %v5920 = vld [vmem:[#allocation14 + $0x148] sm:$0xff]
    %v5921 = vld [vmem:[#allocation14 + $0x150] sm:$0xff]
    %v5922 = vld [vmem:[#allocation14 + $0x158] sm:$0xff]
    %v5923 = vld [vmem:[#allocation14 + $0x160] sm:$0xff]
    %v5924 = vld [vmem:[#allocation14 + $0x168] sm:$0xff]
    %v5925 = vld [vmem:[#allocation14 + $0x170] sm:$0xff]
    %v5926 = vld [vmem:[#allocation14 + $0x178] sm:$0xff]
    %v5927 = vld [vmem:[#allocation14 + $0x180] sm:$0xff]
    %v5928 = vld [vmem:[#allocation14 + $0x188] sm:$0xff]
    %v5929 = vld [vmem:[#allocation14 + $0x190] sm:$0xff]
    %v5930 = vld [vmem:[#allocation14 + $0x198] sm:$0xff]
    %v5931 = vld [vmem:[#allocation14 + $0x1a0] sm:$0xff]
    %v5932 = vld [vmem:[#allocation14 + $0x1a8] sm:$0xff]
    %v5933 = vld [vmem:[#allocation14 + $0x1b0] sm:$0xff]
    %v5934 = vld [vmem:[#allocation14 + $0x1b8] sm:$0xff]
    %v5935 = vld [vmem:[#allocation14 + $0x1c0] sm:$0xff]
    %v5936 = vld [vmem:[#allocation14 + $0x1c8] sm:$0xff]
    %v5937 = vld [vmem:[#allocation14 + $0x1d0] sm:$0xff]
    %v5938 = vld [vmem:[#allocation14 + $0x1d8] sm:$0xff]
    %v5939 = vld [vmem:[#allocation14 + $0x1e0] sm:$0xff]
    %v5940 = vld [vmem:[#allocation14 + $0x1e8] sm:$0xff]
    %v5941 = vld [vmem:[#allocation14 + $0x1f0] sm:$0xff]
    %v5942 = vld [vmem:[#allocation14 + $0x1f8] sm:$0xff]
    %v6007 = vunpack.c.l.b16 %v5879
    %v6008 = vunpack.c.h.b16 %v5879
    %v6009 = vunpack.c.l.b16 %v5880
    %v6010 = vunpack.c.h.b16 %v5880
    %v6011 = vunpack.c.l.b16 %v5881
    %v6012 = vunpack.c.h.b16 %v5881
    %v6013 = vunpack.c.l.b16 %v5882
    %v6014 = vunpack.c.h.b16 %v5882
    %v6015 = vunpack.c.l.b16 %v5883
    %v6016 = vunpack.c.h.b16 %v5883
    %v6017 = vunpack.c.l.b16 %v5884
    %v6018 = vunpack.c.h.b16 %v5884
    %v6019 = vunpack.c.l.b16 %v5885
    %v6020 = vunpack.c.h.b16 %v5885
    %v6021 = vunpack.c.l.b16 %v5886
    %v6022 = vunpack.c.h.b16 %v5886
    %v6023 = vunpack.c.l.b16 %v5887
    %v6024 = vunpack.c.h.b16 %v5887
    %v6025 = vunpack.c.l.b16 %v5888
    %v6026 = vunpack.c.h.b16 %v5888
    %v6027 = vunpack.c.l.b16 %v5889
    %v6028 = vunpack.c.h.b16 %v5889
    %v6029 = vunpack.c.l.b16 %v5890
    %v6030 = vunpack.c.h.b16 %v5890
    %v6031 = vunpack.c.l.b16 %v5891
    %v6032 = vunpack.c.h.b16 %v5891
    %v6033 = vunpack.c.l.b16 %v5892
    %v6034 = vunpack.c.h.b16 %v5892
    %v6035 = vunpack.c.l.b16 %v5893
    %v6036 = vunpack.c.h.b16 %v5893
    %v6037 = vunpack.c.l.b16 %v5894
    %v6038 = vunpack.c.h.b16 %v5894
    %v6039 = vunpack.c.l.b16 %v5895
    %v6040 = vunpack.c.h.b16 %v5895
    %v6041 = vunpack.c.l.b16 %v5896
    %v6042 = vunpack.c.h.b16 %v5896
    %v6043 = vunpack.c.l.b16 %v5897
    %v6044 = vunpack.c.h.b16 %v5897
    %v6045 = vunpack.c.l.b16 %v5898
    %v6046 = vunpack.c.h.b16 %v5898
    %v6047 = vunpack.c.l.b16 %v5899
    %v6048 = vunpack.c.h.b16 %v5899
    %v6049 = vunpack.c.l.b16 %v5900
    %v6050 = vunpack.c.h.b16 %v5900
    %v6051 = vunpack.c.l.b16 %v5901
    %v6052 = vunpack.c.h.b16 %v5901
    %v6053 = vunpack.c.l.b16 %v5902
    %v6054 = vunpack.c.h.b16 %v5902
    %v6055 = vunpack.c.l.b16 %v5903
    %v6056 = vunpack.c.h.b16 %v5903
    %v6057 = vunpack.c.l.b16 %v5904
    %v6058 = vunpack.c.h.b16 %v5904
    %v6059 = vunpack.c.l.b16 %v5905
    %v6060 = vunpack.c.h.b16 %v5905
    %v6061 = vunpack.c.l.b16 %v5906
    %v6062 = vunpack.c.h.b16 %v5906
    %v6063 = vunpack.c.l.b16 %v5907
    %v6064 = vunpack.c.h.b16 %v5907
    %v6065 = vunpack.c.l.b16 %v5908
    %v6066 = vunpack.c.h.b16 %v5908
    %v6067 = vunpack.c.l.b16 %v5909
    %v6068 = vunpack.c.h.b16 %v5909
    %v6069 = vunpack.c.l.b16 %v5910
    %v6070 = vunpack.c.h.b16 %v5910
    %v6071 = vunpack.c.l.b16 %v5911
    %v6072 = vunpack.c.h.b16 %v5911
    %v6073 = vunpack.c.l.b16 %v5912
    %v6074 = vunpack.c.h.b16 %v5912
    %v6075 = vunpack.c.l.b16 %v5913
    %v6076 = vunpack.c.h.b16 %v5913
    %v6077 = vunpack.c.l.b16 %v5914
    %v6078 = vunpack.c.h.b16 %v5914
    %v6079 = vunpack.c.l.b16 %v5915
    %v6080 = vunpack.c.h.b16 %v5915
    %v6081 = vunpack.c.l.b16 %v5916
    %v6082 = vunpack.c.h.b16 %v5916
    %v6083 = vunpack.c.l.b16 %v5917
    %v6084 = vunpack.c.h.b16 %v5917
    %v6085 = vunpack.c.l.b16 %v5918
    %v6086 = vunpack.c.h.b16 %v5918
    %v6087 = vunpack.c.l.b16 %v5919
    %v6088 = vunpack.c.h.b16 %v5919
    %v6089 = vunpack.c.l.b16 %v5920
    %v6090 = vunpack.c.h.b16 %v5920
    %v6091 = vunpack.c.l.b16 %v5921
    %v6092 = vunpack.c.h.b16 %v5921
    %v6093 = vunpack.c.l.b16 %v5922
    %v6094 = vunpack.c.h.b16 %v5922
    %v6095 = vunpack.c.l.b16 %v5923
    %v6096 = vunpack.c.h.b16 %v5923
    %v6097 = vunpack.c.l.b16 %v5924
    %v6098 = vunpack.c.h.b16 %v5924
    %v6099 = vunpack.c.l.b16 %v5925
    %v6100 = vunpack.c.h.b16 %v5925
    %v6101 = vunpack.c.l.b16 %v5926
    %v6102 = vunpack.c.h.b16 %v5926
    %v6103 = vunpack.c.l.b16 %v5927
    %v6104 = vunpack.c.h.b16 %v5927
    %v6105 = vunpack.c.l.b16 %v5928
    %v6106 = vunpack.c.h.b16 %v5928
    %v6107 = vunpack.c.l.b16 %v5929
    %v6108 = vunpack.c.h.b16 %v5929
    %v6109 = vunpack.c.l.b16 %v5930
    %v6110 = vunpack.c.h.b16 %v5930
    %v6111 = vunpack.c.l.b16 %v5931
    %v6112 = vunpack.c.h.b16 %v5931
    %v6113 = vunpack.c.l.b16 %v5932
    %v6114 = vunpack.c.h.b16 %v5932
    %v6115 = vunpack.c.l.b16 %v5933
    %v6116 = vunpack.c.h.b16 %v5933
    %v6117 = vunpack.c.l.b16 %v5934
    %v6118 = vunpack.c.h.b16 %v5934
    %v6119 = vunpack.c.l.b16 %v5935
    %v6120 = vunpack.c.h.b16 %v5935
    %v6121 = vunpack.c.l.b16 %v5936
    %v6122 = vunpack.c.h.b16 %v5936
    %v6123 = vunpack.c.l.b16 %v5937
    %v6124 = vunpack.c.h.b16 %v5937
    %v6125 = vunpack.c.l.b16 %v5938
    %v6126 = vunpack.c.h.b16 %v5938
    %v6127 = vunpack.c.l.b16 %v5939
    %v6128 = vunpack.c.h.b16 %v5939
    %v6129 = vunpack.c.l.b16 %v5940
    %v6130 = vunpack.c.h.b16 %v5940
    %v6131 = vunpack.c.l.b16 %v5941
    %v6132 = vunpack.c.h.b16 %v5941
    %v6133 = vunpack.c.l.b16 %v5942
    %v6134 = vunpack.c.h.b16 %v5942
    %v6135 = vpack.c.b16 %v6009, %v6007
    %v6136 = vpack.c.b16 %v6010, %v6008
    %v6137 = vpack.c.b16 %v6013, %v6011
    %v6138 = vpack.c.b16 %v6014, %v6012
    %v6139 = vpack.c.b16 %v6017, %v6015
    %v6140 = vpack.c.b16 %v6018, %v6016
    %v6141 = vpack.c.b16 %v6021, %v6019
    %v6142 = vpack.c.b16 %v6022, %v6020
    %v6143 = vpack.c.b16 %v6025, %v6023
    %v6144 = vpack.c.b16 %v6026, %v6024
    %v6145 = vpack.c.b16 %v6029, %v6027
    %v6146 = vpack.c.b16 %v6030, %v6028
    %v6147 = vpack.c.b16 %v6033, %v6031
    %v6148 = vpack.c.b16 %v6034, %v6032
    %v6149 = vpack.c.b16 %v6037, %v6035
    %v6150 = vpack.c.b16 %v6038, %v6036
    %v6151 = vpack.c.b16 %v6041, %v6039
    %v6152 = vpack.c.b16 %v6042, %v6040
    %v6153 = vpack.c.b16 %v6045, %v6043
    %v6154 = vpack.c.b16 %v6046, %v6044
    %v6155 = vpack.c.b16 %v6049, %v6047
    %v6156 = vpack.c.b16 %v6050, %v6048
    %v6157 = vpack.c.b16 %v6053, %v6051
    %v6158 = vpack.c.b16 %v6054, %v6052
    %v6159 = vpack.c.b16 %v6057, %v6055
    %v6160 = vpack.c.b16 %v6058, %v6056
    %v6161 = vpack.c.b16 %v6061, %v6059
    %v6162 = vpack.c.b16 %v6062, %v6060
    %v6163 = vpack.c.b16 %v6065, %v6063
    %v6164 = vpack.c.b16 %v6066, %v6064
    %v6165 = vpack.c.b16 %v6069, %v6067
    %v6166 = vpack.c.b16 %v6070, %v6068
    %v6167 = vpack.c.b16 %v6073, %v6071
    %v6168 = vpack.c.b16 %v6074, %v6072
    %v6169 = vpack.c.b16 %v6077, %v6075
    %v6170 = vpack.c.b16 %v6078, %v6076
    %v6171 = vpack.c.b16 %v6081, %v6079
    %v6172 = vpack.c.b16 %v6082, %v6080
    %v6173 = vpack.c.b16 %v6085, %v6083
    %v6174 = vpack.c.b16 %v6086, %v6084
    %v6175 = vpack.c.b16 %v6089, %v6087
    %v6176 = vpack.c.b16 %v6090, %v6088
    %v6177 = vpack.c.b16 %v6093, %v6091
    %v6178 = vpack.c.b16 %v6094, %v6092
    %v6179 = vpack.c.b16 %v6097, %v6095
    %v6180 = vpack.c.b16 %v6098, %v6096
    %v6181 = vpack.c.b16 %v6101, %v6099
    %v6182 = vpack.c.b16 %v6102, %v6100
    %v6183 = vpack.c.b16 %v6105, %v6103
    %v6184 = vpack.c.b16 %v6106, %v6104
    %v6185 = vpack.c.b16 %v6109, %v6107
    %v6186 = vpack.c.b16 %v6110, %v6108
    %v6187 = vpack.c.b16 %v6113, %v6111
    %v6188 = vpack.c.b16 %v6114, %v6112
    %v6189 = vpack.c.b16 %v6117, %v6115
    %v6190 = vpack.c.b16 %v6118, %v6116
    %v6191 = vpack.c.b16 %v6121, %v6119
    %v6192 = vpack.c.b16 %v6122, %v6120
    %v6193 = vpack.c.b16 %v6125, %v6123
    %v6194 = vpack.c.b16 %v6126, %v6124
    %v6195 = vpack.c.b16 %v6129, %v6127
    %v6196 = vpack.c.b16 %v6130, %v6128
    %v6197 = vpack.c.b16 %v6133, %v6131
    %v6198 = vpack.c.b16 %v6134, %v6132
    %6263 = vmatpush.bf16.msra.mxu0 %v6149
    %6264 = vmatpush.bf16.msra.mxu0 %v6147
    %6265 = vmatpush.bf16.msra.mxu0 %v6145
    %6266 = vmatpush.bf16.msra.mxu0 %v6143
    %6267 = vmatpush.bf16.msra.mxu0 %v6141
    %6268 = vmatpush.bf16.msra.mxu0 %v6139
    %6269 = vmatpush.bf16.msra.mxu0 %v6137
    %6270 = vmatpush.bf16.msra.mxu0 %v6135
    %6271 = vmatmul.bf16.gmra.mxu0 %v5875
    %v6272 = vpop.f32.mrf.mxu0
    %v6273 = vadd.f32 0.0, %v6272
    %v6274 = vpop.f32.mrf.mxu0
    %6275 = vdwg.mxu0
    %6276 = vmatpush.bf16.msra.mxu0 %v6165
    %6277 = vmatpush.bf16.msra.mxu0 %v6163
    %6278 = vmatpush.bf16.msra.mxu0 %v6161
    %6279 = vmatpush.bf16.msra.mxu0 %v6159
    %6280 = vmatpush.bf16.msra.mxu0 %v6157
    %6281 = vmatpush.bf16.msra.mxu0 %v6155
    %6282 = vmatpush.bf16.msra.mxu0 %v6153
    %6283 = vmatpush.bf16.msra.mxu0 %v6151
    %6284 = vmatmul.bf16.gmra.mxu0 %v5876
    %v6285 = vpop.f32.mrf.mxu0
    %v6286 = vadd.f32 %v6273, %v6285
    %v6287 = vpop.f32.mrf.mxu0
    %6288 = vdwg.mxu0
    %6289 = vmatpush.bf16.msra.mxu0 %v6181
    %6290 = vmatpush.bf16.msra.mxu0 %v6179
    %6291 = vmatpush.bf16.msra.mxu0 %v6177
    %6292 = vmatpush.bf16.msra.mxu0 %v6175
    %6293 = vmatpush.bf16.msra.mxu0 %v6173
    %6294 = vmatpush.bf16.msra.mxu0 %v6171
    %6295 = vmatpush.bf16.msra.mxu0 %v6169
    %6296 = vmatpush.bf16.msra.mxu0 %v6167
    %6297 = vmatmul.bf16.gmra.mxu0 %v5877
    %v6298 = vpop.f32.mrf.mxu0
    %v6299 = vadd.f32 %v6286, %v6298
    %v6300 = vpop.f32.mrf.mxu0
    %6301 = vdwg.mxu0
    %6302 = vmatpush.bf16.msra.mxu0 %v6197
    %6303 = vmatpush.bf16.msra.mxu0 %v6195
    %6304 = vmatpush.bf16.msra.mxu0 %v6193
    %6305 = vmatpush.bf16.msra.mxu0 %v6191
    %6306 = vmatpush.bf16.msra.mxu0 %v6189
    %6307 = vmatpush.bf16.msra.mxu0 %v6187
    %6308 = vmatpush.bf16.msra.mxu0 %v6185
    %6309 = vmatpush.bf16.msra.mxu0 %v6183
    %6310 = vmatmul.bf16.gmra.mxu0 %v5878
    %v6311 = vpop.f32.mrf.mxu0
    %v6312 = vadd.f32 %v6299, %v6311
    %v6313 = vpop.f32.mrf.mxu0
    %6314 = vdwg.mxu0
    %6315 = vmatpush.bf16.msra.mxu0 %v6150
    %6316 = vmatpush.bf16.msra.mxu0 %v6148
    %6317 = vmatpush.bf16.msra.mxu0 %v6146
    %6318 = vmatpush.bf16.msra.mxu0 %v6144
    %6319 = vmatpush.bf16.msra.mxu0 %v6142
    %6320 = vmatpush.bf16.msra.mxu0 %v6140
    %6321 = vmatpush.bf16.msra.mxu0 %v6138
    %6322 = vmatpush.bf16.msra.mxu0 %v6136
    %6323 = vmatmul.bf16.gmra.mxu0 %v5875
    %v6324 = vpop.f32.mrf.mxu0
    %v6325 = vadd.f32 0.0, %v6324
    %v6326 = vpop.f32.mrf.mxu0
    %6327 = vdwg.mxu0
    %6328 = vmatpush.bf16.msra.mxu0 %v6166
    %6329 = vmatpush.bf16.msra.mxu0 %v6164
    %6330 = vmatpush.bf16.msra.mxu0 %v6162
    %6331 = vmatpush.bf16.msra.mxu0 %v6160
    %6332 = vmatpush.bf16.msra.mxu0 %v6158
    %6333 = vmatpush.bf16.msra.mxu0 %v6156
    %6334 = vmatpush.bf16.msra.mxu0 %v6154
    %6335 = vmatpush.bf16.msra.mxu0 %v6152
    %6336 = vmatmul.bf16.gmra.mxu0 %v5876
    %v6337 = vpop.f32.mrf.mxu0
    %v6338 = vadd.f32 %v6325, %v6337
    %v6339 = vpop.f32.mrf.mxu0
    %6340 = vdwg.mxu0
    %6341 = vmatpush.bf16.msra.mxu0 %v6182
    %6342 = vmatpush.bf16.msra.mxu0 %v6180
    %6343 = vmatpush.bf16.msra.mxu0 %v6178
    %6344 = vmatpush.bf16.msra.mxu0 %v6176
    %6345 = vmatpush.bf16.msra.mxu0 %v6174
    %6346 = vmatpush.bf16.msra.mxu0 %v6172
    %6347 = vmatpush.bf16.msra.mxu0 %v6170
    %6348 = vmatpush.bf16.msra.mxu0 %v6168
    %6349 = vmatmul.bf16.gmra.mxu0 %v5877
    %v6350 = vpop.f32.mrf.mxu0
    %v6351 = vadd.f32 %v6338, %v6350
    %v6352 = vpop.f32.mrf.mxu0
    %6353 = vdwg.mxu0
    %6354 = vmatpush.bf16.msra.mxu0 %v6198
    %6355 = vmatpush.bf16.msra.mxu0 %v6196
    %6356 = vmatpush.bf16.msra.mxu0 %v6194
    %6357 = vmatpush.bf16.msra.mxu0 %v6192
    %6358 = vmatpush.bf16.msra.mxu0 %v6190
    %6359 = vmatpush.bf16.msra.mxu0 %v6188
    %6360 = vmatpush.bf16.msra.mxu0 %v6186
    %6361 = vmatpush.bf16.msra.mxu0 %v6184
    %6362 = vmatmul.bf16.gmra.mxu0 %v5878
    %v6363 = vpop.f32.mrf.mxu0
    %v6364 = vadd.f32 %v6351, %v6363
    %v6365 = vpop.f32.mrf.mxu0
    %6366 = vdwg.mxu0
    %v6367 = vrot.slane %v6312, 4
    %v6368 = vadd.f32 %v6312, %v6367
    %v6369 = vrot.slane %v6368, 2
    %v6370 = vadd.f32 %v6368, %v6369
    %v6371 = vrot.slane %v6370, 1
    %v6372 = vadd.f32 %v6370, %v6371
    %v6373 = vrot.slane %v6364, 4
    %v6374 = vadd.f32 %v6364, %v6373
    %v6375 = vrot.slane %v6374, 2
    %v6376 = vadd.f32 %v6374, %v6375
    %v6377 = vrot.slane %v6376, 1
    %v6378 = vadd.f32 %v6376, %v6377
    %v6379 = vmul.f32 %v6372, %v3431
    %v6380 = vmul.f32 %v6378, %v3431
    %v6381 = vmul.f32 %v6312, %v6312
    %v6382 = vmul.f32 %v6364, %v6364
    %v6383 = vrot.slane %v6381, 4
    %v6384 = vadd.f32 %v6381, %v6383
    %v6385 = vrot.slane %v6384, 2
    %v6386 = vadd.f32 %v6384, %v6385
    %v6387 = vrot.slane %v6386, 1
    %v6388 = vadd.f32 %v6386, %v6387
    %v6389 = vrot.slane %v6382, 4
    %v6390 = vadd.f32 %v6382, %v6389
    %v6391 = vrot.slane %v6390, 2
    %v6392 = vadd.f32 %v6390, %v6391
    %v6393 = vrot.slane %v6392, 1
    %v6394 = vadd.f32 %v6392, %v6393
    %v6395 = vmul.f32 %v6388, %v3431
    %v6396 = vmul.f32 %v6394, %v3431
    %v6397 = vmul.f32 %v6379, %v6379
    %v6398 = vmul.f32 %v6380, %v6380
    %v6399 = vsub.f32 %v6395, %v6397
    %v6400 = vsub.f32 %v6396, %v6398
    %v6401 = vmax.f32 %v6399, 0.0
    %v6402 = vmax.f32 %v6400, 0.0
    %v6403 = vadd.f32 %v6401, 1e-05
    %v6404 = vadd.f32 %v6402, 1e-05
    %v6405 = vrsqrt.pop %v6403
    %v6406 = vmul.f32 %v6405, %v6403
    %v6407 = vmul.f32 %v6406, %v6405
    %v6408 = vmul.f32 0.5, %v6407
    %v6409 = vsub.f32 1.5, %v6408
    %v6410 = vmul.f32 %v6405, %v6409
    %vm6411 = vweird.f32 %v6403
    %vm6412 = vweird.f32 %v6405
    %vm6413 = vmor %vm6411, %vm6412
    %v6414 = vsel %vm6413, %v6405, %v6410
    %v6415 = vrsqrt.pop %v6404
    %v6416 = vmul.f32 %v6415, %v6404
    %v6417 = vmul.f32 %v6416, %v6415
    %v6418 = vmul.f32 0.5, %v6417
    %v6419 = vsub.f32 1.5, %v6418
    %v6420 = vmul.f32 %v6415, %v6419
    %vm6421 = vweird.f32 %v6404
    %vm6422 = vweird.f32 %v6415
    %vm6423 = vmor %vm6421, %vm6422
    %v6424 = vsel %vm6423, %v6415, %v6420
    %v6425 = vld [vmem:[#allocation16] sm:$0x3]
    %v6428 = vrot.slane %v6424, 7
    %v6429 = vsel %vm3632, %v6414, %v6428
    %v6431 = vmul.f32 %v6425, %v6429
    %v6432 = vld [vmem:[#allocation17] sm:$0x3]
    %v6434 = vperm.slane %v6431, 0
    %v6435 = vperm.slane %v6431, 1
    %v6438 = vmul.f32 %v6379, %v6434
    %v6439 = vmul.f32 %v6380, %v6435
    %v6442 = vrot.slane %v6439, 7
    %v6443 = vsel %vm3632, %v6438, %v6442
    %v6445 = vsub.f32 %v6432, %v6443
    %v6446 = vmul.f32 %v6312, %v6434
    %v6447 = vmul.f32 %v6364, %v6435
    %v6449 = vperm.slane %v6445, 0
    %v6450 = vperm.slane %v6445, 1
    %v6453 = vadd.f32 %v6446, %v6449
    %v6454 = vadd.f32 %v6447, %v6450
    %v6455 = vmax.f32 %v6453, 0.0
    %v6456 = vmax.f32 %v6454, 0.0
    %v6457 = vpack.c.bf16 %v6455, %v6455
    %v6458 = vpack.c.bf16 %v6456, %v6456
    %v6459 = vld [vmem:[#allocation19] sm:$0xf]
    %v6460 = vld [vmem:[#allocation19 + $0x4] sm:$0xf]
    %v6461 = vld [vmem:[#allocation19 + $0x8] sm:$0xf]
    %v6462 = vld [vmem:[#allocation19 + $0xc] sm:$0xf]
    %v6463 = vld [vmem:[#allocation19 + $0x10] sm:$0xf]
    %v6464 = vld [vmem:[#allocation19 + $0x14] sm:$0xf]
    %v6465 = vld [vmem:[#allocation19 + $0x18] sm:$0xf]
    %v6466 = vld [vmem:[#allocation19 + $0x1c] sm:$0xf]
    %v6467 = vld [vmem:[#allocation19 + $0x20] sm:$0xf]
    %v6468 = vld [vmem:[#allocation19 + $0x24] sm:$0xf]
    %v6469 = vld [vmem:[#allocation19 + $0x28] sm:$0xf]
    %v6470 = vld [vmem:[#allocation19 + $0x2c] sm:$0xf]
    %v6471 = vld [vmem:[#allocation19 + $0x30] sm:$0xf]
    %v6472 = vld [vmem:[#allocation19 + $0x34] sm:$0xf]
    %v6473 = vld [vmem:[#allocation19 + $0x38] sm:$0xf]
    %v6474 = vld [vmem:[#allocation19 + $0x3c] sm:$0xf]
    %v6475 = vld [vmem:[#allocation19 + $0x40] sm:$0xf]
    %v6476 = vld [vmem:[#allocation19 + $0x44] sm:$0xf]
    %v6477 = vld [vmem:[#allocation19 + $0x48] sm:$0xf]
    %v6478 = vld [vmem:[#allocation19 + $0x4c] sm:$0xf]
    %v6479 = vld [vmem:[#allocation19 + $0x50] sm:$0xf]
    %v6480 = vld [vmem:[#allocation19 + $0x54] sm:$0xf]
    %v6481 = vld [vmem:[#allocation19 + $0x58] sm:$0xf]
    %v6482 = vld [vmem:[#allocation19 + $0x5c] sm:$0xf]
    %v6483 = vld [vmem:[#allocation19 + $0x60] sm:$0xf]
    %v6484 = vld [vmem:[#allocation19 + $0x64] sm:$0xf]
    %v6485 = vld [vmem:[#allocation19 + $0x68] sm:$0xf]
    %v6486 = vld [vmem:[#allocation19 + $0x6c] sm:$0xf]
    %v6487 = vld [vmem:[#allocation19 + $0x70] sm:$0xf]
    %v6488 = vld [vmem:[#allocation19 + $0x74] sm:$0xf]
    %v6489 = vld [vmem:[#allocation19 + $0x78] sm:$0xf]
    %v6490 = vld [vmem:[#allocation19 + $0x7c] sm:$0xf]
    %v6523 = vunpack.c.l.b16 %v6459
    %v6524 = vunpack.c.l.b16 %v6460
    %v6525 = vunpack.c.l.b16 %v6461
    %v6526 = vunpack.c.l.b16 %v6462
    %v6527 = vunpack.c.l.b16 %v6463
    %v6528 = vunpack.c.l.b16 %v6464
    %v6529 = vunpack.c.l.b16 %v6465
    %v6530 = vunpack.c.l.b16 %v6466
    %v6531 = vunpack.c.l.b16 %v6467
    %v6532 = vunpack.c.l.b16 %v6468
    %v6533 = vunpack.c.l.b16 %v6469
    %v6534 = vunpack.c.l.b16 %v6470
    %v6535 = vunpack.c.l.b16 %v6471
    %v6536 = vunpack.c.l.b16 %v6472
    %v6537 = vunpack.c.l.b16 %v6473
    %v6538 = vunpack.c.l.b16 %v6474
    %v6539 = vunpack.c.l.b16 %v6475
    %v6540 = vunpack.c.l.b16 %v6476
    %v6541 = vunpack.c.l.b16 %v6477
    %v6542 = vunpack.c.l.b16 %v6478
    %v6543 = vunpack.c.l.b16 %v6479
    %v6544 = vunpack.c.l.b16 %v6480
    %v6545 = vunpack.c.l.b16 %v6481
    %v6546 = vunpack.c.l.b16 %v6482
    %v6547 = vunpack.c.l.b16 %v6483
    %v6548 = vunpack.c.l.b16 %v6484
    %v6549 = vunpack.c.l.b16 %v6485
    %v6550 = vunpack.c.l.b16 %v6486
    %v6551 = vunpack.c.l.b16 %v6487
    %v6552 = vunpack.c.l.b16 %v6488
    %v6553 = vunpack.c.l.b16 %v6489
    %v6554 = vunpack.c.l.b16 %v6490
    %v6555 = vpack.c.b16 %v6524, %v6523
    %v6556 = vpack.c.b16 %v6526, %v6525
    %v6557 = vpack.c.b16 %v6528, %v6527
    %v6558 = vpack.c.b16 %v6530, %v6529
    %v6559 = vpack.c.b16 %v6532, %v6531
    %v6560 = vpack.c.b16 %v6534, %v6533
    %v6561 = vpack.c.b16 %v6536, %v6535
    %v6562 = vpack.c.b16 %v6538, %v6537
    %v6563 = vpack.c.b16 %v6540, %v6539
    %v6564 = vpack.c.b16 %v6542, %v6541
    %v6565 = vpack.c.b16 %v6544, %v6543
    %v6566 = vpack.c.b16 %v6546, %v6545
    %v6567 = vpack.c.b16 %v6548, %v6547
    %v6568 = vpack.c.b16 %v6550, %v6549
    %v6569 = vpack.c.b16 %v6552, %v6551
    %v6570 = vpack.c.b16 %v6554, %v6553
    %6587 = vmatpush.bf16.msra.mxu0 %v6562
    %6588 = vmatpush.bf16.msra.mxu0 %v6561
    %6589 = vmatpush.bf16.msra.mxu0 %v6560
    %6590 = vmatpush.bf16.msra.mxu0 %v6559
    %6591 = vmatpush.bf16.msra.mxu0 %v6558
    %6592 = vmatpush.bf16.msra.mxu0 %v6557
    %6593 = vmatpush.bf16.msra.mxu0 %v6556
    %6594 = vmatpush.bf16.msra.mxu0 %v6555
    %6595 = vmatmul.bf16.gmra.mxu0 %v6457
    %v6596 = vpop.f32.mrf.mxu0
    %v6597 = vadd.f32 0.0, %v6596
    %v6598 = vpop.f32.mrf.mxu0
    %6599 = vdwg.mxu0
    %6600 = vmatpush.bf16.msra.mxu0 %v6570
    %6601 = vmatpush.bf16.msra.mxu0 %v6569
    %6602 = vmatpush.bf16.msra.mxu0 %v6568
    %6603 = vmatpush.bf16.msra.mxu0 %v6567
    %6604 = vmatpush.bf16.msra.mxu0 %v6566
    %6605 = vmatpush.bf16.msra.mxu0 %v6565
    %6606 = vmatpush.bf16.msra.mxu0 %v6564
    %6607 = vmatpush.bf16.msra.mxu0 %v6563
    %6608 = vmatmul.bf16.gmra.mxu0 %v6458
    %v6609 = vpop.f32.mrf.mxu0
    %v6610 = vadd.f32 %v6597, %v6609
    %v6611 = vpop.f32.mrf.mxu0
    %6612 = vdwg.mxu0
    %v6613 = vrot.slane %v6610, 4
    %v6614 = vadd.f32 %v6610, %v6613
    %v6615 = vrot.slane %v6614, 2
    %v6616 = vadd.f32 %v6614, %v6615
    %v6617 = vrot.slane %v6616, 1
    %v6618 = vadd.f32 %v6616, %v6617
    %v6619 = vmul.f32 %v6618, %v3431
    %v6620 = vmul.f32 %v6610, %v6610
    %v6621 = vrot.slane %v6620, 4
    %v6622 = vadd.f32 %v6620, %v6621
    %v6623 = vrot.slane %v6622, 2
    %v6624 = vadd.f32 %v6622, %v6623
    %v6625 = vrot.slane %v6624, 1
    %v6626 = vadd.f32 %v6624, %v6625
    %v6627 = vmul.f32 %v6626, %v3431
    %v6628 = vmul.f32 %v6619, %v6619
    %v6629 = vsub.f32 %v6627, %v6628
    %v6630 = vmax.f32 %v6629, 0.0
    %v6631 = vadd.f32 %v6630, 1e-05
    %v6632 = vrsqrt.pop %v6631
    %v6633 = vmul.f32 %v6632, %v6631
    %v6634 = vmul.f32 %v6633, %v6632
    %v6635 = vmul.f32 0.5, %v6634
    %v6636 = vsub.f32 1.5, %v6635
    %v6637 = vmul.f32 %v6632, %v6636
    %vm6638 = vweird.f32 %v6631
    %vm6639 = vweird.f32 %v6632
    %vm6640 = vmor %vm6638, %vm6639
    %v6641 = vsel %vm6640, %v6632, %v6637
    %v6642 = vld [vmem:[#allocation20] sm:$0x1]
    %v6643 = vmul.f32 %v6642, %v6641
    %v6644 = vld [vmem:[#allocation22] sm:$0x1]
    %v6645 = vmul.f32 %v6619, %v6643
    %v6646 = vsub.f32 %v6644, %v6645
    %v6648 = vperm.slane %v6643, 0
    %v6650 = vmul.f32 %v6610, %v6648
    %v6652 = vperm.slane %v6646, 0
    %v6654 = vadd.f32 %v6650, %v6652
    %v6655 = vmax.f32 %v6654, 0.0
    %v6656 = vpack.c.bf16 %v6655, %v6655
    %v6657 = vld [vmem:[#allocation23] sm:$0xf]
    %v6658 = vld [vmem:[#allocation23 + $0x4] sm:$0xf]
    %v6659 = vld [vmem:[#allocation23 + $0x8] sm:$0xf]
    %v6660 = vld [vmem:[#allocation23 + $0xc] sm:$0xf]
    %v6661 = vld [vmem:[#allocation23 + $0x10] sm:$0xf]
    %v6662 = vld [vmem:[#allocation23 + $0x14] sm:$0xf]
    %v6663 = vld [vmem:[#allocation23 + $0x18] sm:$0xf]
    %v6664 = vld [vmem:[#allocation23 + $0x1c] sm:$0xf]
    %v6665 = vld [vmem:[#allocation23 + $0x20] sm:$0xf]
    %v6666 = vld [vmem:[#allocation23 + $0x24] sm:$0xf]
    %v6667 = vld [vmem:[#allocation23 + $0x28] sm:$0xf]
    %v6668 = vld [vmem:[#allocation23 + $0x2c] sm:$0xf]
    %v6669 = vld [vmem:[#allocation23 + $0x30] sm:$0xf]
    %v6670 = vld [vmem:[#allocation23 + $0x34] sm:$0xf]
    %v6671 = vld [vmem:[#allocation23 + $0x38] sm:$0xf]
    %v6672 = vld [vmem:[#allocation23 + $0x3c] sm:$0xf]
    %v6673 = vld [vmem:[#allocation25] sm:$0x1]
    %v6675 = vperm.slane %v6673, 0
    %v6693 = vunpack.c.l.b16 %v6657
    %v6694 = vunpack.c.l.b16 %v6658
    %v6695 = vunpack.c.l.b16 %v6659
    %v6696 = vunpack.c.l.b16 %v6660
    %v6697 = vunpack.c.l.b16 %v6661
    %v6698 = vunpack.c.l.b16 %v6662
    %v6699 = vunpack.c.l.b16 %v6663
    %v6700 = vunpack.c.l.b16 %v6664
    %v6701 = vunpack.c.l.b16 %v6665
    %v6702 = vunpack.c.l.b16 %v6666
    %v6703 = vunpack.c.l.b16 %v6667
    %v6704 = vunpack.c.l.b16 %v6668
    %v6705 = vunpack.c.l.b16 %v6669
    %v6706 = vunpack.c.l.b16 %v6670
    %v6707 = vunpack.c.l.b16 %v6671
    %v6708 = vunpack.c.l.b16 %v6672
    %v6709 = vpack.c.b16 %v6694, %v6693
    %v6710 = vpack.c.b16 %v6696, %v6695
    %v6711 = vpack.c.b16 %v6698, %v6697
    %v6712 = vpack.c.b16 %v6700, %v6699
    %v6713 = vpack.c.b16 %v6702, %v6701
    %v6714 = vpack.c.b16 %v6704, %v6703
    %v6715 = vpack.c.b16 %v6706, %v6705
    %v6716 = vpack.c.b16 %v6708, %v6707
    %6725 = vmatpush.bf16.msra.mxu0 %v6716
    %6726 = vmatpush.bf16.msra.mxu0 %v6715
    %6727 = vmatpush.bf16.msra.mxu0 %v6714
    %6728 = vmatpush.bf16.msra.mxu0 %v6713
    %6729 = vmatpush.bf16.msra.mxu0 %v6712
    %6730 = vmatpush.bf16.msra.mxu0 %v6711
    %6731 = vmatpush.bf16.msra.mxu0 %v6710
    %6732 = vmatpush.bf16.msra.mxu0 %v6709
    %6733 = vmatmul.bf16.gmra.mxu0 %v6656
    %v6734 = vpop.f32.mrf.mxu0
    %v6735 = vadd.f32 %v6675, %v6734
    %v6736 = vpop.f32.mrf.mxu0
    %6737 = vdwg.mxu0
    %6738 = vmax.xlane.f32.xlu0 %v6735
    %v6739 = vpop.xlane.xlu0 %6738
    %v6740 = vsub.f32 %v6735, %v6739
    %v6741 = vmul.f32 %v6740, 1.442695
    %v6742 = vpow.pop %v6741
    %6743 = vadd.xlane.f32.xlu0 %v6742
    %v6744 = vpop.xlane.xlu0 %6743
    %v6745 = vlog2.pop %v6744
    %v6746 = vmul.f32 %v6745, 0.6931472
    %v6747 = vsub.f32 %v6740, %v6746
    %6748 = vst [vmem:[#allocation26] sm:$0xff] %v6747
    // Predicated region
    $region122: #{tpu_custom_call.1} parent=1 // pred_check
      _
    $region123: #{tpu_custom_call.1} parent=1 // pred_check_branch
      %6750 = sbr.rel (0) target = $region125
    $region124: #{tpu_custom_call.1} parent=1 // pred_region
      %6752 = vsyncadd [#allocation4], 0
      %s6754 = sshll.u32 [#allocation26], 4
      %s6755 = int_to_ptr.vmem [resolvable:$true] %s6754
      %s6756 = sshll.u32 %s15, 4
      %s6757 = int_to_ptr.hbm [resolvable:$true] %s6756
      %6759 = dma.vmem_to_hbm [thread:$0]  %s6755, 128, %s6757, [#allocation4]
    $region125: #{tpu_custom_call.1} parent=1 // pred_fallthru
      _
    // Predicated region
    $region126: #{tpu_custom_call.1} parent=1 // pred_check
      _
    $region127: #{tpu_custom_call.1} parent=1 // pred_check_branch
      %6761 = sbr.rel (0) target = $region129
    $region128: #{tpu_custom_call.1} parent=1 // pred_region
      %6763 = dma.done [#allocation4], 128
    $region129: #{tpu_custom_call.1} parent=1 // pred_fallthru
      _
    %6764 = vsyncpa [#allocation3], 1
    %6765 = vsyncpa [#allocation6], 1
    %6766 = vsyncpa [#allocation9], 1
    %6767 = vsyncpa [#allocation12], 1
    %6768 = vsyncpa [#allocation15], 1
    %6769 = vsyncpa [#allocation18], 1
    %6770 = vsyncpa [#allocation21], 1
    %6771 = vsyncpa [#allocation24], 1
    %6772 = vsyncpa [#allocation4], 1

</llo_original>
